<compile_context>
chip_gen: v5e
topology: v5e:2x2
jax: 0.10.0
libtpu: 0.0.40
codegen_flags: <defaults>
</compile_context>

<pallas_src>
import numpy as np
import jax
import jax.numpy as jnp
from jax.experimental import pallas as pl
from jax.experimental.pallas import tpu as pltpu


# ----------------------------------------------------------------------------
# Host-side constant construction (static shapes only)
# ----------------------------------------------------------------------------

def _round8(n):
    return -(-int(n) // 8) * 8


def _conv_out(h, stride):
    return (h + 2 - 3) // stride + 1


def _shift_matrices(h, w, stride):
    """(9, H*W, Ho*Wo) 0/1 matrices: (X @ G[t])[:, p_out] is the tap-t neighbour of
    output pixel p_out for a 3x3 / padding=1 conv (zero where out of bounds)."""
    ho, wo = _conv_out(h, stride), _conv_out(w, stride)
    g = np.zeros((9, h * w, ho * wo), dtype=np.float32)
    for ky in range(3):
        for kx in range(3):
            t = ky * 3 + kx
            for oy in range(ho):
                iy = oy * stride + ky - 1
                if not (0 <= iy < h):
                    continue
                for ox in range(wo):
                    ix = ox * stride + kx - 1
                    if 0 <= ix < w:
                        g[t, iy * w + ix, oy * wo + ox] = 1.0
    return g


def _build_layer(key, C_in, C_out, K, D_in, D_out, use_bias, h_in, stride, first, Bt):
    """Synthetic params for one CapsLayerWithClusterRouting, repacked for the kernel."""
    OC = K * C_out * D_out                       # conv out-channels, order (K, C_out, D_out)
    kw, kb = jax.random.split(key)
    w = np.asarray(0.1 * jax.random.normal(kw, (C_in, OC, D_in, 3, 3), jnp.float32))
    if use_bias:
        bias = np.asarray(0.01 * jax.random.normal(kb, (C_in, OC), jnp.float32))
    else:
        bias = np.zeros((C_in, OC), np.float32)

    P_in = h_in * h_in
    P_out = _conv_out(h_in, stride) ** 2
    # Row count of the layer's input tile.  Layer 1's image rows are zero-padded to a
    # multiple of 8 so the per-tap scratch offsets are sublane-aligned.
    din = _round8(D_in) if first else C_in * D_in

    # Horizontally packed conv weights: WBh[i*OC + oc, t*din + d] evaluates ALL C_in
    # convs and all 9 taps of the layer in a single MXU dot.
    wbh = np.zeros((C_in * OC, 9 * din), np.float32)
    for i in range(C_in):
        d0 = 0 if first else i * D_in            # conv i only sees caps[i] (layer>=2)
        for t in range(9):
            ky, kx = t // 3, t % 3
            wbh[i * OC:(i + 1) * OC, t * din + d0: t * din + d0 + D_in] = w[i, :, :, ky, kx]

    # Batch-block-diagonal, tap-concatenated shift matrix: (Bt*P_in, 9*Bt*P_out).
    g9 = _shift_matrices(h_in, h_in, stride)
    W_in, W_out = Bt * P_in, Bt * P_out
    gb = np.zeros((W_in, 9 * W_out), np.float32)
    for t in range(9):
        for b in range(Bt):
            gb[b * P_in:(b + 1) * P_in,
               t * W_out + b * P_out: t * W_out + (b + 1) * P_out] = g9[t]

    bvec = bias.reshape(C_in * OC, 1)            # broadcast over lanes in the kernel

    # 0/1 per-sample block-sum matrices (lane reductions routed through the MXU).
    bs = np.zeros((W_out, Bt), np.float32)
    for b in range(Bt):
        bs[b * P_out:(b + 1) * P_out, b] = 1.0

    meta = dict(C_in=C_in, C_out=C_out, K=K, D_out=D_out,
                din=din, P_in=P_in, P_out=P_out)
    arrs = dict(gb=gb, wbh=wbh, bvec=bvec, bs=bs, bst=bs.T.copy())
    return arrs, meta


def _pack(pieces):
    """Stack 2-D numpy arrays vertically (8-row aligned starts, zero lane padding)."""
    width = max(int(p.shape[1]) for p in pieces)
    offs, rows = [], 0
    for p in pieces:
        offs.append(rows)
        rows += _round8(p.shape[0])
    slab = np.zeros((rows, width), np.float32)
    for off, p in zip(offs, pieces):
        slab[off:off + p.shape[0], :p.shape[1]] = p
    return slab, offs


def init_network(key, args, Bt):
    C, K, D = args["C"], args["K"], args["D"]
    S = args["input_img_size"]
    n_cls = args["class_num"]
    use_bias = args["if_bias"]
    keys = jax.random.split(key, 7)

    cfg = [  # (C_in, C_out, D_in, h_in, stride, first)
        (C, C,     args["input_img_dim"], S,      1, True),
        (C, C,     D,                     S,      2, False),
        (C, C,     D,                     S // 2, 1, False),
        (C, C,     D,                     S // 2, 2, False),
        (C, n_cls, D,                     S // 4, 1, False),
    ]
    layer_arrs, metas = [], []
    for k, (ci, co, di, hin, st, first) in zip(keys[:5], cfg):
        a, m = _build_layer(k, ci, co, K, di, D, use_bias, hin, st, first, Bt)
        layer_arrs.append(a)
        metas.append(m)

    # Classifier Linear(D * (S//4)^2, 1), shared by the class_num capsules.
    # Torch flatten order of a capsule is (D, h, w) -> weight reshaped to (D, P5).
    P5 = (S // 4) ** 2
    wc = np.asarray(0.1 * jax.random.normal(keys[5], (D, P5), jnp.float32))
    bc = np.asarray(0.01 * jax.random.normal(keys[6], (1, 1), jnp.float32))
    wct = np.zeros((n_cls * D, Bt * P5), np.float32)       # tiled over class rows + batch lanes
    for n in range(n_cls):
        for b in range(Bt):
            wct[n * D:(n + 1) * D, b * P5:(b + 1) * P5] = wc
    sel = np.zeros((n_cls, n_cls * D), np.float32)          # per-class row-block sum
    for n in range(n_cls):
        sel[n, n * D:(n + 1) * D] = 1.0

    # ---- pack everything into three constant slabs (4 operands total incl. x) ----
    gslab, g_offs = _pack([a["gb"] for a in layer_arrs])
    wslab, w_offs = _pack([a["wbh"] for a in layer_arrs])
    cpieces = []
    for a in layer_arrs:
        cpieces += [a["bvec"], a["bs"], a["bst"]]
    cpieces += [wct, sel, bc]
    cslab, c_offs = _pack(cpieces)

    for l, m in enumerate(metas):
        m["g_off"] = g_offs[l]
        m["wb_off"] = w_offs[l]
        m["b_off"] = c_offs[3 * l]
        m["bs_off"] = c_offs[3 * l + 1]
        m["bst_off"] = c_offs[3 * l + 2]

    meta = dict(layers=metas, Bt=Bt, n_cls=n_cls, D=D, P5=P5,
                wct_off=c_offs[-3], sel_off=c_offs[-2], bc_off=c_offs[-1],
                din1=metas[0]["din"])
    slabs = dict(g=jnp.asarray(gslab), wb=jnp.asarray(wslab), c=jnp.asarray(cslab))
    return slabs, meta


# ----------------------------------------------------------------------------
# Fused whole-network kernel
# ----------------------------------------------------------------------------

def _addn(xs):
    acc = xs[0]
    for x in xs[1:]:
        acc = acc + x
    return acc


def _make_kernel(meta):
    Bt = meta["Bt"]
    n_cls, D, P5 = meta["n_cls"], meta["D"], meta["P5"]
    layers = meta["layers"]
    f32 = jnp.float32

    def kernel(x_ref, g_ref, wb_ref, c_ref, o_ref, shift_ref, caps_ref):
        for l, L in enumerate(layers):
            C_in, C_out, K, D_out = L["C_in"], L["C_out"], L["K"], L["D_out"]
            din, P_in, P_out = L["din"], L["P_in"], L["P_out"]
            OC = K * C_out * D_out
            OC_tot = C_in * OC
            CD = C_out * D_out
            W_in, W = Bt * P_in, Bt * P_out

            # ---- conv stage: all C_in convs, all 9 taps, in two big MXU dots ----
            if l == 0:
                X = x_ref[0]                                   # (din, Bt*P_in), zero-padded rows
            else:
                X = caps_ref[0:din, 0:W_in]                    # previous layer's capsules

            G = g_ref[L["g_off"]:L["g_off"] + W_in, 0:9 * W]
            S = jnp.dot(X, G, preferred_element_type=f32)      # (din, 9*Bt*P_out)
            for t in range(9):                                 # (t, d)-stack, 8-aligned rows
                shift_ref[t * din:(t + 1) * din, 0:W] = S[:, t * W:(t + 1) * W]

            WB = wb_ref[L["wb_off"]:L["wb_off"] + OC_tot, 0:9 * din]
            bias = c_ref[L["b_off"]:L["b_off"] + OC_tot, 0:1]
            votes = jnp.dot(WB, shift_ref[0:9 * din, 0:W],
                            preferred_element_type=f32) + bias  # (OC_tot, Bt*P_out)

            # ---- cluster routing + fused LayerNorm, per output capsule ----
            BS = c_ref[L["bs_off"]:L["bs_off"] + W, 0:Bt]       # (W, Bt)   per-sample sums
            BST = c_ref[L["bst_off"]:L["bst_off"] + Bt, 0:W]    # (Bt, W)   broadcast back
            onesD = jnp.ones((1, D_out), f32)
            inv_n = 1.0 / float(D_out * P_out)
            inv_k = 1.0 / float(K)

            for c in range(C_out):
                rsum, cap = None, None
                for i in range(C_in):
                    base = i * OC + c * D_out
                    vk = [votes[base + k * CD: base + k * CD + D_out, :] for k in range(K)]
                    mean_i = _addn(vk) * inv_k
                    var_i = _addn([(v - mean_i) ** 2 for v in vk]) * inv_k
                    # softmax_i(-log std_i) == rsqrt(var_i) / sum_i rsqrt(var_i)
                    # (population variance; 1e-30 only guards the var==0 corner that
                    #  NaNs in PyTorch too).
                    r_i = jax.lax.rsqrt(var_i + 1e-30)
                    rsum = r_i if rsum is None else rsum + r_i
                    wm = r_i * mean_i
                    cap = wm if cap is None else cap + wm
                cap = cap / rsum                                # routed capsule (D_out, W)

                # LayerNorm([D_out, h, w]) (identity affine, eps=1e-5).  Per-sample
                # lane reductions run on the MXU via the 0/1 block-sum matrices.
                mu_b = jnp.dot(jnp.dot(onesD, cap, preferred_element_type=f32),
                               BS, preferred_element_type=f32) * inv_n          # (1, Bt)
                cc = cap - jnp.dot(mu_b, BST, preferred_element_type=f32)
                var_b = jnp.dot(jnp.dot(onesD, cc * cc, preferred_element_type=f32),
                                BS, preferred_element_type=f32) * inv_n          # (1, Bt)
                inv_std = jax.lax.rsqrt(var_b + 1e-5)
                caps_ref[c * D_out:(c + 1) * D_out, 0:W] = cc * jnp.dot(
                    inv_std, BST, preferred_element_type=f32)

        # ---- classifier: shared Linear(D*P5, 1) over the class_num capsules ----
        W5 = Bt * P5
        rows = n_cls * D
        caps_all = caps_ref[0:rows, 0:W5]
        wct = c_ref[meta["wct_off"]:meta["wct_off"] + rows, 0:W5]
        sel = c_ref[meta["sel_off"]:meta["sel_off"] + n_cls, 0:rows]
        bc = c_ref[meta["bc_off"]:meta["bc_off"] + 1, 0:1]
        BS5 = c_ref[layers[-1]["bs_off"]:layers[-1]["bs_off"] + W5, 0:Bt]
        per_lane = jnp.dot(sel, caps_all * wct, preferred_element_type=f32)   # (n_cls, W5)
        logits = jnp.dot(per_lane, BS5, preferred_element_type=f32) + bc      # (n_cls, Bt)
        o_ref[0] = logits

    return kernel


def capsule_network_forward(slabs, meta, x_nchw):
    B, c_img, H, Wimg = x_nchw.shape
    Bt = meta["Bt"]
    assert B % Bt == 0, "batch must be a multiple of the batch tile"
    nb = B // Bt
    n_cls, din1 = meta["n_cls"], meta["din1"]
    P = H * Wimg

    # Zero-pad image channels to the 8-aligned row count used by layer 1, and fold
    # the per-step batch tile into the lane axis (columns ordered (sample, pixel)).
    x = jnp.pad(x_nchw.reshape(B, c_img, P), ((0, 0), (0, din1 - c_img), (0, 0)))
    x = x.reshape(nb, Bt, din1, P).transpose(0, 2, 1, 3).reshape(nb, din1, Bt * P)

    max_din = max(L["din"] for L in meta["layers"])
    max_w = max(Bt * L["P_out"] for L in meta["layers"])
    max_caps = max(L["C_out"] * L["D_out"] for L in meta["layers"])

    out = pl.pallas_call(
        _make_kernel(meta),
        out_shape=jax.ShapeDtypeStruct((nb, n_cls, Bt), jnp.float32),
        grid=(nb,),                                           # batch tiles, one per step
        in_specs=[
            pl.BlockSpec((1, din1, Bt * P), lambda b: (b, 0, 0)),
            pl.BlockSpec(slabs["g"].shape, lambda b: (0, 0)),   # resident constant slabs
            pl.BlockSpec(slabs["wb"].shape, lambda b: (0, 0)),
            pl.BlockSpec(slabs["c"].shape, lambda b: (0, 0)),
        ],
        out_specs=pl.BlockSpec((1, n_cls, Bt), lambda b: (b, 0, 0)),
        scratch_shapes=[
            pltpu.VMEM((9 * max_din, max_w), jnp.float32),      # (t, d)-stacked tap results
            pltpu.VMEM((max_caps, max_w), jnp.float32),         # current layer's capsules
        ],
        compiler_params=pltpu.CompilerParams(
            dimension_semantics=("parallel",),                  # shard batch tiles over TCs
            vmem_limit_bytes=32 * 1024 * 1024,
        ),
    )(x, slabs["g"], slabs["wb"], slabs["c"])
    # (nb, n_cls, Bt) -> (B, n_cls), matching the PyTorch forward's pred.squeeze()
    return out.transpose(0, 2, 1).reshape(B, n_cls)


if __name__ == "__main__":
    args = dict(C=2, K=2, D=8, input_img_dim=4, input_img_size=8,
                class_num=3, if_bias=True)
    Bt = 2            # batch tile folded into the lane axis
    B = 4             # -> grid=(2,): even, >=2 steps so both v7x TensorCores work
    key = jax.random.PRNGKey(0)
    pkey, xkey = jax.random.split(key)
    slabs, meta = init_network(pkey, args, Bt)
    x = jax.random.normal(
        xkey,
        (B, args["input_img_dim"], args["input_img_size"], args["input_img_size"]),
        jnp.float32,
    )
    pred = capsule_network_forward(slabs, meta, x)
    jax.block_until_ready(pred)
    assert pred.shape == (B, args["class_num"])
    assert bool(jnp.all(jnp.isfinite(pred)))
    print("KERNEL_OK")
</pallas_src>

<mosaic_0001>
module attributes {stable_mosaic.version = 11 : i64} {
  func.func @kernel(%arg0: i32, %arg1: memref<1x8x128xf32, #tpu.memory_space<vmem>>, %arg2: memref<328x1152xf32, #tpu.memory_space<vmem>>, %arg3: memref<352x144xf32, #tpu.memory_space<vmem>>, %arg4: memref<640x128xf32, #tpu.memory_space<vmem>>, %arg5: memref<1x3x2xf32, #tpu.memory_space<vmem>>, %arg6: memref<144x128xf32, #tpu.memory_space<vmem>>, %arg7: memref<24x128xf32, #tpu.memory_space<vmem>>) attributes {dimension_semantics = [#tpu.dimension_semantics<parallel>], iteration_bounds = array<i64: 2>, scalar_prefetch = 0 : i64, scratch_operands = 2 : i64, tpu.core_type = #tpu.core_type<tc>, window_params = [{transform_indices = @transform_0, window_bounds = array<i64: 1, 8, 128>}, {pipeline_mode = #tpu.pipeline_mode<synchronous>, transform_indices = @transform_1, window_bounds = array<i64: 328, 1152>}, {pipeline_mode = #tpu.pipeline_mode<synchronous>, transform_indices = @transform_2, window_bounds = array<i64: 352, 144>}, {pipeline_mode = #tpu.pipeline_mode<synchronous>, transform_indices = @transform_3, window_bounds = array<i64: 640, 128>}, {transform_indices = @transform_4, window_bounds = array<i64: 1, 3, 2>}]} {
    %c0 = arith.constant 0 : index
    %c0_0 = arith.constant 0 : index
    %c0_1 = arith.constant 0 : index
    %0 = vector.load %arg1[%c0, %c0_0, %c0_1] : memref<1x8x128xf32, #tpu.memory_space<vmem>>, vector<1x8x128xf32>
    %1 = vector.shape_cast %0 : vector<1x8x128xf32> to vector<8x128xf32>
    %c0_2 = arith.constant 0 : index
    %c0_3 = arith.constant 0 : index
    %2 = vector.load %arg2[%c0_2, %c0_3] : memref<328x1152xf32, #tpu.memory_space<vmem>>, vector<128x1152xf32>
    %cst = arith.constant dense<0.000000e+00> : vector<8x1152xf32>
    %3 = tpu.matmul %1, %2, %cst {dimension_numbers = #tpu.dot_dimension_numbers<[1], [0], [0], [1], [0, 0, 1, 1], [], []>} : vector<8x128xf32>, vector<128x1152xf32>, vector<8x1152xf32> -> vector<8x1152xf32>
    %4 = vector.extract_strided_slice %3 {offsets = [0, 0], sizes = [8, 128], strides = [1, 1]} : vector<8x1152xf32> to vector<8x128xf32>
    %c0_4 = arith.constant 0 : index
    %c0_5 = arith.constant 0 : index
    %5 = vector.load %arg6[%c0_4, %c0_5] : memref<144x128xf32, #tpu.memory_space<vmem>>, vector<8x128xf32>
    tpu.vector_store %arg6[%c0_4, %c0_5], %4 {strides = array<i32>} : memref<144x128xf32, #tpu.memory_space<vmem>>, vector<8x128xf32>,
    %6 = vector.extract_strided_slice %3 {offsets = [0, 128], sizes = [8, 128], strides = [1, 1]} : vector<8x1152xf32> to vector<8x128xf32>
    %c8 = arith.constant 8 : index
    %c0_6 = arith.constant 0 : index
    %7 = vector.load %arg6[%c8, %c0_6] : memref<144x128xf32, #tpu.memory_space<vmem>>, vector<8x128xf32>
    tpu.vector_store %arg6[%c8, %c0_6], %6 {strides = array<i32>} : memref<144x128xf32, #tpu.memory_space<vmem>>, vector<8x128xf32>,
    %8 = vector.extract_strided_slice %3 {offsets = [0, 256], sizes = [8, 128], strides = [1, 1]} : vector<8x1152xf32> to vector<8x128xf32>
    %c16 = arith.constant 16 : index
    %c0_7 = arith.constant 0 : index
    %9 = vector.load %arg6[%c16, %c0_7] : memref<144x128xf32, #tpu.memory_space<vmem>>, vector<8x128xf32>
    tpu.vector_store %arg6[%c16, %c0_7], %8 {strides = array<i32>} : memref<144x128xf32, #tpu.memory_space<vmem>>, vector<8x128xf32>,
    %10 = vector.extract_strided_slice %3 {offsets = [0, 384], sizes = [8, 128], strides = [1, 1]} : vector<8x1152xf32> to vector<8x128xf32>
    %c24 = arith.constant 24 : index
    %c0_8 = arith.constant 0 : index
    %11 = vector.load %arg6[%c24, %c0_8] : memref<144x128xf32, #tpu.memory_space<vmem>>, vector<8x128xf32>
    tpu.vector_store %arg6[%c24, %c0_8], %10 {strides = array<i32>} : memref<144x128xf32, #tpu.memory_space<vmem>>, vector<8x128xf32>,
    %12 = vector.extract_strided_slice %3 {offsets = [0, 512], sizes = [8, 128], strides = [1, 1]} : vector<8x1152xf32> to vector<8x128xf32>
    %c32 = arith.constant 32 : index
    %c0_9 = arith.constant 0 : index
    %13 = vector.load %arg6[%c32, %c0_9] : memref<144x128xf32, #tpu.memory_space<vmem>>, vector<8x128xf32>
    tpu.vector_store %arg6[%c32, %c0_9], %12 {strides = array<i32>} : memref<144x128xf32, #tpu.memory_space<vmem>>, vector<8x128xf32>,
    %14 = vector.extract_strided_slice %3 {offsets = [0, 640], sizes = [8, 128], strides = [1, 1]} : vector<8x1152xf32> to vector<8x128xf32>
    %c40 = arith.constant 40 : index
    %c0_10 = arith.constant 0 : index
    %15 = vector.load %arg6[%c40, %c0_10] : memref<144x128xf32, #tpu.memory_space<vmem>>, vector<8x128xf32>
    tpu.vector_store %arg6[%c40, %c0_10], %14 {strides = array<i32>} : memref<144x128xf32, #tpu.memory_space<vmem>>, vector<8x128xf32>,
    %16 = vector.extract_strided_slice %3 {offsets = [0, 768], sizes = [8, 128], strides = [1, 1]} : vector<8x1152xf32> to vector<8x128xf32>
    %c48 = arith.constant 48 : index
    %c0_11 = arith.constant 0 : index
    %17 = vector.load %arg6[%c48, %c0_11] : memref<144x128xf32, #tpu.memory_space<vmem>>, vector<8x128xf32>
    tpu.vector_store %arg6[%c48, %c0_11], %16 {strides = array<i32>} : memref<144x128xf32, #tpu.memory_space<vmem>>, vector<8x128xf32>,
    %18 = vector.extract_strided_slice %3 {offsets = [0, 896], sizes = [8, 128], strides = [1, 1]} : vector<8x1152xf32> to vector<8x128xf32>
    %c56 = arith.constant 56 : index
    %c0_12 = arith.constant 0 : index
    %19 = vector.load %arg6[%c56, %c0_12] : memref<144x128xf32, #tpu.memory_space<vmem>>, vector<8x128xf32>
    tpu.vector_store %arg6[%c56, %c0_12], %18 {strides = array<i32>} : memref<144x128xf32, #tpu.memory_space<vmem>>, vector<8x128xf32>,
    %20 = vector.extract_strided_slice %3 {offsets = [0, 1024], sizes = [8, 128], strides = [1, 1]} : vector<8x1152xf32> to vector<8x128xf32>
    %c64 = arith.constant 64 : index
    %c0_13 = arith.constant 0 : index
    %21 = vector.load %arg6[%c64, %c0_13] : memref<144x128xf32, #tpu.memory_space<vmem>>, vector<8x128xf32>
    tpu.vector_store %arg6[%c64, %c0_13], %20 {strides = array<i32>} : memref<144x128xf32, #tpu.memory_space<vmem>>, vector<8x128xf32>,
    %c0_14 = arith.constant 0 : index
    %c0_15 = arith.constant 0 : index
    %22 = vector.load %arg3[%c0_14, %c0_15] : memref<352x144xf32, #tpu.memory_space<vmem>>, vector<64x72xf32>
    %c0_16 = arith.constant 0 : index
    %c0_17 = arith.constant 0 : index
    %23 = vector.load %arg4[%c0_16, %c0_17] : memref<640x128xf32, #tpu.memory_space<vmem>>, vector<64x1xf32>
    %c0_18 = arith.constant 0 : index
    %c0_19 = arith.constant 0 : index
    %24 = vector.load %arg6[%c0_18, %c0_19] : memref<144x128xf32, #tpu.memory_space<vmem>>, vector<72x128xf32>
    %cst_20 = arith.constant dense<0.000000e+00> : vector<64x128xf32>
    %25 = tpu.matmul %22, %24, %cst_20 {dimension_numbers = #tpu.dot_dimension_numbers<[1], [0], [0], [1], [0, 0, 1, 1], [], []>} : vector<64x72xf32>, vector<72x128xf32>, vector<64x128xf32> -> vector<64x128xf32>
    %26 = vector.broadcast %23 : vector<64x1xf32> to vector<64x128xf32>
    %27 = arith.addf %25, %26 : vector<64x128xf32>
    %c64_21 = arith.constant 64 : index
    %c0_22 = arith.constant 0 : index
    %28 = vector.load %arg4[%c64_21, %c0_22] : memref<640x128xf32, #tpu.memory_space<vmem>>, vector<128x2xf32>
    %c192 = arith.constant 192 : index
    %c0_23 = arith.constant 0 : index
    %29 = vector.load %arg4[%c192, %c0_23] : memref<640x128xf32, #tpu.memory_space<vmem>>, vector<2x128xf32>
    %cst_24 = arith.constant 1.000000e+00 : f32
    %30 = vector.broadcast %cst_24 : f32 to vector<1x8xf32>
    %31 = vector.extract_strided_slice %27 {offsets = [0, 0], sizes = [8, 128], strides = [1, 1]} : vector<64x128xf32> to vector<8x128xf32>
    %32 = vector.extract_strided_slice %27 {offsets = [16, 0], sizes = [8, 128], strides = [1, 1]} : vector<64x128xf32> to vector<8x128xf32>
    %33 = arith.addf %31, %32 : vector<8x128xf32>
    %cst_25 = arith.constant 5.000000e-01 : f32
    %34 = vector.broadcast %cst_25 : f32 to vector<8x128xf32>
    %35 = arith.mulf %33, %34 : vector<8x128xf32>
    %36 = arith.subf %31, %35 : vector<8x128xf32>
    %37 = arith.mulf %36, %36 : vector<8x128xf32>
    %38 = arith.subf %32, %35 : vector<8x128xf32>
    %39 = arith.mulf %38, %38 : vector<8x128xf32>
    %40 = arith.addf %37, %39 : vector<8x128xf32>
    %cst_26 = arith.constant 5.000000e-01 : f32
    %41 = vector.broadcast %cst_26 : f32 to vector<8x128xf32>
    %42 = arith.mulf %40, %41 : vector<8x128xf32>
    %cst_27 = arith.constant 1.000000e-30 : f32
    %43 = vector.broadcast %cst_27 : f32 to vector<8x128xf32>
    %44 = arith.addf %42, %43 : vector<8x128xf32>
    %45 = math.rsqrt %44 : vector<8x128xf32>
    %46 = arith.mulf %45, %35 : vector<8x128xf32>
    %47 = vector.extract_strided_slice %27 {offsets = [32, 0], sizes = [8, 128], strides = [1, 1]} : vector<64x128xf32> to vector<8x128xf32>
    %48 = vector.extract_strided_slice %27 {offsets = [48, 0], sizes = [8, 128], strides = [1, 1]} : vector<64x128xf32> to vector<8x128xf32>
    %49 = arith.addf %47, %48 : vector<8x128xf32>
    %cst_28 = arith.constant 5.000000e-01 : f32
    %50 = vector.broadcast %cst_28 : f32 to vector<8x128xf32>
    %51 = arith.mulf %49, %50 : vector<8x128xf32>
    %52 = arith.subf %47, %51 : vector<8x128xf32>
    %53 = arith.mulf %52, %52 : vector<8x128xf32>
    %54 = arith.subf %48, %51 : vector<8x128xf32>
    %55 = arith.mulf %54, %54 : vector<8x128xf32>
    %56 = arith.addf %53, %55 : vector<8x128xf32>
    %cst_29 = arith.constant 5.000000e-01 : f32
    %57 = vector.broadcast %cst_29 : f32 to vector<8x128xf32>
    %58 = arith.mulf %56, %57 : vector<8x128xf32>
    %cst_30 = arith.constant 1.000000e-30 : f32
    %59 = vector.broadcast %cst_30 : f32 to vector<8x128xf32>
    %60 = arith.addf %58, %59 : vector<8x128xf32>
    %61 = math.rsqrt %60 : vector<8x128xf32>
    %62 = arith.addf %45, %61 : vector<8x128xf32>
    %63 = arith.mulf %61, %51 : vector<8x128xf32>
    %64 = arith.addf %46, %63 : vector<8x128xf32>
    %65 = arith.divf %64, %62 : vector<8x128xf32>
    %cst_31 = arith.constant dense<0.000000e+00> : vector<1x128xf32>
    %66 = tpu.matmul %30, %65, %cst_31 {dimension_numbers = #tpu.dot_dimension_numbers<[1], [0], [0], [1], [0, 0, 1, 1], [], []>} : vector<1x8xf32>, vector<8x128xf32>, vector<1x128xf32> -> vector<1x128xf32>
    %cst_32 = arith.constant dense<0.000000e+00> : vector<1x2xf32>
    %67 = tpu.matmul %66, %28, %cst_32 {dimension_numbers = #tpu.dot_dimension_numbers<[1], [0], [0], [1], [0, 0, 1, 1], [], []>} : vector<1x128xf32>, vector<128x2xf32>, vector<1x2xf32> -> vector<1x2xf32>
    %cst_33 = arith.constant 0.001953125 : f32
    %68 = vector.broadcast %cst_33 : f32 to vector<1x2xf32>
    %69 = arith.mulf %67, %68 : vector<1x2xf32>
    %cst_34 = arith.constant dense<0.000000e+00> : vector<1x128xf32>
    %70 = tpu.matmul %69, %29, %cst_34 {dimension_numbers = #tpu.dot_dimension_numbers<[1], [0], [0], [1], [0, 0, 1, 1], [], []>} : vector<1x2xf32>, vector<2x128xf32>, vector<1x128xf32> -> vector<1x128xf32>
    %71 = vector.broadcast %70 : vector<1x128xf32> to vector<8x128xf32>
    %72 = arith.subf %65, %71 : vector<8x128xf32>
    %73 = arith.mulf %72, %72 : vector<8x128xf32>
    %cst_35 = arith.constant dense<0.000000e+00> : vector<1x128xf32>
    %74 = tpu.matmul %30, %73, %cst_35 {dimension_numbers = #tpu.dot_dimension_numbers<[1], [0], [0], [1], [0, 0, 1, 1], [], []>} : vector<1x8xf32>, vector<8x128xf32>, vector<1x128xf32> -> vector<1x128xf32>
    %cst_36 = arith.constant dense<0.000000e+00> : vector<1x2xf32>
    %75 = tpu.matmul %74, %28, %cst_36 {dimension_numbers = #tpu.dot_dimension_numbers<[1], [0], [0], [1], [0, 0, 1, 1], [], []>} : vector<1x128xf32>, vector<128x2xf32>, vector<1x2xf32> -> vector<1x2xf32>
    %cst_37 = arith.constant 0.001953125 : f32
    %76 = vector.broadcast %cst_37 : f32 to vector<1x2xf32>
    %77 = arith.mulf %75, %76 : vector<1x2xf32>
    %cst_38 = arith.constant 9.99999974E-6 : f32
    %78 = vector.broadcast %cst_38 : f32 to vector<1x2xf32>
    %79 = arith.addf %77, %78 : vector<1x2xf32>
    %80 = math.rsqrt %79 : vector<1x2xf32>
    %cst_39 = arith.constant dense<0.000000e+00> : vector<1x128xf32>
    %81 = tpu.matmul %80, %29, %cst_39 {dimension_numbers = #tpu.dot_dimension_numbers<[1], [0], [0], [1], [0, 0, 1, 1], [], []>} : vector<1x2xf32>, vector<2x128xf32>, vector<1x128xf32> -> vector<1x128xf32>
    %82 = vector.broadcast %81 : vector<1x128xf32> to vector<8x128xf32>
    %83 = arith.mulf %72, %82 : vector<8x128xf32>
    %c0_40 = arith.constant 0 : index
    %c0_41 = arith.constant 0 : index
    %84 = vector.load %arg7[%c0_40, %c0_41] : memref<24x128xf32, #tpu.memory_space<vmem>>, vector<8x128xf32>
    tpu.vector_store %arg7[%c0_40, %c0_41], %83 {strides = array<i32>} : memref<24x128xf32, #tpu.memory_space<vmem>>, vector<8x128xf32>,
    %85 = vector.extract_strided_slice %27 {offsets = [8, 0], sizes = [8, 128], strides = [1, 1]} : vector<64x128xf32> to vector<8x128xf32>
    %86 = vector.extract_strided_slice %27 {offsets = [24, 0], sizes = [8, 128], strides = [1, 1]} : vector<64x128xf32> to vector<8x128xf32>
    %87 = arith.addf %85, %86 : vector<8x128xf32>
    %cst_42 = arith.constant 5.000000e-01 : f32
    %88 = vector.broadcast %cst_42 : f32 to vector<8x128xf32>
    %89 = arith.mulf %87, %88 : vector<8x128xf32>
    %90 = arith.subf %85, %89 : vector<8x128xf32>
    %91 = arith.mulf %90, %90 : vector<8x128xf32>
    %92 = arith.subf %86, %89 : vector<8x128xf32>
    %93 = arith.mulf %92, %92 : vector<8x128xf32>
    %94 = arith.addf %91, %93 : vector<8x128xf32>
    %cst_43 = arith.constant 5.000000e-01 : f32
    %95 = vector.broadcast %cst_43 : f32 to vector<8x128xf32>
    %96 = arith.mulf %94, %95 : vector<8x128xf32>
    %cst_44 = arith.constant 1.000000e-30 : f32
    %97 = vector.broadcast %cst_44 : f32 to vector<8x128xf32>
    %98 = arith.addf %96, %97 : vector<8x128xf32>
    %99 = math.rsqrt %98 : vector<8x128xf32>
    %100 = arith.mulf %99, %89 : vector<8x128xf32>
    %101 = vector.extract_strided_slice %27 {offsets = [40, 0], sizes = [8, 128], strides = [1, 1]} : vector<64x128xf32> to vector<8x128xf32>
    %102 = vector.extract_strided_slice %27 {offsets = [56, 0], sizes = [8, 128], strides = [1, 1]} : vector<64x128xf32> to vector<8x128xf32>
    %103 = arith.addf %101, %102 : vector<8x128xf32>
    %cst_45 = arith.constant 5.000000e-01 : f32
    %104 = vector.broadcast %cst_45 : f32 to vector<8x128xf32>
    %105 = arith.mulf %103, %104 : vector<8x128xf32>
    %106 = arith.subf %101, %105 : vector<8x128xf32>
    %107 = arith.mulf %106, %106 : vector<8x128xf32>
    %108 = arith.subf %102, %105 : vector<8x128xf32>
    %109 = arith.mulf %108, %108 : vector<8x128xf32>
    %110 = arith.addf %107, %109 : vector<8x128xf32>
    %cst_46 = arith.constant 5.000000e-01 : f32
    %111 = vector.broadcast %cst_46 : f32 to vector<8x128xf32>
    %112 = arith.mulf %110, %111 : vector<8x128xf32>
    %cst_47 = arith.constant 1.000000e-30 : f32
    %113 = vector.broadcast %cst_47 : f32 to vector<8x128xf32>
    %114 = arith.addf %112, %113 : vector<8x128xf32>
    %115 = math.rsqrt %114 : vector<8x128xf32>
    %116 = arith.addf %99, %115 : vector<8x128xf32>
    %117 = arith.mulf %115, %105 : vector<8x128xf32>
    %118 = arith.addf %100, %117 : vector<8x128xf32>
    %119 = arith.divf %118, %116 : vector<8x128xf32>
    %cst_48 = arith.constant dense<0.000000e+00> : vector<1x128xf32>
    %120 = tpu.matmul %30, %119, %cst_48 {dimension_numbers = #tpu.dot_dimension_numbers<[1], [0], [0], [1], [0, 0, 1, 1], [], []>} : vector<1x8xf32>, vector<8x128xf32>, vector<1x128xf32> -> vector<1x128xf32>
    %cst_49 = arith.constant dense<0.000000e+00> : vector<1x2xf32>
    %121 = tpu.matmul %120, %28, %cst_49 {dimension_numbers = #tpu.dot_dimension_numbers<[1], [0], [0], [1], [0, 0, 1, 1], [], []>} : vector<1x128xf32>, vector<128x2xf32>, vector<1x2xf32> -> vector<1x2xf32>
    %cst_50 = arith.constant 0.001953125 : f32
    %122 = vector.broadcast %cst_50 : f32 to vector<1x2xf32>
    %123 = arith.mulf %121, %122 : vector<1x2xf32>
    %cst_51 = arith.constant dense<0.000000e+00> : vector<1x128xf32>
    %124 = tpu.matmul %123, %29, %cst_51 {dimension_numbers = #tpu.dot_dimension_numbers<[1], [0], [0], [1], [0, 0, 1, 1], [], []>} : vector<1x2xf32>, vector<2x128xf32>, vector<1x128xf32> -> vector<1x128xf32>
    %125 = vector.broadcast %124 : vector<1x128xf32> to vector<8x128xf32>
    %126 = arith.subf %119, %125 : vector<8x128xf32>
    %127 = arith.mulf %126, %126 : vector<8x128xf32>
    %cst_52 = arith.constant dense<0.000000e+00> : vector<1x128xf32>
    %128 = tpu.matmul %30, %127, %cst_52 {dimension_numbers = #tpu.dot_dimension_numbers<[1], [0], [0], [1], [0, 0, 1, 1], [], []>} : vector<1x8xf32>, vector<8x128xf32>, vector<1x128xf32> -> vector<1x128xf32>
    %cst_53 = arith.constant dense<0.000000e+00> : vector<1x2xf32>
    %129 = tpu.matmul %128, %28, %cst_53 {dimension_numbers = #tpu.dot_dimension_numbers<[1], [0], [0], [1], [0, 0, 1, 1], [], []>} : vector<1x128xf32>, vector<128x2xf32>, vector<1x2xf32> -> vector<1x2xf32>
    %cst_54 = arith.constant 0.001953125 : f32
    %130 = vector.broadcast %cst_54 : f32 to vector<1x2xf32>
    %131 = arith.mulf %129, %130 : vector<1x2xf32>
    %cst_55 = arith.constant 9.99999974E-6 : f32
    %132 = vector.broadcast %cst_55 : f32 to vector<1x2xf32>
    %133 = arith.addf %131, %132 : vector<1x2xf32>
    %134 = math.rsqrt %133 : vector<1x2xf32>
    %cst_56 = arith.constant dense<0.000000e+00> : vector<1x128xf32>
    %135 = tpu.matmul %134, %29, %cst_56 {dimension_numbers = #tpu.dot_dimension_numbers<[1], [0], [0], [1], [0, 0, 1, 1], [], []>} : vector<1x2xf32>, vector<2x128xf32>, vector<1x128xf32> -> vector<1x128xf32>
    %136 = vector.broadcast %135 : vector<1x128xf32> to vector<8x128xf32>
    %137 = arith.mulf %126, %136 : vector<8x128xf32>
    %c8_57 = arith.constant 8 : index
    %c0_58 = arith.constant 0 : index
    %138 = vector.load %arg7[%c8_57, %c0_58] : memref<24x128xf32, #tpu.memory_space<vmem>>, vector<8x128xf32>
    tpu.vector_store %arg7[%c8_57, %c0_58], %137 {strides = array<i32>} : memref<24x128xf32, #tpu.memory_space<vmem>>, vector<8x128xf32>,
    %c0_59 = arith.constant 0 : index
    %c0_60 = arith.constant 0 : index
    %139 = vector.load %arg7[%c0_59, %c0_60] : memref<24x128xf32, #tpu.memory_space<vmem>>, vector<16x128xf32>
    %c128 = arith.constant 128 : index
    %c0_61 = arith.constant 0 : index
    %140 = vector.load %arg2[%c128, %c0_61] : memref<328x1152xf32, #tpu.memory_space<vmem>>, vector<128x288xf32>
    %cst_62 = arith.constant dense<0.000000e+00> : vector<16x288xf32>
    %141 = tpu.matmul %139, %140, %cst_62 {dimension_numbers = #tpu.dot_dimension_numbers<[1], [0], [0], [1], [0, 0, 1, 1], [], []>} : vector<16x128xf32>, vector<128x288xf32>, vector<16x288xf32> -> vector<16x288xf32>
    %142 = vector.extract_strided_slice %141 {offsets = [0, 0], sizes = [16, 32], strides = [1, 1]} : vector<16x288xf32> to vector<16x32xf32>
    %c0_63 = arith.constant 0 : index
    %c0_64 = arith.constant 0 : index
    %143 = vector.load %arg6[%c0_63, %c0_64] : memref<144x128xf32, #tpu.memory_space<vmem>>, vector<16x32xf32>
    tpu.vector_store %arg6[%c0_63, %c0_64], %142 {strides = array<i32>} : memref<144x128xf32, #tpu.memory_space<vmem>>, vector<16x32xf32>,
    %144 = vector.extract_strided_slice %141 {offsets = [0, 32], sizes = [16, 32], strides = [1, 1]} : vector<16x288xf32> to vector<16x32xf32>
    %c16_65 = arith.constant 16 : index
    %c0_66 = arith.constant 0 : index
    %145 = vector.load %arg6[%c16_65, %c0_66] : memref<144x128xf32, #tpu.memory_space<vmem>>, vector<16x32xf32>
    tpu.vector_store %arg6[%c16_65, %c0_66], %144 {strides = array<i32>} : memref<144x128xf32, #tpu.memory_space<vmem>>, vector<16x32xf32>,
    %146 = vector.extract_strided_slice %141 {offsets = [0, 64], sizes = [16, 32], strides = [1, 1]} : vector<16x288xf32> to vector<16x32xf32>
    %c32_67 = arith.constant 32 : index
    %c0_68 = arith.constant 0 : index
    %147 = vector.load %arg6[%c32_67, %c0_68] : memref<144x128xf32, #tpu.memory_space<vmem>>, vector<16x32xf32>
    tpu.vector_store %arg6[%c32_67, %c0_68], %146 {strides = array<i32>} : memref<144x128xf32, #tpu.memory_space<vmem>>, vector<16x32xf32>,
    %148 = vector.extract_strided_slice %141 {offsets = [0, 96], sizes = [16, 32], strides = [1, 1]} : vector<16x288xf32> to vector<16x32xf32>
    %c48_69 = arith.constant 48 : index
    %c0_70 = arith.constant 0 : index
    %149 = vector.load %arg6[%c48_69, %c0_70] : memref<144x128xf32, #tpu.memory_space<vmem>>, vector<16x32xf32>
    tpu.vector_store %arg6[%c48_69, %c0_70], %148 {strides = array<i32>} : memref<144x128xf32, #tpu.memory_space<vmem>>, vector<16x32xf32>,
    %150 = vector.extract_strided_slice %141 {offsets = [0, 128], sizes = [16, 32], strides = [1, 1]} : vector<16x288xf32> to vector<16x32xf32>
    %c64_71 = arith.constant 64 : index
    %c0_72 = arith.constant 0 : index
    %151 = vector.load %arg6[%c64_71, %c0_72] : memref<144x128xf32, #tpu.memory_space<vmem>>, vector<16x32xf32>
    tpu.vector_store %arg6[%c64_71, %c0_72], %150 {strides = array<i32>} : memref<144x128xf32, #tpu.memory_space<vmem>>, vector<16x32xf32>,
    %152 = vector.extract_strided_slice %141 {offsets = [0, 160], sizes = [16, 32], strides = [1, 1]} : vector<16x288xf32> to vector<16x32xf32>
    %c80 = arith.constant 80 : index
    %c0_73 = arith.constant 0 : index
    %153 = vector.load %arg6[%c80, %c0_73] : memref<144x128xf32, #tpu.memory_space<vmem>>, vector<16x32xf32>
    tpu.vector_store %arg6[%c80, %c0_73], %152 {strides = array<i32>} : memref<144x128xf32, #tpu.memory_space<vmem>>, vector<16x32xf32>,
    %154 = vector.extract_strided_slice %141 {offsets = [0, 192], sizes = [16, 32], strides = [1, 1]} : vector<16x288xf32> to vector<16x32xf32>
    %c96 = arith.constant 96 : index
    %c0_74 = arith.constant 0 : index
    %155 = vector.load %arg6[%c96, %c0_74] : memref<144x128xf32, #tpu.memory_space<vmem>>, vector<16x32xf32>
    tpu.vector_store %arg6[%c96, %c0_74], %154 {strides = array<i32>} : memref<144x128xf32, #tpu.memory_space<vmem>>, vector<16x32xf32>,
    %156 = vector.extract_strided_slice %141 {offsets = [0, 224], sizes = [16, 32], strides = [1, 1]} : vector<16x288xf32> to vector<16x32xf32>
    %c112 = arith.constant 112 : index
    %c0_75 = arith.constant 0 : index
    %157 = vector.load %arg6[%c112, %c0_75] : memref<144x128xf32, #tpu.memory_space<vmem>>, vector<16x32xf32>
    tpu.vector_store %arg6[%c112, %c0_75], %156 {strides = array<i32>} : memref<144x128xf32, #tpu.memory_space<vmem>>, vector<16x32xf32>,
    %158 = vector.extract_strided_slice %141 {offsets = [0, 256], sizes = [16, 32], strides = [1, 1]} : vector<16x288xf32> to vector<16x32xf32>
    %c128_76 = arith.constant 128 : index
    %c0_77 = arith.constant 0 : index
    %159 = vector.load %arg6[%c128_76, %c0_77] : memref<144x128xf32, #tpu.memory_space<vmem>>, vector<16x32xf32>
    tpu.vector_store %arg6[%c128_76, %c0_77], %158 {strides = array<i32>} : memref<144x128xf32, #tpu.memory_space<vmem>>, vector<16x32xf32>,
    %c64_78 = arith.constant 64 : index
    %c0_79 = arith.constant 0 : index
    %160 = vector.load %arg3[%c64_78, %c0_79] : memref<352x144xf32, #tpu.memory_space<vmem>>, vector<64x144xf32>
    %c200 = arith.constant 200 : index
    %c0_80 = arith.constant 0 : index
    %161 = vector.load %arg4[%c200, %c0_80] : memref<640x128xf32, #tpu.memory_space<vmem>>, vector<64x1xf32>
    %c0_81 = arith.constant 0 : index
    %c0_82 = arith.constant 0 : index
    %162 = vector.load %arg6[%c0_81, %c0_82] : memref<144x128xf32, #tpu.memory_space<vmem>>, vector<144x32xf32>
    %cst_83 = arith.constant dense<0.000000e+00> : vector<64x32xf32>
    %163 = tpu.matmul %160, %162, %cst_83 {dimension_numbers = #tpu.dot_dimension_numbers<[1], [0], [0], [1], [0, 0, 1, 1], [], []>} : vector<64x144xf32>, vector<144x32xf32>, vector<64x32xf32> -> vector<64x32xf32>
    %164 = vector.broadcast %161 : vector<64x1xf32> to vector<64x32xf32>
    %165 = arith.addf %163, %164 : vector<64x32xf32>
    %c264 = arith.constant 264 : index
    %c0_84 = arith.constant 0 : index
    %166 = vector.load %arg4[%c264, %c0_84] : memref<640x128xf32, #tpu.memory_space<vmem>>, vector<32x2xf32>
    %c296 = arith.constant 296 : index
    %c0_85 = arith.constant 0 : index
    %167 = vector.load %arg4[%c296, %c0_85] : memref<640x128xf32, #tpu.memory_space<vmem>>, vector<2x32xf32>
    %cst_86 = arith.constant 1.000000e+00 : f32
    %168 = vector.broadcast %cst_86 : f32 to vector<1x8xf32>
    %169 = vector.extract_strided_slice %165 {offsets = [0, 0], sizes = [8, 32], strides = [1, 1]} : vector<64x32xf32> to vector<8x32xf32>
    %170 = vector.extract_strided_slice %165 {offsets = [16, 0], sizes = [8, 32], strides = [1, 1]} : vector<64x32xf32> to vector<8x32xf32>
    %171 = arith.addf %169, %170 : vector<8x32xf32>
    %cst_87 = arith.constant 5.000000e-01 : f32
    %172 = vector.broadcast %cst_87 : f32 to vector<8x32xf32>
    %173 = arith.mulf %171, %172 : vector<8x32xf32>
    %174 = arith.subf %169, %173 : vector<8x32xf32>
    %175 = arith.mulf %174, %174 : vector<8x32xf32>
    %176 = arith.subf %170, %173 : vector<8x32xf32>
    %177 = arith.mulf %176, %176 : vector<8x32xf32>
    %178 = arith.addf %175, %177 : vector<8x32xf32>
    %cst_88 = arith.constant 5.000000e-01 : f32
    %179 = vector.broadcast %cst_88 : f32 to vector<8x32xf32>
    %180 = arith.mulf %178, %179 : vector<8x32xf32>
    %cst_89 = arith.constant 1.000000e-30 : f32
    %181 = vector.broadcast %cst_89 : f32 to vector<8x32xf32>
    %182 = arith.addf %180, %181 : vector<8x32xf32>
    %183 = math.rsqrt %182 : vector<8x32xf32>
    %184 = arith.mulf %183, %173 : vector<8x32xf32>
    %185 = vector.extract_strided_slice %165 {offsets = [32, 0], sizes = [8, 32], strides = [1, 1]} : vector<64x32xf32> to vector<8x32xf32>
    %186 = vector.extract_strided_slice %165 {offsets = [48, 0], sizes = [8, 32], strides = [1, 1]} : vector<64x32xf32> to vector<8x32xf32>
    %187 = arith.addf %185, %186 : vector<8x32xf32>
    %cst_90 = arith.constant 5.000000e-01 : f32
    %188 = vector.broadcast %cst_90 : f32 to vector<8x32xf32>
    %189 = arith.mulf %187, %188 : vector<8x32xf32>
    %190 = arith.subf %185, %189 : vector<8x32xf32>
    %191 = arith.mulf %190, %190 : vector<8x32xf32>
    %192 = arith.subf %186, %189 : vector<8x32xf32>
    %193 = arith.mulf %192, %192 : vector<8x32xf32>
    %194 = arith.addf %191, %193 : vector<8x32xf32>
    %cst_91 = arith.constant 5.000000e-01 : f32
    %195 = vector.broadcast %cst_91 : f32 to vector<8x32xf32>
    %196 = arith.mulf %194, %195 : vector<8x32xf32>
    %cst_92 = arith.constant 1.000000e-30 : f32
    %197 = vector.broadcast %cst_92 : f32 to vector<8x32xf32>
    %198 = arith.addf %196, %197 : vector<8x32xf32>
    %199 = math.rsqrt %198 : vector<8x32xf32>
    %200 = arith.addf %183, %199 : vector<8x32xf32>
    %201 = arith.mulf %199, %189 : vector<8x32xf32>
    %202 = arith.addf %184, %201 : vector<8x32xf32>
    %203 = arith.divf %202, %200 : vector<8x32xf32>
    %cst_93 = arith.constant dense<0.000000e+00> : vector<1x32xf32>
    %204 = tpu.matmul %168, %203, %cst_93 {dimension_numbers = #tpu.dot_dimension_numbers<[1], [0], [0], [1], [0, 0, 1, 1], [], []>} : vector<1x8xf32>, vector<8x32xf32>, vector<1x32xf32> -> vector<1x32xf32>
    %cst_94 = arith.constant dense<0.000000e+00> : vector<1x2xf32>
    %205 = tpu.matmul %204, %166, %cst_94 {dimension_numbers = #tpu.dot_dimension_numbers<[1], [0], [0], [1], [0, 0, 1, 1], [], []>} : vector<1x32xf32>, vector<32x2xf32>, vector<1x2xf32> -> vector<1x2xf32>
    %cst_95 = arith.constant 7.812500e-03 : f32
    %206 = vector.broadcast %cst_95 : f32 to vector<1x2xf32>
    %207 = arith.mulf %205, %206 : vector<1x2xf32>
    %cst_96 = arith.constant dense<0.000000e+00> : vector<1x32xf32>
    %208 = tpu.matmul %207, %167, %cst_96 {dimension_numbers = #tpu.dot_dimension_numbers<[1], [0], [0], [1], [0, 0, 1, 1], [], []>} : vector<1x2xf32>, vector<2x32xf32>, vector<1x32xf32> -> vector<1x32xf32>
    %209 = vector.broadcast %208 : vector<1x32xf32> to vector<8x32xf32>
    %210 = arith.subf %203, %209 : vector<8x32xf32>
    %211 = arith.mulf %210, %210 : vector<8x32xf32>
    %cst_97 = arith.constant dense<0.000000e+00> : vector<1x32xf32>
    %212 = tpu.matmul %168, %211, %cst_97 {dimension_numbers = #tpu.dot_dimension_numbers<[1], [0], [0], [1], [0, 0, 1, 1], [], []>} : vector<1x8xf32>, vector<8x32xf32>, vector<1x32xf32> -> vector<1x32xf32>
    %cst_98 = arith.constant dense<0.000000e+00> : vector<1x2xf32>
    %213 = tpu.matmul %212, %166, %cst_98 {dimension_numbers = #tpu.dot_dimension_numbers<[1], [0], [0], [1], [0, 0, 1, 1], [], []>} : vector<1x32xf32>, vector<32x2xf32>, vector<1x2xf32> -> vector<1x2xf32>
    %cst_99 = arith.constant 7.812500e-03 : f32
    %214 = vector.broadcast %cst_99 : f32 to vector<1x2xf32>
    %215 = arith.mulf %213, %214 : vector<1x2xf32>
    %cst_100 = arith.constant 9.99999974E-6 : f32
    %216 = vector.broadcast %cst_100 : f32 to vector<1x2xf32>
    %217 = arith.addf %215, %216 : vector<1x2xf32>
    %218 = math.rsqrt %217 : vector<1x2xf32>
    %cst_101 = arith.constant dense<0.000000e+00> : vector<1x32xf32>
    %219 = tpu.matmul %218, %167, %cst_101 {dimension_numbers = #tpu.dot_dimension_numbers<[1], [0], [0], [1], [0, 0, 1, 1], [], []>} : vector<1x2xf32>, vector<2x32xf32>, vector<1x32xf32> -> vector<1x32xf32>
    %220 = vector.broadcast %219 : vector<1x32xf32> to vector<8x32xf32>
    %221 = arith.mulf %210, %220 : vector<8x32xf32>
    %c0_102 = arith.constant 0 : index
    %c0_103 = arith.constant 0 : index
    %222 = vector.load %arg7[%c0_102, %c0_103] : memref<24x128xf32, #tpu.memory_space<vmem>>, vector<8x32xf32>
    tpu.vector_store %arg7[%c0_102, %c0_103], %221 {strides = array<i32>} : memref<24x128xf32, #tpu.memory_space<vmem>>, vector<8x32xf32>,
    %223 = vector.extract_strided_slice %165 {offsets = [8, 0], sizes = [8, 32], strides = [1, 1]} : vector<64x32xf32> to vector<8x32xf32>
    %224 = vector.extract_strided_slice %165 {offsets = [24, 0], sizes = [8, 32], strides = [1, 1]} : vector<64x32xf32> to vector<8x32xf32>
    %225 = arith.addf %223, %224 : vector<8x32xf32>
    %cst_104 = arith.constant 5.000000e-01 : f32
    %226 = vector.broadcast %cst_104 : f32 to vector<8x32xf32>
    %227 = arith.mulf %225, %226 : vector<8x32xf32>
    %228 = arith.subf %223, %227 : vector<8x32xf32>
    %229 = arith.mulf %228, %228 : vector<8x32xf32>
    %230 = arith.subf %224, %227 : vector<8x32xf32>
    %231 = arith.mulf %230, %230 : vector<8x32xf32>
    %232 = arith.addf %229, %231 : vector<8x32xf32>
    %cst_105 = arith.constant 5.000000e-01 : f32
    %233 = vector.broadcast %cst_105 : f32 to vector<8x32xf32>
    %234 = arith.mulf %232, %233 : vector<8x32xf32>
    %cst_106 = arith.constant 1.000000e-30 : f32
    %235 = vector.broadcast %cst_106 : f32 to vector<8x32xf32>
    %236 = arith.addf %234, %235 : vector<8x32xf32>
    %237 = math.rsqrt %236 : vector<8x32xf32>
    %238 = arith.mulf %237, %227 : vector<8x32xf32>
    %239 = vector.extract_strided_slice %165 {offsets = [40, 0], sizes = [8, 32], strides = [1, 1]} : vector<64x32xf32> to vector<8x32xf32>
    %240 = vector.extract_strided_slice %165 {offsets = [56, 0], sizes = [8, 32], strides = [1, 1]} : vector<64x32xf32> to vector<8x32xf32>
    %241 = arith.addf %239, %240 : vector<8x32xf32>
    %cst_107 = arith.constant 5.000000e-01 : f32
    %242 = vector.broadcast %cst_107 : f32 to vector<8x32xf32>
    %243 = arith.mulf %241, %242 : vector<8x32xf32>
    %244 = arith.subf %239, %243 : vector<8x32xf32>
    %245 = arith.mulf %244, %244 : vector<8x32xf32>
    %246 = arith.subf %240, %243 : vector<8x32xf32>
    %247 = arith.mulf %246, %246 : vector<8x32xf32>
    %248 = arith.addf %245, %247 : vector<8x32xf32>
    %cst_108 = arith.constant 5.000000e-01 : f32
    %249 = vector.broadcast %cst_108 : f32 to vector<8x32xf32>
    %250 = arith.mulf %248, %249 : vector<8x32xf32>
    %cst_109 = arith.constant 1.000000e-30 : f32
    %251 = vector.broadcast %cst_109 : f32 to vector<8x32xf32>
    %252 = arith.addf %250, %251 : vector<8x32xf32>
    %253 = math.rsqrt %252 : vector<8x32xf32>
    %254 = arith.addf %237, %253 : vector<8x32xf32>
    %255 = arith.mulf %253, %243 : vector<8x32xf32>
    %256 = arith.addf %238, %255 : vector<8x32xf32>
    %257 = arith.divf %256, %254 : vector<8x32xf32>
    %cst_110 = arith.constant dense<0.000000e+00> : vector<1x32xf32>
    %258 = tpu.matmul %168, %257, %cst_110 {dimension_numbers = #tpu.dot_dimension_numbers<[1], [0], [0], [1], [0, 0, 1, 1], [], []>} : vector<1x8xf32>, vector<8x32xf32>, vector<1x32xf32> -> vector<1x32xf32>
    %cst_111 = arith.constant dense<0.000000e+00> : vector<1x2xf32>
    %259 = tpu.matmul %258, %166, %cst_111 {dimension_numbers = #tpu.dot_dimension_numbers<[1], [0], [0], [1], [0, 0, 1, 1], [], []>} : vector<1x32xf32>, vector<32x2xf32>, vector<1x2xf32> -> vector<1x2xf32>
    %cst_112 = arith.constant 7.812500e-03 : f32
    %260 = vector.broadcast %cst_112 : f32 to vector<1x2xf32>
    %261 = arith.mulf %259, %260 : vector<1x2xf32>
    %cst_113 = arith.constant dense<0.000000e+00> : vector<1x32xf32>
    %262 = tpu.matmul %261, %167, %cst_113 {dimension_numbers = #tpu.dot_dimension_numbers<[1], [0], [0], [1], [0, 0, 1, 1], [], []>} : vector<1x2xf32>, vector<2x32xf32>, vector<1x32xf32> -> vector<1x32xf32>
    %263 = vector.broadcast %262 : vector<1x32xf32> to vector<8x32xf32>
    %264 = arith.subf %257, %263 : vector<8x32xf32>
    %265 = arith.mulf %264, %264 : vector<8x32xf32>
    %cst_114 = arith.constant dense<0.000000e+00> : vector<1x32xf32>
    %266 = tpu.matmul %168, %265, %cst_114 {dimension_numbers = #tpu.dot_dimension_numbers<[1], [0], [0], [1], [0, 0, 1, 1], [], []>} : vector<1x8xf32>, vector<8x32xf32>, vector<1x32xf32> -> vector<1x32xf32>
    %cst_115 = arith.constant dense<0.000000e+00> : vector<1x2xf32>
    %267 = tpu.matmul %266, %166, %cst_115 {dimension_numbers = #tpu.dot_dimension_numbers<[1], [0], [0], [1], [0, 0, 1, 1], [], []>} : vector<1x32xf32>, vector<32x2xf32>, vector<1x2xf32> -> vector<1x2xf32>
    %cst_116 = arith.constant 7.812500e-03 : f32
    %268 = vector.broadcast %cst_116 : f32 to vector<1x2xf32>
    %269 = arith.mulf %267, %268 : vector<1x2xf32>
    %cst_117 = arith.constant 9.99999974E-6 : f32
    %270 = vector.broadcast %cst_117 : f32 to vector<1x2xf32>
    %271 = arith.addf %269, %270 : vector<1x2xf32>
    %272 = math.rsqrt %271 : vector<1x2xf32>
    %cst_118 = arith.constant dense<0.000000e+00> : vector<1x32xf32>
    %273 = tpu.matmul %272, %167, %cst_118 {dimension_numbers = #tpu.dot_dimension_numbers<[1], [0], [0], [1], [0, 0, 1, 1], [], []>} : vector<1x2xf32>, vector<2x32xf32>, vector<1x32xf32> -> vector<1x32xf32>
    %274 = vector.broadcast %273 : vector<1x32xf32> to vector<8x32xf32>
    %275 = arith.mulf %264, %274 : vector<8x32xf32>
    %c8_119 = arith.constant 8 : index
    %c0_120 = arith.constant 0 : index
    %276 = vector.load %arg7[%c8_119, %c0_120] : memref<24x128xf32, #tpu.memory_space<vmem>>, vector<8x32xf32>
    tpu.vector_store %arg7[%c8_119, %c0_120], %275 {strides = array<i32>} : memref<24x128xf32, #tpu.memory_space<vmem>>, vector<8x32xf32>,
    %c0_121 = arith.constant 0 : index
    %c0_122 = arith.constant 0 : index
    %277 = vector.load %arg7[%c0_121, %c0_122] : memref<24x128xf32, #tpu.memory_space<vmem>>, vector<16x32xf32>
    %c256 = arith.constant 256 : index
    %c0_123 = arith.constant 0 : index
    %278 = vector.load %arg2[%c256, %c0_123] : memref<328x1152xf32, #tpu.memory_space<vmem>>, vector<32x288xf32>
    %cst_124 = arith.constant dense<0.000000e+00> : vector<16x288xf32>
    %279 = tpu.matmul %277, %278, %cst_124 {dimension_numbers = #tpu.dot_dimension_numbers<[1], [0], [0], [1], [0, 0, 1, 1], [], []>} : vector<16x32xf32>, vector<32x288xf32>, vector<16x288xf32> -> vector<16x288xf32>
    %280 = vector.extract_strided_slice %279 {offsets = [0, 0], sizes = [16, 32], strides = [1, 1]} : vector<16x288xf32> to vector<16x32xf32>
    %c0_125 = arith.constant 0 : index
    %c0_126 = arith.constant 0 : index
    %281 = vector.load %arg6[%c0_125, %c0_126] : memref<144x128xf32, #tpu.memory_space<vmem>>, vector<16x32xf32>
    tpu.vector_store %arg6[%c0_125, %c0_126], %280 {strides = array<i32>} : memref<144x128xf32, #tpu.memory_space<vmem>>, vector<16x32xf32>,
    %282 = vector.extract_strided_slice %279 {offsets = [0, 32], sizes = [16, 32], strides = [1, 1]} : vector<16x288xf32> to vector<16x32xf32>
    %c16_127 = arith.constant 16 : index
    %c0_128 = arith.constant 0 : index
    %283 = vector.load %arg6[%c16_127, %c0_128] : memref<144x128xf32, #tpu.memory_space<vmem>>, vector<16x32xf32>
    tpu.vector_store %arg6[%c16_127, %c0_128], %282 {strides = array<i32>} : memref<144x128xf32, #tpu.memory_space<vmem>>, vector<16x32xf32>,
    %284 = vector.extract_strided_slice %279 {offsets = [0, 64], sizes = [16, 32], strides = [1, 1]} : vector<16x288xf32> to vector<16x32xf32>
    %c32_129 = arith.constant 32 : index
    %c0_130 = arith.constant 0 : index
    %285 = vector.load %arg6[%c32_129, %c0_130] : memref<144x128xf32, #tpu.memory_space<vmem>>, vector<16x32xf32>
    tpu.vector_store %arg6[%c32_129, %c0_130], %284 {strides = array<i32>} : memref<144x128xf32, #tpu.memory_space<vmem>>, vector<16x32xf32>,
    %286 = vector.extract_strided_slice %279 {offsets = [0, 96], sizes = [16, 32], strides = [1, 1]} : vector<16x288xf32> to vector<16x32xf32>
    %c48_131 = arith.constant 48 : index
    %c0_132 = arith.constant 0 : index
    %287 = vector.load %arg6[%c48_131, %c0_132] : memref<144x128xf32, #tpu.memory_space<vmem>>, vector<16x32xf32>
    tpu.vector_store %arg6[%c48_131, %c0_132], %286 {strides = array<i32>} : memref<144x128xf32, #tpu.memory_space<vmem>>, vector<16x32xf32>,
    %288 = vector.extract_strided_slice %279 {offsets = [0, 128], sizes = [16, 32], strides = [1, 1]} : vector<16x288xf32> to vector<16x32xf32>
    %c64_133 = arith.constant 64 : index
    %c0_134 = arith.constant 0 : index
    %289 = vector.load %arg6[%c64_133, %c0_134] : memref<144x128xf32, #tpu.memory_space<vmem>>, vector<16x32xf32>
    tpu.vector_store %arg6[%c64_133, %c0_134], %288 {strides = array<i32>} : memref<144x128xf32, #tpu.memory_space<vmem>>, vector<16x32xf32>,
    %290 = vector.extract_strided_slice %279 {offsets = [0, 160], sizes = [16, 32], strides = [1, 1]} : vector<16x288xf32> to vector<16x32xf32>
    %c80_135 = arith.constant 80 : index
    %c0_136 = arith.constant 0 : index
    %291 = vector.load %arg6[%c80_135, %c0_136] : memref<144x128xf32, #tpu.memory_space<vmem>>, vector<16x32xf32>
    tpu.vector_store %arg6[%c80_135, %c0_136], %290 {strides = array<i32>} : memref<144x128xf32, #tpu.memory_space<vmem>>, vector<16x32xf32>,
    %292 = vector.extract_strided_slice %279 {offsets = [0, 192], sizes = [16, 32], strides = [1, 1]} : vector<16x288xf32> to vector<16x32xf32>
    %c96_137 = arith.constant 96 : index
    %c0_138 = arith.constant 0 : index
    %293 = vector.load %arg6[%c96_137, %c0_138] : memref<144x128xf32, #tpu.memory_space<vmem>>, vector<16x32xf32>
    tpu.vector_store %arg6[%c96_137, %c0_138], %292 {strides = array<i32>} : memref<144x128xf32, #tpu.memory_space<vmem>>, vector<16x32xf32>,
    %294 = vector.extract_strided_slice %279 {offsets = [0, 224], sizes = [16, 32], strides = [1, 1]} : vector<16x288xf32> to vector<16x32xf32>
    %c112_139 = arith.constant 112 : index
    %c0_140 = arith.constant 0 : index
    %295 = vector.load %arg6[%c112_139, %c0_140] : memref<144x128xf32, #tpu.memory_space<vmem>>, vector<16x32xf32>
    tpu.vector_store %arg6[%c112_139, %c0_140], %294 {strides = array<i32>} : memref<144x128xf32, #tpu.memory_space<vmem>>, vector<16x32xf32>,
    %296 = vector.extract_strided_slice %279 {offsets = [0, 256], sizes = [16, 32], strides = [1, 1]} : vector<16x288xf32> to vector<16x32xf32>
    %c128_141 = arith.constant 128 : index
    %c0_142 = arith.constant 0 : index
    %297 = vector.load %arg6[%c128_141, %c0_142] : memref<144x128xf32, #tpu.memory_space<vmem>>, vector<16x32xf32>
    tpu.vector_store %arg6[%c128_141, %c0_142], %296 {strides = array<i32>} : memref<144x128xf32, #tpu.memory_space<vmem>>, vector<16x32xf32>,
    %c128_143 = arith.constant 128 : index
    %c0_144 = arith.constant 0 : index
    %298 = vector.load %arg3[%c128_143, %c0_144] : memref<352x144xf32, #tpu.memory_space<vmem>>, vector<64x144xf32>
    %c304 = arith.constant 304 : index
    %c0_145 = arith.constant 0 : index
    %299 = vector.load %arg4[%c304, %c0_145] : memref<640x128xf32, #tpu.memory_space<vmem>>, vector<64x1xf32>
    %c0_146 = arith.constant 0 : index
    %c0_147 = arith.constant 0 : index
    %300 = vector.load %arg6[%c0_146, %c0_147] : memref<144x128xf32, #tpu.memory_space<vmem>>, vector<144x32xf32>
    %cst_148 = arith.constant dense<0.000000e+00> : vector<64x32xf32>
    %301 = tpu.matmul %298, %300, %cst_148 {dimension_numbers = #tpu.dot_dimension_numbers<[1], [0], [0], [1], [0, 0, 1, 1], [], []>} : vector<64x144xf32>, vector<144x32xf32>, vector<64x32xf32> -> vector<64x32xf32>
    %302 = vector.broadcast %299 : vector<64x1xf32> to vector<64x32xf32>
    %303 = arith.addf %301, %302 : vector<64x32xf32>
    %c368 = arith.constant 368 : index
    %c0_149 = arith.constant 0 : index
    %304 = vector.load %arg4[%c368, %c0_149] : memref<640x128xf32, #tpu.memory_space<vmem>>, vector<32x2xf32>
    %c400 = arith.constant 400 : index
    %c0_150 = arith.constant 0 : index
    %305 = vector.load %arg4[%c400, %c0_150] : memref<640x128xf32, #tpu.memory_space<vmem>>, vector<2x32xf32>
    %cst_151 = arith.constant 1.000000e+00 : f32
    %306 = vector.broadcast %cst_151 : f32 to vector<1x8xf32>
    %307 = vector.extract_strided_slice %303 {offsets = [0, 0], sizes = [8, 32], strides = [1, 1]} : vector<64x32xf32> to vector<8x32xf32>
    %308 = vector.extract_strided_slice %303 {offsets = [16, 0], sizes = [8, 32], strides = [1, 1]} : vector<64x32xf32> to vector<8x32xf32>
    %309 = arith.addf %307, %308 : vector<8x32xf32>
    %cst_152 = arith.constant 5.000000e-01 : f32
    %310 = vector.broadcast %cst_152 : f32 to vector<8x32xf32>
    %311 = arith.mulf %309, %310 : vector<8x32xf32>
    %312 = arith.subf %307, %311 : vector<8x32xf32>
    %313 = arith.mulf %312, %312 : vector<8x32xf32>
    %314 = arith.subf %308, %311 : vector<8x32xf32>
    %315 = arith.mulf %314, %314 : vector<8x32xf32>
    %316 = arith.addf %313, %315 : vector<8x32xf32>
    %cst_153 = arith.constant 5.000000e-01 : f32
    %317 = vector.broadcast %cst_153 : f32 to vector<8x32xf32>
    %318 = arith.mulf %316, %317 : vector<8x32xf32>
    %cst_154 = arith.constant 1.000000e-30 : f32
    %319 = vector.broadcast %cst_154 : f32 to vector<8x32xf32>
    %320 = arith.addf %318, %319 : vector<8x32xf32>
    %321 = math.rsqrt %320 : vector<8x32xf32>
    %322 = arith.mulf %321, %311 : vector<8x32xf32>
    %323 = vector.extract_strided_slice %303 {offsets = [32, 0], sizes = [8, 32], strides = [1, 1]} : vector<64x32xf32> to vector<8x32xf32>
    %324 = vector.extract_strided_slice %303 {offsets = [48, 0], sizes = [8, 32], strides = [1, 1]} : vector<64x32xf32> to vector<8x32xf32>
    %325 = arith.addf %323, %324 : vector<8x32xf32>
    %cst_155 = arith.constant 5.000000e-01 : f32
    %326 = vector.broadcast %cst_155 : f32 to vector<8x32xf32>
    %327 = arith.mulf %325, %326 : vector<8x32xf32>
    %328 = arith.subf %323, %327 : vector<8x32xf32>
    %329 = arith.mulf %328, %328 : vector<8x32xf32>
    %330 = arith.subf %324, %327 : vector<8x32xf32>
    %331 = arith.mulf %330, %330 : vector<8x32xf32>
    %332 = arith.addf %329, %331 : vector<8x32xf32>
    %cst_156 = arith.constant 5.000000e-01 : f32
    %333 = vector.broadcast %cst_156 : f32 to vector<8x32xf32>
    %334 = arith.mulf %332, %333 : vector<8x32xf32>
    %cst_157 = arith.constant 1.000000e-30 : f32
    %335 = vector.broadcast %cst_157 : f32 to vector<8x32xf32>
    %336 = arith.addf %334, %335 : vector<8x32xf32>
    %337 = math.rsqrt %336 : vector<8x32xf32>
    %338 = arith.addf %321, %337 : vector<8x32xf32>
    %339 = arith.mulf %337, %327 : vector<8x32xf32>
    %340 = arith.addf %322, %339 : vector<8x32xf32>
    %341 = arith.divf %340, %338 : vector<8x32xf32>
    %cst_158 = arith.constant dense<0.000000e+00> : vector<1x32xf32>
    %342 = tpu.matmul %306, %341, %cst_158 {dimension_numbers = #tpu.dot_dimension_numbers<[1], [0], [0], [1], [0, 0, 1, 1], [], []>} : vector<1x8xf32>, vector<8x32xf32>, vector<1x32xf32> -> vector<1x32xf32>
    %cst_159 = arith.constant dense<0.000000e+00> : vector<1x2xf32>
    %343 = tpu.matmul %342, %304, %cst_159 {dimension_numbers = #tpu.dot_dimension_numbers<[1], [0], [0], [1], [0, 0, 1, 1], [], []>} : vector<1x32xf32>, vector<32x2xf32>, vector<1x2xf32> -> vector<1x2xf32>
    %cst_160 = arith.constant 7.812500e-03 : f32
    %344 = vector.broadcast %cst_160 : f32 to vector<1x2xf32>
    %345 = arith.mulf %343, %344 : vector<1x2xf32>
    %cst_161 = arith.constant dense<0.000000e+00> : vector<1x32xf32>
    %346 = tpu.matmul %345, %305, %cst_161 {dimension_numbers = #tpu.dot_dimension_numbers<[1], [0], [0], [1], [0, 0, 1, 1], [], []>} : vector<1x2xf32>, vector<2x32xf32>, vector<1x32xf32> -> vector<1x32xf32>
    %347 = vector.broadcast %346 : vector<1x32xf32> to vector<8x32xf32>
    %348 = arith.subf %341, %347 : vector<8x32xf32>
    %349 = arith.mulf %348, %348 : vector<8x32xf32>
    %cst_162 = arith.constant dense<0.000000e+00> : vector<1x32xf32>
    %350 = tpu.matmul %306, %349, %cst_162 {dimension_numbers = #tpu.dot_dimension_numbers<[1], [0], [0], [1], [0, 0, 1, 1], [], []>} : vector<1x8xf32>, vector<8x32xf32>, vector<1x32xf32> -> vector<1x32xf32>
    %cst_163 = arith.constant dense<0.000000e+00> : vector<1x2xf32>
    %351 = tpu.matmul %350, %304, %cst_163 {dimension_numbers = #tpu.dot_dimension_numbers<[1], [0], [0], [1], [0, 0, 1, 1], [], []>} : vector<1x32xf32>, vector<32x2xf32>, vector<1x2xf32> -> vector<1x2xf32>
    %cst_164 = arith.constant 7.812500e-03 : f32
    %352 = vector.broadcast %cst_164 : f32 to vector<1x2xf32>
    %353 = arith.mulf %351, %352 : vector<1x2xf32>
    %cst_165 = arith.constant 9.99999974E-6 : f32
    %354 = vector.broadcast %cst_165 : f32 to vector<1x2xf32>
    %355 = arith.addf %353, %354 : vector<1x2xf32>
    %356 = math.rsqrt %355 : vector<1x2xf32>
    %cst_166 = arith.constant dense<0.000000e+00> : vector<1x32xf32>
    %357 = tpu.matmul %356, %305, %cst_166 {dimension_numbers = #tpu.dot_dimension_numbers<[1], [0], [0], [1], [0, 0, 1, 1], [], []>} : vector<1x2xf32>, vector<2x32xf32>, vector<1x32xf32> -> vector<1x32xf32>
    %358 = vector.broadcast %357 : vector<1x32xf32> to vector<8x32xf32>
    %359 = arith.mulf %348, %358 : vector<8x32xf32>
    %c0_167 = arith.constant 0 : index
    %c0_168 = arith.constant 0 : index
    %360 = vector.load %arg7[%c0_167, %c0_168] : memref<24x128xf32, #tpu.memory_space<vmem>>, vector<8x32xf32>
    tpu.vector_store %arg7[%c0_167, %c0_168], %359 {strides = array<i32>} : memref<24x128xf32, #tpu.memory_space<vmem>>, vector<8x32xf32>,
    %361 = vector.extract_strided_slice %303 {offsets = [8, 0], sizes = [8, 32], strides = [1, 1]} : vector<64x32xf32> to vector<8x32xf32>
    %362 = vector.extract_strided_slice %303 {offsets = [24, 0], sizes = [8, 32], strides = [1, 1]} : vector<64x32xf32> to vector<8x32xf32>
    %363 = arith.addf %361, %362 : vector<8x32xf32>
    %cst_169 = arith.constant 5.000000e-01 : f32
    %364 = vector.broadcast %cst_169 : f32 to vector<8x32xf32>
    %365 = arith.mulf %363, %364 : vector<8x32xf32>
    %366 = arith.subf %361, %365 : vector<8x32xf32>
    %367 = arith.mulf %366, %366 : vector<8x32xf32>
    %368 = arith.subf %362, %365 : vector<8x32xf32>
    %369 = arith.mulf %368, %368 : vector<8x32xf32>
    %370 = arith.addf %367, %369 : vector<8x32xf32>
    %cst_170 = arith.constant 5.000000e-01 : f32
    %371 = vector.broadcast %cst_170 : f32 to vector<8x32xf32>
    %372 = arith.mulf %370, %371 : vector<8x32xf32>
    %cst_171 = arith.constant 1.000000e-30 : f32
    %373 = vector.broadcast %cst_171 : f32 to vector<8x32xf32>
    %374 = arith.addf %372, %373 : vector<8x32xf32>
    %375 = math.rsqrt %374 : vector<8x32xf32>
    %376 = arith.mulf %375, %365 : vector<8x32xf32>
    %377 = vector.extract_strided_slice %303 {offsets = [40, 0], sizes = [8, 32], strides = [1, 1]} : vector<64x32xf32> to vector<8x32xf32>
    %378 = vector.extract_strided_slice %303 {offsets = [56, 0], sizes = [8, 32], strides = [1, 1]} : vector<64x32xf32> to vector<8x32xf32>
    %379 = arith.addf %377, %378 : vector<8x32xf32>
    %cst_172 = arith.constant 5.000000e-01 : f32
    %380 = vector.broadcast %cst_172 : f32 to vector<8x32xf32>
    %381 = arith.mulf %379, %380 : vector<8x32xf32>
    %382 = arith.subf %377, %381 : vector<8x32xf32>
    %383 = arith.mulf %382, %382 : vector<8x32xf32>
    %384 = arith.subf %378, %381 : vector<8x32xf32>
    %385 = arith.mulf %384, %384 : vector<8x32xf32>
    %386 = arith.addf %383, %385 : vector<8x32xf32>
    %cst_173 = arith.constant 5.000000e-01 : f32
    %387 = vector.broadcast %cst_173 : f32 to vector<8x32xf32>
    %388 = arith.mulf %386, %387 : vector<8x32xf32>
    %cst_174 = arith.constant 1.000000e-30 : f32
    %389 = vector.broadcast %cst_174 : f32 to vector<8x32xf32>
    %390 = arith.addf %388, %389 : vector<8x32xf32>
    %391 = math.rsqrt %390 : vector<8x32xf32>
    %392 = arith.addf %375, %391 : vector<8x32xf32>
    %393 = arith.mulf %391, %381 : vector<8x32xf32>
    %394 = arith.addf %376, %393 : vector<8x32xf32>
    %395 = arith.divf %394, %392 : vector<8x32xf32>
    %cst_175 = arith.constant dense<0.000000e+00> : vector<1x32xf32>
    %396 = tpu.matmul %306, %395, %cst_175 {dimension_numbers = #tpu.dot_dimension_numbers<[1], [0], [0], [1], [0, 0, 1, 1], [], []>} : vector<1x8xf32>, vector<8x32xf32>, vector<1x32xf32> -> vector<1x32xf32>
    %cst_176 = arith.constant dense<0.000000e+00> : vector<1x2xf32>
    %397 = tpu.matmul %396, %304, %cst_176 {dimension_numbers = #tpu.dot_dimension_numbers<[1], [0], [0], [1], [0, 0, 1, 1], [], []>} : vector<1x32xf32>, vector<32x2xf32>, vector<1x2xf32> -> vector<1x2xf32>
    %cst_177 = arith.constant 7.812500e-03 : f32
    %398 = vector.broadcast %cst_177 : f32 to vector<1x2xf32>
    %399 = arith.mulf %397, %398 : vector<1x2xf32>
    %cst_178 = arith.constant dense<0.000000e+00> : vector<1x32xf32>
    %400 = tpu.matmul %399, %305, %cst_178 {dimension_numbers = #tpu.dot_dimension_numbers<[1], [0], [0], [1], [0, 0, 1, 1], [], []>} : vector<1x2xf32>, vector<2x32xf32>, vector<1x32xf32> -> vector<1x32xf32>
    %401 = vector.broadcast %400 : vector<1x32xf32> to vector<8x32xf32>
    %402 = arith.subf %395, %401 : vector<8x32xf32>
    %403 = arith.mulf %402, %402 : vector<8x32xf32>
    %cst_179 = arith.constant dense<0.000000e+00> : vector<1x32xf32>
    %404 = tpu.matmul %306, %403, %cst_179 {dimension_numbers = #tpu.dot_dimension_numbers<[1], [0], [0], [1], [0, 0, 1, 1], [], []>} : vector<1x8xf32>, vector<8x32xf32>, vector<1x32xf32> -> vector<1x32xf32>
    %cst_180 = arith.constant dense<0.000000e+00> : vector<1x2xf32>
    %405 = tpu.matmul %404, %304, %cst_180 {dimension_numbers = #tpu.dot_dimension_numbers<[1], [0], [0], [1], [0, 0, 1, 1], [], []>} : vector<1x32xf32>, vector<32x2xf32>, vector<1x2xf32> -> vector<1x2xf32>
    %cst_181 = arith.constant 7.812500e-03 : f32
    %406 = vector.broadcast %cst_181 : f32 to vector<1x2xf32>
    %407 = arith.mulf %405, %406 : vector<1x2xf32>
    %cst_182 = arith.constant 9.99999974E-6 : f32
    %408 = vector.broadcast %cst_182 : f32 to vector<1x2xf32>
    %409 = arith.addf %407, %408 : vector<1x2xf32>
    %410 = math.rsqrt %409 : vector<1x2xf32>
    %cst_183 = arith.constant dense<0.000000e+00> : vector<1x32xf32>
    %411 = tpu.matmul %410, %305, %cst_183 {dimension_numbers = #tpu.dot_dimension_numbers<[1], [0], [0], [1], [0, 0, 1, 1], [], []>} : vector<1x2xf32>, vector<2x32xf32>, vector<1x32xf32> -> vector<1x32xf32>
    %412 = vector.broadcast %411 : vector<1x32xf32> to vector<8x32xf32>
    %413 = arith.mulf %402, %412 : vector<8x32xf32>
    %c8_184 = arith.constant 8 : index
    %c0_185 = arith.constant 0 : index
    %414 = vector.load %arg7[%c8_184, %c0_185] : memref<24x128xf32, #tpu.memory_space<vmem>>, vector<8x32xf32>
    tpu.vector_store %arg7[%c8_184, %c0_185], %413 {strides = array<i32>} : memref<24x128xf32, #tpu.memory_space<vmem>>, vector<8x32xf32>,
    %c0_186 = arith.constant 0 : index
    %c0_187 = arith.constant 0 : index
    %415 = vector.load %arg7[%c0_186, %c0_187] : memref<24x128xf32, #tpu.memory_space<vmem>>, vector<16x32xf32>
    %c288 = arith.constant 288 : index
    %c0_188 = arith.constant 0 : index
    %416 = vector.load %arg2[%c288, %c0_188] : memref<328x1152xf32, #tpu.memory_space<vmem>>, vector<32x72xf32>
    %cst_189 = arith.constant dense<0.000000e+00> : vector<16x72xf32>
    %417 = tpu.matmul %415, %416, %cst_189 {dimension_numbers = #tpu.dot_dimension_numbers<[1], [0], [0], [1], [0, 0, 1, 1], [], []>} : vector<16x32xf32>, vector<32x72xf32>, vector<16x72xf32> -> vector<16x72xf32>
    %418 = vector.extract_strided_slice %417 {offsets = [0, 0], sizes = [16, 8], strides = [1, 1]} : vector<16x72xf32> to vector<16x8xf32>
    %c0_190 = arith.constant 0 : index
    %c0_191 = arith.constant 0 : index
    %419 = vector.load %arg6[%c0_190, %c0_191] : memref<144x128xf32, #tpu.memory_space<vmem>>, vector<16x8xf32>
    tpu.vector_store %arg6[%c0_190, %c0_191], %418 {strides = array<i32>} : memref<144x128xf32, #tpu.memory_space<vmem>>, vector<16x8xf32>,
    %420 = vector.extract_strided_slice %417 {offsets = [0, 8], sizes = [16, 8], strides = [1, 1]} : vector<16x72xf32> to vector<16x8xf32>
    %c16_192 = arith.constant 16 : index
    %c0_193 = arith.constant 0 : index
    %421 = vector.load %arg6[%c16_192, %c0_193] : memref<144x128xf32, #tpu.memory_space<vmem>>, vector<16x8xf32>
    tpu.vector_store %arg6[%c16_192, %c0_193], %420 {strides = array<i32>} : memref<144x128xf32, #tpu.memory_space<vmem>>, vector<16x8xf32>,
    %422 = vector.extract_strided_slice %417 {offsets = [0, 16], sizes = [16, 8], strides = [1, 1]} : vector<16x72xf32> to vector<16x8xf32>
    %c32_194 = arith.constant 32 : index
    %c0_195 = arith.constant 0 : index
    %423 = vector.load %arg6[%c32_194, %c0_195] : memref<144x128xf32, #tpu.memory_space<vmem>>, vector<16x8xf32>
    tpu.vector_store %arg6[%c32_194, %c0_195], %422 {strides = array<i32>} : memref<144x128xf32, #tpu.memory_space<vmem>>, vector<16x8xf32>,
    %424 = vector.extract_strided_slice %417 {offsets = [0, 24], sizes = [16, 8], strides = [1, 1]} : vector<16x72xf32> to vector<16x8xf32>
    %c48_196 = arith.constant 48 : index
    %c0_197 = arith.constant 0 : index
    %425 = vector.load %arg6[%c48_196, %c0_197] : memref<144x128xf32, #tpu.memory_space<vmem>>, vector<16x8xf32>
    tpu.vector_store %arg6[%c48_196, %c0_197], %424 {strides = array<i32>} : memref<144x128xf32, #tpu.memory_space<vmem>>, vector<16x8xf32>,
    %426 = vector.extract_strided_slice %417 {offsets = [0, 32], sizes = [16, 8], strides = [1, 1]} : vector<16x72xf32> to vector<16x8xf32>
    %c64_198 = arith.constant 64 : index
    %c0_199 = arith.constant 0 : index
    %427 = vector.load %arg6[%c64_198, %c0_199] : memref<144x128xf32, #tpu.memory_space<vmem>>, vector<16x8xf32>
    tpu.vector_store %arg6[%c64_198, %c0_199], %426 {strides = array<i32>} : memref<144x128xf32, #tpu.memory_space<vmem>>, vector<16x8xf32>,
    %428 = vector.extract_strided_slice %417 {offsets = [0, 40], sizes = [16, 8], strides = [1, 1]} : vector<16x72xf32> to vector<16x8xf32>
    %c80_200 = arith.constant 80 : index
    %c0_201 = arith.constant 0 : index
    %429 = vector.load %arg6[%c80_200, %c0_201] : memref<144x128xf32, #tpu.memory_space<vmem>>, vector<16x8xf32>
    tpu.vector_store %arg6[%c80_200, %c0_201], %428 {strides = array<i32>} : memref<144x128xf32, #tpu.memory_space<vmem>>, vector<16x8xf32>,
    %430 = vector.extract_strided_slice %417 {offsets = [0, 48], sizes = [16, 8], strides = [1, 1]} : vector<16x72xf32> to vector<16x8xf32>
    %c96_202 = arith.constant 96 : index
    %c0_203 = arith.constant 0 : index
    %431 = vector.load %arg6[%c96_202, %c0_203] : memref<144x128xf32, #tpu.memory_space<vmem>>, vector<16x8xf32>
    tpu.vector_store %arg6[%c96_202, %c0_203], %430 {strides = array<i32>} : memref<144x128xf32, #tpu.memory_space<vmem>>, vector<16x8xf32>,
    %432 = vector.extract_strided_slice %417 {offsets = [0, 56], sizes = [16, 8], strides = [1, 1]} : vector<16x72xf32> to vector<16x8xf32>
    %c112_204 = arith.constant 112 : index
    %c0_205 = arith.constant 0 : index
    %433 = vector.load %arg6[%c112_204, %c0_205] : memref<144x128xf32, #tpu.memory_space<vmem>>, vector<16x8xf32>
    tpu.vector_store %arg6[%c112_204, %c0_205], %432 {strides = array<i32>} : memref<144x128xf32, #tpu.memory_space<vmem>>, vector<16x8xf32>,
    %434 = vector.extract_strided_slice %417 {offsets = [0, 64], sizes = [16, 8], strides = [1, 1]} : vector<16x72xf32> to vector<16x8xf32>
    %c128_206 = arith.constant 128 : index
    %c0_207 = arith.constant 0 : index
    %435 = vector.load %arg6[%c128_206, %c0_207] : memref<144x128xf32, #tpu.memory_space<vmem>>, vector<16x8xf32>
    tpu.vector_store %arg6[%c128_206, %c0_207], %434 {strides = array<i32>} : memref<144x128xf32, #tpu.memory_space<vmem>>, vector<16x8xf32>,
    %c192_208 = arith.constant 192 : index
    %c0_209 = arith.constant 0 : index
    %436 = vector.load %arg3[%c192_208, %c0_209] : memref<352x144xf32, #tpu.memory_space<vmem>>, vector<64x144xf32>
    %c408 = arith.constant 408 : index
    %c0_210 = arith.constant 0 : index
    %437 = vector.load %arg4[%c408, %c0_210] : memref<640x128xf32, #tpu.memory_space<vmem>>, vector<64x1xf32>
    %c0_211 = arith.constant 0 : index
    %c0_212 = arith.constant 0 : index
    %438 = vector.load %arg6[%c0_211, %c0_212] : memref<144x128xf32, #tpu.memory_space<vmem>>, vector<144x8xf32>
    %cst_213 = arith.constant dense<0.000000e+00> : vector<64x8xf32>
    %439 = tpu.matmul %436, %438, %cst_213 {dimension_numbers = #tpu.dot_dimension_numbers<[1], [0], [0], [1], [0, 0, 1, 1], [], []>} : vector<64x144xf32>, vector<144x8xf32>, vector<64x8xf32> -> vector<64x8xf32>
    %440 = vector.broadcast %437 : vector<64x1xf32> to vector<64x8xf32>
    %441 = arith.addf %439, %440 : vector<64x8xf32>
    %c472 = arith.constant 472 : index
    %c0_214 = arith.constant 0 : index
    %442 = vector.load %arg4[%c472, %c0_214] : memref<640x128xf32, #tpu.memory_space<vmem>>, vector<8x2xf32>
    %c480 = arith.constant 480 : index
    %c0_215 = arith.constant 0 : index
    %443 = vector.load %arg4[%c480, %c0_215] : memref<640x128xf32, #tpu.memory_space<vmem>>, vector<2x8xf32>
    %cst_216 = arith.constant 1.000000e+00 : f32
    %444 = vector.broadcast %cst_216 : f32 to vector<1x8xf32>
    %445 = vector.extract_strided_slice %441 {offsets = [0, 0], sizes = [8, 8], strides = [1, 1]} : vector<64x8xf32> to vector<8x8xf32>
    %446 = vector.extract_strided_slice %441 {offsets = [16, 0], sizes = [8, 8], strides = [1, 1]} : vector<64x8xf32> to vector<8x8xf32>
    %447 = arith.addf %445, %446 : vector<8x8xf32>
    %cst_217 = arith.constant 5.000000e-01 : f32
    %448 = vector.broadcast %cst_217 : f32 to vector<8x8xf32>
    %449 = arith.mulf %447, %448 : vector<8x8xf32>
    %450 = arith.subf %445, %449 : vector<8x8xf32>
    %451 = arith.mulf %450, %450 : vector<8x8xf32>
    %452 = arith.subf %446, %449 : vector<8x8xf32>
    %453 = arith.mulf %452, %452 : vector<8x8xf32>
    %454 = arith.addf %451, %453 : vector<8x8xf32>
    %cst_218 = arith.constant 5.000000e-01 : f32
    %455 = vector.broadcast %cst_218 : f32 to vector<8x8xf32>
    %456 = arith.mulf %454, %455 : vector<8x8xf32>
    %cst_219 = arith.constant 1.000000e-30 : f32
    %457 = vector.broadcast %cst_219 : f32 to vector<8x8xf32>
    %458 = arith.addf %456, %457 : vector<8x8xf32>
    %459 = math.rsqrt %458 : vector<8x8xf32>
    %460 = arith.mulf %459, %449 : vector<8x8xf32>
    %461 = vector.extract_strided_slice %441 {offsets = [32, 0], sizes = [8, 8], strides = [1, 1]} : vector<64x8xf32> to vector<8x8xf32>
    %462 = vector.extract_strided_slice %441 {offsets = [48, 0], sizes = [8, 8], strides = [1, 1]} : vector<64x8xf32> to vector<8x8xf32>
    %463 = arith.addf %461, %462 : vector<8x8xf32>
    %cst_220 = arith.constant 5.000000e-01 : f32
    %464 = vector.broadcast %cst_220 : f32 to vector<8x8xf32>
    %465 = arith.mulf %463, %464 : vector<8x8xf32>
    %466 = arith.subf %461, %465 : vector<8x8xf32>
    %467 = arith.mulf %466, %466 : vector<8x8xf32>
    %468 = arith.subf %462, %465 : vector<8x8xf32>
    %469 = arith.mulf %468, %468 : vector<8x8xf32>
    %470 = arith.addf %467, %469 : vector<8x8xf32>
    %cst_221 = arith.constant 5.000000e-01 : f32
    %471 = vector.broadcast %cst_221 : f32 to vector<8x8xf32>
    %472 = arith.mulf %470, %471 : vector<8x8xf32>
    %cst_222 = arith.constant 1.000000e-30 : f32
    %473 = vector.broadcast %cst_222 : f32 to vector<8x8xf32>
    %474 = arith.addf %472, %473 : vector<8x8xf32>
    %475 = math.rsqrt %474 : vector<8x8xf32>
    %476 = arith.addf %459, %475 : vector<8x8xf32>
    %477 = arith.mulf %475, %465 : vector<8x8xf32>
    %478 = arith.addf %460, %477 : vector<8x8xf32>
    %479 = arith.divf %478, %476 : vector<8x8xf32>
    %cst_223 = arith.constant dense<0.000000e+00> : vector<1x8xf32>
    %480 = tpu.matmul %444, %479, %cst_223 {dimension_numbers = #tpu.dot_dimension_numbers<[1], [0], [0], [1], [0, 0, 1, 1], [], []>} : vector<1x8xf32>, vector<8x8xf32>, vector<1x8xf32> -> vector<1x8xf32>
    %cst_224 = arith.constant dense<0.000000e+00> : vector<1x2xf32>
    %481 = tpu.matmul %480, %442, %cst_224 {dimension_numbers = #tpu.dot_dimension_numbers<[1], [0], [0], [1], [0, 0, 1, 1], [], []>} : vector<1x8xf32>, vector<8x2xf32>, vector<1x2xf32> -> vector<1x2xf32>
    %cst_225 = arith.constant 3.125000e-02 : f32
    %482 = vector.broadcast %cst_225 : f32 to vector<1x2xf32>
    %483 = arith.mulf %481, %482 : vector<1x2xf32>
    %cst_226 = arith.constant dense<0.000000e+00> : vector<1x8xf32>
    %484 = tpu.matmul %483, %443, %cst_226 {dimension_numbers = #tpu.dot_dimension_numbers<[1], [0], [0], [1], [0, 0, 1, 1], [], []>} : vector<1x2xf32>, vector<2x8xf32>, vector<1x8xf32> -> vector<1x8xf32>
    %485 = vector.broadcast %484 : vector<1x8xf32> to vector<8x8xf32>
    %486 = arith.subf %479, %485 : vector<8x8xf32>
    %487 = arith.mulf %486, %486 : vector<8x8xf32>
    %cst_227 = arith.constant dense<0.000000e+00> : vector<1x8xf32>
    %488 = tpu.matmul %444, %487, %cst_227 {dimension_numbers = #tpu.dot_dimension_numbers<[1], [0], [0], [1], [0, 0, 1, 1], [], []>} : vector<1x8xf32>, vector<8x8xf32>, vector<1x8xf32> -> vector<1x8xf32>
    %cst_228 = arith.constant dense<0.000000e+00> : vector<1x2xf32>
    %489 = tpu.matmul %488, %442, %cst_228 {dimension_numbers = #tpu.dot_dimension_numbers<[1], [0], [0], [1], [0, 0, 1, 1], [], []>} : vector<1x8xf32>, vector<8x2xf32>, vector<1x2xf32> -> vector<1x2xf32>
    %cst_229 = arith.constant 3.125000e-02 : f32
    %490 = vector.broadcast %cst_229 : f32 to vector<1x2xf32>
    %491 = arith.mulf %489, %490 : vector<1x2xf32>
    %cst_230 = arith.constant 9.99999974E-6 : f32
    %492 = vector.broadcast %cst_230 : f32 to vector<1x2xf32>
    %493 = arith.addf %491, %492 : vector<1x2xf32>
    %494 = math.rsqrt %493 : vector<1x2xf32>
    %cst_231 = arith.constant dense<0.000000e+00> : vector<1x8xf32>
    %495 = tpu.matmul %494, %443, %cst_231 {dimension_numbers = #tpu.dot_dimension_numbers<[1], [0], [0], [1], [0, 0, 1, 1], [], []>} : vector<1x2xf32>, vector<2x8xf32>, vector<1x8xf32> -> vector<1x8xf32>
    %496 = vector.broadcast %495 : vector<1x8xf32> to vector<8x8xf32>
    %497 = arith.mulf %486, %496 : vector<8x8xf32>
    %c0_232 = arith.constant 0 : index
    %c0_233 = arith.constant 0 : index
    %498 = vector.load %arg7[%c0_232, %c0_233] : memref<24x128xf32, #tpu.memory_space<vmem>>, vector<8x8xf32>
    tpu.vector_store %arg7[%c0_232, %c0_233], %497 {strides = array<i32>} : memref<24x128xf32, #tpu.memory_space<vmem>>, vector<8x8xf32>,
    %499 = vector.extract_strided_slice %441 {offsets = [8, 0], sizes = [8, 8], strides = [1, 1]} : vector<64x8xf32> to vector<8x8xf32>
    %500 = vector.extract_strided_slice %441 {offsets = [24, 0], sizes = [8, 8], strides = [1, 1]} : vector<64x8xf32> to vector<8x8xf32>
    %501 = arith.addf %499, %500 : vector<8x8xf32>
    %cst_234 = arith.constant 5.000000e-01 : f32
    %502 = vector.broadcast %cst_234 : f32 to vector<8x8xf32>
    %503 = arith.mulf %501, %502 : vector<8x8xf32>
    %504 = arith.subf %499, %503 : vector<8x8xf32>
    %505 = arith.mulf %504, %504 : vector<8x8xf32>
    %506 = arith.subf %500, %503 : vector<8x8xf32>
    %507 = arith.mulf %506, %506 : vector<8x8xf32>
    %508 = arith.addf %505, %507 : vector<8x8xf32>
    %cst_235 = arith.constant 5.000000e-01 : f32
    %509 = vector.broadcast %cst_235 : f32 to vector<8x8xf32>
    %510 = arith.mulf %508, %509 : vector<8x8xf32>
    %cst_236 = arith.constant 1.000000e-30 : f32
    %511 = vector.broadcast %cst_236 : f32 to vector<8x8xf32>
    %512 = arith.addf %510, %511 : vector<8x8xf32>
    %513 = math.rsqrt %512 : vector<8x8xf32>
    %514 = arith.mulf %513, %503 : vector<8x8xf32>
    %515 = vector.extract_strided_slice %441 {offsets = [40, 0], sizes = [8, 8], strides = [1, 1]} : vector<64x8xf32> to vector<8x8xf32>
    %516 = vector.extract_strided_slice %441 {offsets = [56, 0], sizes = [8, 8], strides = [1, 1]} : vector<64x8xf32> to vector<8x8xf32>
    %517 = arith.addf %515, %516 : vector<8x8xf32>
    %cst_237 = arith.constant 5.000000e-01 : f32
    %518 = vector.broadcast %cst_237 : f32 to vector<8x8xf32>
    %519 = arith.mulf %517, %518 : vector<8x8xf32>
    %520 = arith.subf %515, %519 : vector<8x8xf32>
    %521 = arith.mulf %520, %520 : vector<8x8xf32>
    %522 = arith.subf %516, %519 : vector<8x8xf32>
    %523 = arith.mulf %522, %522 : vector<8x8xf32>
    %524 = arith.addf %521, %523 : vector<8x8xf32>
    %cst_238 = arith.constant 5.000000e-01 : f32
    %525 = vector.broadcast %cst_238 : f32 to vector<8x8xf32>
    %526 = arith.mulf %524, %525 : vector<8x8xf32>
    %cst_239 = arith.constant 1.000000e-30 : f32
    %527 = vector.broadcast %cst_239 : f32 to vector<8x8xf32>
    %528 = arith.addf %526, %527 : vector<8x8xf32>
    %529 = math.rsqrt %528 : vector<8x8xf32>
    %530 = arith.addf %513, %529 : vector<8x8xf32>
    %531 = arith.mulf %529, %519 : vector<8x8xf32>
    %532 = arith.addf %514, %531 : vector<8x8xf32>
    %533 = arith.divf %532, %530 : vector<8x8xf32>
    %cst_240 = arith.constant dense<0.000000e+00> : vector<1x8xf32>
    %534 = tpu.matmul %444, %533, %cst_240 {dimension_numbers = #tpu.dot_dimension_numbers<[1], [0], [0], [1], [0, 0, 1, 1], [], []>} : vector<1x8xf32>, vector<8x8xf32>, vector<1x8xf32> -> vector<1x8xf32>
    %cst_241 = arith.constant dense<0.000000e+00> : vector<1x2xf32>
    %535 = tpu.matmul %534, %442, %cst_241 {dimension_numbers = #tpu.dot_dimension_numbers<[1], [0], [0], [1], [0, 0, 1, 1], [], []>} : vector<1x8xf32>, vector<8x2xf32>, vector<1x2xf32> -> vector<1x2xf32>
    %cst_242 = arith.constant 3.125000e-02 : f32
    %536 = vector.broadcast %cst_242 : f32 to vector<1x2xf32>
    %537 = arith.mulf %535, %536 : vector<1x2xf32>
    %cst_243 = arith.constant dense<0.000000e+00> : vector<1x8xf32>
    %538 = tpu.matmul %537, %443, %cst_243 {dimension_numbers = #tpu.dot_dimension_numbers<[1], [0], [0], [1], [0, 0, 1, 1], [], []>} : vector<1x2xf32>, vector<2x8xf32>, vector<1x8xf32> -> vector<1x8xf32>
    %539 = vector.broadcast %538 : vector<1x8xf32> to vector<8x8xf32>
    %540 = arith.subf %533, %539 : vector<8x8xf32>
    %541 = arith.mulf %540, %540 : vector<8x8xf32>
    %cst_244 = arith.constant dense<0.000000e+00> : vector<1x8xf32>
    %542 = tpu.matmul %444, %541, %cst_244 {dimension_numbers = #tpu.dot_dimension_numbers<[1], [0], [0], [1], [0, 0, 1, 1], [], []>} : vector<1x8xf32>, vector<8x8xf32>, vector<1x8xf32> -> vector<1x8xf32>
    %cst_245 = arith.constant dense<0.000000e+00> : vector<1x2xf32>
    %543 = tpu.matmul %542, %442, %cst_245 {dimension_numbers = #tpu.dot_dimension_numbers<[1], [0], [0], [1], [0, 0, 1, 1], [], []>} : vector<1x8xf32>, vector<8x2xf32>, vector<1x2xf32> -> vector<1x2xf32>
    %cst_246 = arith.constant 3.125000e-02 : f32
    %544 = vector.broadcast %cst_246 : f32 to vector<1x2xf32>
    %545 = arith.mulf %543, %544 : vector<1x2xf32>
    %cst_247 = arith.constant 9.99999974E-6 : f32
    %546 = vector.broadcast %cst_247 : f32 to vector<1x2xf32>
    %547 = arith.addf %545, %546 : vector<1x2xf32>
    %548 = math.rsqrt %547 : vector<1x2xf32>
    %cst_248 = arith.constant dense<0.000000e+00> : vector<1x8xf32>
    %549 = tpu.matmul %548, %443, %cst_248 {dimension_numbers = #tpu.dot_dimension_numbers<[1], [0], [0], [1], [0, 0, 1, 1], [], []>} : vector<1x2xf32>, vector<2x8xf32>, vector<1x8xf32> -> vector<1x8xf32>
    %550 = vector.broadcast %549 : vector<1x8xf32> to vector<8x8xf32>
    %551 = arith.mulf %540, %550 : vector<8x8xf32>
    %c8_249 = arith.constant 8 : index
    %c0_250 = arith.constant 0 : index
    %552 = vector.load %arg7[%c8_249, %c0_250] : memref<24x128xf32, #tpu.memory_space<vmem>>, vector<8x8xf32>
    tpu.vector_store %arg7[%c8_249, %c0_250], %551 {strides = array<i32>} : memref<24x128xf32, #tpu.memory_space<vmem>>, vector<8x8xf32>,
    %c0_251 = arith.constant 0 : index
    %c0_252 = arith.constant 0 : index
    %553 = vector.load %arg7[%c0_251, %c0_252] : memref<24x128xf32, #tpu.memory_space<vmem>>, vector<16x8xf32>
    %c320 = arith.constant 320 : index
    %c0_253 = arith.constant 0 : index
    %554 = vector.load %arg2[%c320, %c0_253] : memref<328x1152xf32, #tpu.memory_space<vmem>>, vector<8x72xf32>
    %cst_254 = arith.constant dense<0.000000e+00> : vector<16x72xf32>
    %555 = tpu.matmul %553, %554, %cst_254 {dimension_numbers = #tpu.dot_dimension_numbers<[1], [0], [0], [1], [0, 0, 1, 1], [], []>} : vector<16x8xf32>, vector<8x72xf32>, vector<16x72xf32> -> vector<16x72xf32>
    %556 = vector.extract_strided_slice %555 {offsets = [0, 0], sizes = [16, 8], strides = [1, 1]} : vector<16x72xf32> to vector<16x8xf32>
    %c0_255 = arith.constant 0 : index
    %c0_256 = arith.constant 0 : index
    %557 = vector.load %arg6[%c0_255, %c0_256] : memref<144x128xf32, #tpu.memory_space<vmem>>, vector<16x8xf32>
    tpu.vector_store %arg6[%c0_255, %c0_256], %556 {strides = array<i32>} : memref<144x128xf32, #tpu.memory_space<vmem>>, vector<16x8xf32>,
    %558 = vector.extract_strided_slice %555 {offsets = [0, 8], sizes = [16, 8], strides = [1, 1]} : vector<16x72xf32> to vector<16x8xf32>
    %c16_257 = arith.constant 16 : index
    %c0_258 = arith.constant 0 : index
    %559 = vector.load %arg6[%c16_257, %c0_258] : memref<144x128xf32, #tpu.memory_space<vmem>>, vector<16x8xf32>
    tpu.vector_store %arg6[%c16_257, %c0_258], %558 {strides = array<i32>} : memref<144x128xf32, #tpu.memory_space<vmem>>, vector<16x8xf32>,
    %560 = vector.extract_strided_slice %555 {offsets = [0, 16], sizes = [16, 8], strides = [1, 1]} : vector<16x72xf32> to vector<16x8xf32>
    %c32_259 = arith.constant 32 : index
    %c0_260 = arith.constant 0 : index
    %561 = vector.load %arg6[%c32_259, %c0_260] : memref<144x128xf32, #tpu.memory_space<vmem>>, vector<16x8xf32>
    tpu.vector_store %arg6[%c32_259, %c0_260], %560 {strides = array<i32>} : memref<144x128xf32, #tpu.memory_space<vmem>>, vector<16x8xf32>,
    %562 = vector.extract_strided_slice %555 {offsets = [0, 24], sizes = [16, 8], strides = [1, 1]} : vector<16x72xf32> to vector<16x8xf32>
    %c48_261 = arith.constant 48 : index
    %c0_262 = arith.constant 0 : index
    %563 = vector.load %arg6[%c48_261, %c0_262] : memref<144x128xf32, #tpu.memory_space<vmem>>, vector<16x8xf32>
    tpu.vector_store %arg6[%c48_261, %c0_262], %562 {strides = array<i32>} : memref<144x128xf32, #tpu.memory_space<vmem>>, vector<16x8xf32>,
    %564 = vector.extract_strided_slice %555 {offsets = [0, 32], sizes = [16, 8], strides = [1, 1]} : vector<16x72xf32> to vector<16x8xf32>
    %c64_263 = arith.constant 64 : index
    %c0_264 = arith.constant 0 : index
    %565 = vector.load %arg6[%c64_263, %c0_264] : memref<144x128xf32, #tpu.memory_space<vmem>>, vector<16x8xf32>
    tpu.vector_store %arg6[%c64_263, %c0_264], %564 {strides = array<i32>} : memref<144x128xf32, #tpu.memory_space<vmem>>, vector<16x8xf32>,
    %566 = vector.extract_strided_slice %555 {offsets = [0, 40], sizes = [16, 8], strides = [1, 1]} : vector<16x72xf32> to vector<16x8xf32>
    %c80_265 = arith.constant 80 : index
    %c0_266 = arith.constant 0 : index
    %567 = vector.load %arg6[%c80_265, %c0_266] : memref<144x128xf32, #tpu.memory_space<vmem>>, vector<16x8xf32>
    tpu.vector_store %arg6[%c80_265, %c0_266], %566 {strides = array<i32>} : memref<144x128xf32, #tpu.memory_space<vmem>>, vector<16x8xf32>,
    %568 = vector.extract_strided_slice %555 {offsets = [0, 48], sizes = [16, 8], strides = [1, 1]} : vector<16x72xf32> to vector<16x8xf32>
    %c96_267 = arith.constant 96 : index
    %c0_268 = arith.constant 0 : index
    %569 = vector.load %arg6[%c96_267, %c0_268] : memref<144x128xf32, #tpu.memory_space<vmem>>, vector<16x8xf32>
    tpu.vector_store %arg6[%c96_267, %c0_268], %568 {strides = array<i32>} : memref<144x128xf32, #tpu.memory_space<vmem>>, vector<16x8xf32>,
    %570 = vector.extract_strided_slice %555 {offsets = [0, 56], sizes = [16, 8], strides = [1, 1]} : vector<16x72xf32> to vector<16x8xf32>
    %c112_269 = arith.constant 112 : index
    %c0_270 = arith.constant 0 : index
    %571 = vector.load %arg6[%c112_269, %c0_270] : memref<144x128xf32, #tpu.memory_space<vmem>>, vector<16x8xf32>
    tpu.vector_store %arg6[%c112_269, %c0_270], %570 {strides = array<i32>} : memref<144x128xf32, #tpu.memory_space<vmem>>, vector<16x8xf32>,
    %572 = vector.extract_strided_slice %555 {offsets = [0, 64], sizes = [16, 8], strides = [1, 1]} : vector<16x72xf32> to vector<16x8xf32>
    %c128_271 = arith.constant 128 : index
    %c0_272 = arith.constant 0 : index
    %573 = vector.load %arg6[%c128_271, %c0_272] : memref<144x128xf32, #tpu.memory_space<vmem>>, vector<16x8xf32>
    tpu.vector_store %arg6[%c128_271, %c0_272], %572 {strides = array<i32>} : memref<144x128xf32, #tpu.memory_space<vmem>>, vector<16x8xf32>,
    %c256_273 = arith.constant 256 : index
    %c0_274 = arith.constant 0 : index
    %574 = vector.load %arg3[%c256_273, %c0_274] : memref<352x144xf32, #tpu.memory_space<vmem>>, vector<96x144xf32>
    %c488 = arith.constant 488 : index
    %c0_275 = arith.constant 0 : index
    %575 = vector.load %arg4[%c488, %c0_275] : memref<640x128xf32, #tpu.memory_space<vmem>>, vector<96x1xf32>
    %c0_276 = arith.constant 0 : index
    %c0_277 = arith.constant 0 : index
    %576 = vector.load %arg6[%c0_276, %c0_277] : memref<144x128xf32, #tpu.memory_space<vmem>>, vector<144x8xf32>
    %cst_278 = arith.constant dense<0.000000e+00> : vector<96x8xf32>
    %577 = tpu.matmul %574, %576, %cst_278 {dimension_numbers = #tpu.dot_dimension_numbers<[1], [0], [0], [1], [0, 0, 1, 1], [], []>} : vector<96x144xf32>, vector<144x8xf32>, vector<96x8xf32> -> vector<96x8xf32>
    %578 = vector.broadcast %575 : vector<96x1xf32> to vector<96x8xf32>
    %579 = arith.addf %577, %578 : vector<96x8xf32>
    %c584 = arith.constant 584 : index
    %c0_279 = arith.constant 0 : index
    %580 = vector.load %arg4[%c584, %c0_279] : memref<640x128xf32, #tpu.memory_space<vmem>>, vector<8x2xf32>
    %c592 = arith.constant 592 : index
    %c0_280 = arith.constant 0 : index
    %581 = vector.load %arg4[%c592, %c0_280] : memref<640x128xf32, #tpu.memory_space<vmem>>, vector<2x8xf32>
    %cst_281 = arith.constant 1.000000e+00 : f32
    %582 = vector.broadcast %cst_281 : f32 to vector<1x8xf32>
    %583 = vector.extract_strided_slice %579 {offsets = [0, 0], sizes = [8, 8], strides = [1, 1]} : vector<96x8xf32> to vector<8x8xf32>
    %584 = vector.extract_strided_slice %579 {offsets = [24, 0], sizes = [8, 8], strides = [1, 1]} : vector<96x8xf32> to vector<8x8xf32>
    %585 = arith.addf %583, %584 : vector<8x8xf32>
    %cst_282 = arith.constant 5.000000e-01 : f32
    %586 = vector.broadcast %cst_282 : f32 to vector<8x8xf32>
    %587 = arith.mulf %585, %586 : vector<8x8xf32>
    %588 = arith.subf %583, %587 : vector<8x8xf32>
    %589 = arith.mulf %588, %588 : vector<8x8xf32>
    %590 = arith.subf %584, %587 : vector<8x8xf32>
    %591 = arith.mulf %590, %590 : vector<8x8xf32>
    %592 = arith.addf %589, %591 : vector<8x8xf32>
    %cst_283 = arith.constant 5.000000e-01 : f32
    %593 = vector.broadcast %cst_283 : f32 to vector<8x8xf32>
    %594 = arith.mulf %592, %593 : vector<8x8xf32>
    %cst_284 = arith.constant 1.000000e-30 : f32
    %595 = vector.broadcast %cst_284 : f32 to vector<8x8xf32>
    %596 = arith.addf %594, %595 : vector<8x8xf32>
    %597 = math.rsqrt %596 : vector<8x8xf32>
    %598 = arith.mulf %597, %587 : vector<8x8xf32>
    %599 = vector.extract_strided_slice %579 {offsets = [48, 0], sizes = [8, 8], strides = [1, 1]} : vector<96x8xf32> to vector<8x8xf32>
    %600 = vector.extract_strided_slice %579 {offsets = [72, 0], sizes = [8, 8], strides = [1, 1]} : vector<96x8xf32> to vector<8x8xf32>
    %601 = arith.addf %599, %600 : vector<8x8xf32>
    %cst_285 = arith.constant 5.000000e-01 : f32
    %602 = vector.broadcast %cst_285 : f32 to vector<8x8xf32>
    %603 = arith.mulf %601, %602 : vector<8x8xf32>
    %604 = arith.subf %599, %603 : vector<8x8xf32>
    %605 = arith.mulf %604, %604 : vector<8x8xf32>
    %606 = arith.subf %600, %603 : vector<8x8xf32>
    %607 = arith.mulf %606, %606 : vector<8x8xf32>
    %608 = arith.addf %605, %607 : vector<8x8xf32>
    %cst_286 = arith.constant 5.000000e-01 : f32
    %609 = vector.broadcast %cst_286 : f32 to vector<8x8xf32>
    %610 = arith.mulf %608, %609 : vector<8x8xf32>
    %cst_287 = arith.constant 1.000000e-30 : f32
    %611 = vector.broadcast %cst_287 : f32 to vector<8x8xf32>
    %612 = arith.addf %610, %611 : vector<8x8xf32>
    %613 = math.rsqrt %612 : vector<8x8xf32>
    %614 = arith.addf %597, %613 : vector<8x8xf32>
    %615 = arith.mulf %613, %603 : vector<8x8xf32>
    %616 = arith.addf %598, %615 : vector<8x8xf32>
    %617 = arith.divf %616, %614 : vector<8x8xf32>
    %cst_288 = arith.constant dense<0.000000e+00> : vector<1x8xf32>
    %618 = tpu.matmul %582, %617, %cst_288 {dimension_numbers = #tpu.dot_dimension_numbers<[1], [0], [0], [1], [0, 0, 1, 1], [], []>} : vector<1x8xf32>, vector<8x8xf32>, vector<1x8xf32> -> vector<1x8xf32>
    %cst_289 = arith.constant dense<0.000000e+00> : vector<1x2xf32>
    %619 = tpu.matmul %618, %580, %cst_289 {dimension_numbers = #tpu.dot_dimension_numbers<[1], [0], [0], [1], [0, 0, 1, 1], [], []>} : vector<1x8xf32>, vector<8x2xf32>, vector<1x2xf32> -> vector<1x2xf32>
    %cst_290 = arith.constant 3.125000e-02 : f32
    %620 = vector.broadcast %cst_290 : f32 to vector<1x2xf32>
    %621 = arith.mulf %619, %620 : vector<1x2xf32>
    %cst_291 = arith.constant dense<0.000000e+00> : vector<1x8xf32>
    %622 = tpu.matmul %621, %581, %cst_291 {dimension_numbers = #tpu.dot_dimension_numbers<[1], [0], [0], [1], [0, 0, 1, 1], [], []>} : vector<1x2xf32>, vector<2x8xf32>, vector<1x8xf32> -> vector<1x8xf32>
    %623 = vector.broadcast %622 : vector<1x8xf32> to vector<8x8xf32>
    %624 = arith.subf %617, %623 : vector<8x8xf32>
    %625 = arith.mulf %624, %624 : vector<8x8xf32>
    %cst_292 = arith.constant dense<0.000000e+00> : vector<1x8xf32>
    %626 = tpu.matmul %582, %625, %cst_292 {dimension_numbers = #tpu.dot_dimension_numbers<[1], [0], [0], [1], [0, 0, 1, 1], [], []>} : vector<1x8xf32>, vector<8x8xf32>, vector<1x8xf32> -> vector<1x8xf32>
    %cst_293 = arith.constant dense<0.000000e+00> : vector<1x2xf32>
    %627 = tpu.matmul %626, %580, %cst_293 {dimension_numbers = #tpu.dot_dimension_numbers<[1], [0], [0], [1], [0, 0, 1, 1], [], []>} : vector<1x8xf32>, vector<8x2xf32>, vector<1x2xf32> -> vector<1x2xf32>
    %cst_294 = arith.constant 3.125000e-02 : f32
    %628 = vector.broadcast %cst_294 : f32 to vector<1x2xf32>
    %629 = arith.mulf %627, %628 : vector<1x2xf32>
    %cst_295 = arith.constant 9.99999974E-6 : f32
    %630 = vector.broadcast %cst_295 : f32 to vector<1x2xf32>
    %631 = arith.addf %629, %630 : vector<1x2xf32>
    %632 = math.rsqrt %631 : vector<1x2xf32>
    %cst_296 = arith.constant dense<0.000000e+00> : vector<1x8xf32>
    %633 = tpu.matmul %632, %581, %cst_296 {dimension_numbers = #tpu.dot_dimension_numbers<[1], [0], [0], [1], [0, 0, 1, 1], [], []>} : vector<1x2xf32>, vector<2x8xf32>, vector<1x8xf32> -> vector<1x8xf32>
    %634 = vector.broadcast %633 : vector<1x8xf32> to vector<8x8xf32>
    %635 = arith.mulf %624, %634 : vector<8x8xf32>
    %c0_297 = arith.constant 0 : index
    %c0_298 = arith.constant 0 : index
    %636 = vector.load %arg7[%c0_297, %c0_298] : memref<24x128xf32, #tpu.memory_space<vmem>>, vector<8x8xf32>
    tpu.vector_store %arg7[%c0_297, %c0_298], %635 {strides = array<i32>} : memref<24x128xf32, #tpu.memory_space<vmem>>, vector<8x8xf32>,
    %637 = vector.extract_strided_slice %579 {offsets = [8, 0], sizes = [8, 8], strides = [1, 1]} : vector<96x8xf32> to vector<8x8xf32>
    %638 = vector.extract_strided_slice %579 {offsets = [32, 0], sizes = [8, 8], strides = [1, 1]} : vector<96x8xf32> to vector<8x8xf32>
    %639 = arith.addf %637, %638 : vector<8x8xf32>
    %cst_299 = arith.constant 5.000000e-01 : f32
    %640 = vector.broadcast %cst_299 : f32 to vector<8x8xf32>
    %641 = arith.mulf %639, %640 : vector<8x8xf32>
    %642 = arith.subf %637, %641 : vector<8x8xf32>
    %643 = arith.mulf %642, %642 : vector<8x8xf32>
    %644 = arith.subf %638, %641 : vector<8x8xf32>
    %645 = arith.mulf %644, %644 : vector<8x8xf32>
    %646 = arith.addf %643, %645 : vector<8x8xf32>
    %cst_300 = arith.constant 5.000000e-01 : f32
    %647 = vector.broadcast %cst_300 : f32 to vector<8x8xf32>
    %648 = arith.mulf %646, %647 : vector<8x8xf32>
    %cst_301 = arith.constant 1.000000e-30 : f32
    %649 = vector.broadcast %cst_301 : f32 to vector<8x8xf32>
    %650 = arith.addf %648, %649 : vector<8x8xf32>
    %651 = math.rsqrt %650 : vector<8x8xf32>
    %652 = arith.mulf %651, %641 : vector<8x8xf32>
    %653 = vector.extract_strided_slice %579 {offsets = [56, 0], sizes = [8, 8], strides = [1, 1]} : vector<96x8xf32> to vector<8x8xf32>
    %654 = vector.extract_strided_slice %579 {offsets = [80, 0], sizes = [8, 8], strides = [1, 1]} : vector<96x8xf32> to vector<8x8xf32>
    %655 = arith.addf %653, %654 : vector<8x8xf32>
    %cst_302 = arith.constant 5.000000e-01 : f32
    %656 = vector.broadcast %cst_302 : f32 to vector<8x8xf32>
    %657 = arith.mulf %655, %656 : vector<8x8xf32>
    %658 = arith.subf %653, %657 : vector<8x8xf32>
    %659 = arith.mulf %658, %658 : vector<8x8xf32>
    %660 = arith.subf %654, %657 : vector<8x8xf32>
    %661 = arith.mulf %660, %660 : vector<8x8xf32>
    %662 = arith.addf %659, %661 : vector<8x8xf32>
    %cst_303 = arith.constant 5.000000e-01 : f32
    %663 = vector.broadcast %cst_303 : f32 to vector<8x8xf32>
    %664 = arith.mulf %662, %663 : vector<8x8xf32>
    %cst_304 = arith.constant 1.000000e-30 : f32
    %665 = vector.broadcast %cst_304 : f32 to vector<8x8xf32>
    %666 = arith.addf %664, %665 : vector<8x8xf32>
    %667 = math.rsqrt %666 : vector<8x8xf32>
    %668 = arith.addf %651, %667 : vector<8x8xf32>
    %669 = arith.mulf %667, %657 : vector<8x8xf32>
    %670 = arith.addf %652, %669 : vector<8x8xf32>
    %671 = arith.divf %670, %668 : vector<8x8xf32>
    %cst_305 = arith.constant dense<0.000000e+00> : vector<1x8xf32>
    %672 = tpu.matmul %582, %671, %cst_305 {dimension_numbers = #tpu.dot_dimension_numbers<[1], [0], [0], [1], [0, 0, 1, 1], [], []>} : vector<1x8xf32>, vector<8x8xf32>, vector<1x8xf32> -> vector<1x8xf32>
    %cst_306 = arith.constant dense<0.000000e+00> : vector<1x2xf32>
    %673 = tpu.matmul %672, %580, %cst_306 {dimension_numbers = #tpu.dot_dimension_numbers<[1], [0], [0], [1], [0, 0, 1, 1], [], []>} : vector<1x8xf32>, vector<8x2xf32>, vector<1x2xf32> -> vector<1x2xf32>
    %cst_307 = arith.constant 3.125000e-02 : f32
    %674 = vector.broadcast %cst_307 : f32 to vector<1x2xf32>
    %675 = arith.mulf %673, %674 : vector<1x2xf32>
    %cst_308 = arith.constant dense<0.000000e+00> : vector<1x8xf32>
    %676 = tpu.matmul %675, %581, %cst_308 {dimension_numbers = #tpu.dot_dimension_numbers<[1], [0], [0], [1], [0, 0, 1, 1], [], []>} : vector<1x2xf32>, vector<2x8xf32>, vector<1x8xf32> -> vector<1x8xf32>
    %677 = vector.broadcast %676 : vector<1x8xf32> to vector<8x8xf32>
    %678 = arith.subf %671, %677 : vector<8x8xf32>
    %679 = arith.mulf %678, %678 : vector<8x8xf32>
    %cst_309 = arith.constant dense<0.000000e+00> : vector<1x8xf32>
    %680 = tpu.matmul %582, %679, %cst_309 {dimension_numbers = #tpu.dot_dimension_numbers<[1], [0], [0], [1], [0, 0, 1, 1], [], []>} : vector<1x8xf32>, vector<8x8xf32>, vector<1x8xf32> -> vector<1x8xf32>
    %cst_310 = arith.constant dense<0.000000e+00> : vector<1x2xf32>
    %681 = tpu.matmul %680, %580, %cst_310 {dimension_numbers = #tpu.dot_dimension_numbers<[1], [0], [0], [1], [0, 0, 1, 1], [], []>} : vector<1x8xf32>, vector<8x2xf32>, vector<1x2xf32> -> vector<1x2xf32>
    %cst_311 = arith.constant 3.125000e-02 : f32
    %682 = vector.broadcast %cst_311 : f32 to vector<1x2xf32>
    %683 = arith.mulf %681, %682 : vector<1x2xf32>
    %cst_312 = arith.constant 9.99999974E-6 : f32
    %684 = vector.broadcast %cst_312 : f32 to vector<1x2xf32>
    %685 = arith.addf %683, %684 : vector<1x2xf32>
    %686 = math.rsqrt %685 : vector<1x2xf32>
    %cst_313 = arith.constant dense<0.000000e+00> : vector<1x8xf32>
    %687 = tpu.matmul %686, %581, %cst_313 {dimension_numbers = #tpu.dot_dimension_numbers<[1], [0], [0], [1], [0, 0, 1, 1], [], []>} : vector<1x2xf32>, vector<2x8xf32>, vector<1x8xf32> -> vector<1x8xf32>
    %688 = vector.broadcast %687 : vector<1x8xf32> to vector<8x8xf32>
    %689 = arith.mulf %678, %688 : vector<8x8xf32>
    %c8_314 = arith.constant 8 : index
    %c0_315 = arith.constant 0 : index
    %690 = vector.load %arg7[%c8_314, %c0_315] : memref<24x128xf32, #tpu.memory_space<vmem>>, vector<8x8xf32>
    tpu.vector_store %arg7[%c8_314, %c0_315], %689 {strides = array<i32>} : memref<24x128xf32, #tpu.memory_space<vmem>>, vector<8x8xf32>,
    %691 = vector.extract_strided_slice %579 {offsets = [16, 0], sizes = [8, 8], strides = [1, 1]} : vector<96x8xf32> to vector<8x8xf32>
    %692 = vector.extract_strided_slice %579 {offsets = [40, 0], sizes = [8, 8], strides = [1, 1]} : vector<96x8xf32> to vector<8x8xf32>
    %693 = arith.addf %691, %692 : vector<8x8xf32>
    %cst_316 = arith.constant 5.000000e-01 : f32
    %694 = vector.broadcast %cst_316 : f32 to vector<8x8xf32>
    %695 = arith.mulf %693, %694 : vector<8x8xf32>
    %696 = arith.subf %691, %695 : vector<8x8xf32>
    %697 = arith.mulf %696, %696 : vector<8x8xf32>
    %698 = arith.subf %692, %695 : vector<8x8xf32>
    %699 = arith.mulf %698, %698 : vector<8x8xf32>
    %700 = arith.addf %697, %699 : vector<8x8xf32>
    %cst_317 = arith.constant 5.000000e-01 : f32
    %701 = vector.broadcast %cst_317 : f32 to vector<8x8xf32>
    %702 = arith.mulf %700, %701 : vector<8x8xf32>
    %cst_318 = arith.constant 1.000000e-30 : f32
    %703 = vector.broadcast %cst_318 : f32 to vector<8x8xf32>
    %704 = arith.addf %702, %703 : vector<8x8xf32>
    %705 = math.rsqrt %704 : vector<8x8xf32>
    %706 = arith.mulf %705, %695 : vector<8x8xf32>
    %707 = vector.extract_strided_slice %579 {offsets = [64, 0], sizes = [8, 8], strides = [1, 1]} : vector<96x8xf32> to vector<8x8xf32>
    %708 = vector.extract_strided_slice %579 {offsets = [88, 0], sizes = [8, 8], strides = [1, 1]} : vector<96x8xf32> to vector<8x8xf32>
    %709 = arith.addf %707, %708 : vector<8x8xf32>
    %cst_319 = arith.constant 5.000000e-01 : f32
    %710 = vector.broadcast %cst_319 : f32 to vector<8x8xf32>
    %711 = arith.mulf %709, %710 : vector<8x8xf32>
    %712 = arith.subf %707, %711 : vector<8x8xf32>
    %713 = arith.mulf %712, %712 : vector<8x8xf32>
    %714 = arith.subf %708, %711 : vector<8x8xf32>
    %715 = arith.mulf %714, %714 : vector<8x8xf32>
    %716 = arith.addf %713, %715 : vector<8x8xf32>
    %cst_320 = arith.constant 5.000000e-01 : f32
    %717 = vector.broadcast %cst_320 : f32 to vector<8x8xf32>
    %718 = arith.mulf %716, %717 : vector<8x8xf32>
    %cst_321 = arith.constant 1.000000e-30 : f32
    %719 = vector.broadcast %cst_321 : f32 to vector<8x8xf32>
    %720 = arith.addf %718, %719 : vector<8x8xf32>
    %721 = math.rsqrt %720 : vector<8x8xf32>
    %722 = arith.addf %705, %721 : vector<8x8xf32>
    %723 = arith.mulf %721, %711 : vector<8x8xf32>
    %724 = arith.addf %706, %723 : vector<8x8xf32>
    %725 = arith.divf %724, %722 : vector<8x8xf32>
    %cst_322 = arith.constant dense<0.000000e+00> : vector<1x8xf32>
    %726 = tpu.matmul %582, %725, %cst_322 {dimension_numbers = #tpu.dot_dimension_numbers<[1], [0], [0], [1], [0, 0, 1, 1], [], []>} : vector<1x8xf32>, vector<8x8xf32>, vector<1x8xf32> -> vector<1x8xf32>
    %cst_323 = arith.constant dense<0.000000e+00> : vector<1x2xf32>
    %727 = tpu.matmul %726, %580, %cst_323 {dimension_numbers = #tpu.dot_dimension_numbers<[1], [0], [0], [1], [0, 0, 1, 1], [], []>} : vector<1x8xf32>, vector<8x2xf32>, vector<1x2xf32> -> vector<1x2xf32>
    %cst_324 = arith.constant 3.125000e-02 : f32
    %728 = vector.broadcast %cst_324 : f32 to vector<1x2xf32>
    %729 = arith.mulf %727, %728 : vector<1x2xf32>
    %cst_325 = arith.constant dense<0.000000e+00> : vector<1x8xf32>
    %730 = tpu.matmul %729, %581, %cst_325 {dimension_numbers = #tpu.dot_dimension_numbers<[1], [0], [0], [1], [0, 0, 1, 1], [], []>} : vector<1x2xf32>, vector<2x8xf32>, vector<1x8xf32> -> vector<1x8xf32>
    %731 = vector.broadcast %730 : vector<1x8xf32> to vector<8x8xf32>
    %732 = arith.subf %725, %731 : vector<8x8xf32>
    %733 = arith.mulf %732, %732 : vector<8x8xf32>
    %cst_326 = arith.constant dense<0.000000e+00> : vector<1x8xf32>
    %734 = tpu.matmul %582, %733, %cst_326 {dimension_numbers = #tpu.dot_dimension_numbers<[1], [0], [0], [1], [0, 0, 1, 1], [], []>} : vector<1x8xf32>, vector<8x8xf32>, vector<1x8xf32> -> vector<1x8xf32>
    %cst_327 = arith.constant dense<0.000000e+00> : vector<1x2xf32>
    %735 = tpu.matmul %734, %580, %cst_327 {dimension_numbers = #tpu.dot_dimension_numbers<[1], [0], [0], [1], [0, 0, 1, 1], [], []>} : vector<1x8xf32>, vector<8x2xf32>, vector<1x2xf32> -> vector<1x2xf32>
    %cst_328 = arith.constant 3.125000e-02 : f32
    %736 = vector.broadcast %cst_328 : f32 to vector<1x2xf32>
    %737 = arith.mulf %735, %736 : vector<1x2xf32>
    %cst_329 = arith.constant 9.99999974E-6 : f32
    %738 = vector.broadcast %cst_329 : f32 to vector<1x2xf32>
    %739 = arith.addf %737, %738 : vector<1x2xf32>
    %740 = math.rsqrt %739 : vector<1x2xf32>
    %cst_330 = arith.constant dense<0.000000e+00> : vector<1x8xf32>
    %741 = tpu.matmul %740, %581, %cst_330 {dimension_numbers = #tpu.dot_dimension_numbers<[1], [0], [0], [1], [0, 0, 1, 1], [], []>} : vector<1x2xf32>, vector<2x8xf32>, vector<1x8xf32> -> vector<1x8xf32>
    %742 = vector.broadcast %741 : vector<1x8xf32> to vector<8x8xf32>
    %743 = arith.mulf %732, %742 : vector<8x8xf32>
    %c16_331 = arith.constant 16 : index
    %c0_332 = arith.constant 0 : index
    %744 = vector.load %arg7[%c16_331, %c0_332] : memref<24x128xf32, #tpu.memory_space<vmem>>, vector<8x8xf32>
    tpu.vector_store %arg7[%c16_331, %c0_332], %743 {strides = array<i32>} : memref<24x128xf32, #tpu.memory_space<vmem>>, vector<8x8xf32>,
    %c0_333 = arith.constant 0 : index
    %c0_334 = arith.constant 0 : index
    %745 = vector.load %arg7[%c0_333, %c0_334] : memref<24x128xf32, #tpu.memory_space<vmem>>, vector<24x8xf32>
    %c600 = arith.constant 600 : index
    %c0_335 = arith.constant 0 : index
    %746 = vector.load %arg4[%c600, %c0_335] : memref<640x128xf32, #tpu.memory_space<vmem>>, vector<24x8xf32>
    %c624 = arith.constant 624 : index
    %c0_336 = arith.constant 0 : index
    %747 = vector.load %arg4[%c624, %c0_336] : memref<640x128xf32, #tpu.memory_space<vmem>>, vector<3x24xf32>
    %c632 = arith.constant 632 : index
    %c0_337 = arith.constant 0 : index
    %748 = vector.load %arg4[%c632, %c0_337] : memref<640x128xf32, #tpu.memory_space<vmem>>, vector<1x1xf32>
    %c584_338 = arith.constant 584 : index
    %c0_339 = arith.constant 0 : index
    %749 = vector.load %arg4[%c584_338, %c0_339] : memref<640x128xf32, #tpu.memory_space<vmem>>, vector<8x2xf32>
    %750 = arith.mulf %745, %746 : vector<24x8xf32>
    %cst_340 = arith.constant dense<0.000000e+00> : vector<3x8xf32>
    %751 = tpu.matmul %747, %750, %cst_340 {dimension_numbers = #tpu.dot_dimension_numbers<[1], [0], [0], [1], [0, 0, 1, 1], [], []>} : vector<3x24xf32>, vector<24x8xf32>, vector<3x8xf32> -> vector<3x8xf32>
    %cst_341 = arith.constant dense<0.000000e+00> : vector<3x2xf32>
    %752 = tpu.matmul %751, %749, %cst_341 {dimension_numbers = #tpu.dot_dimension_numbers<[1], [0], [0], [1], [0, 0, 1, 1], [], []>} : vector<3x8xf32>, vector<8x2xf32>, vector<3x2xf32> -> vector<3x2xf32>
    %753 = vector.broadcast %748 : vector<1x1xf32> to vector<3x2xf32>
    %754 = arith.addf %752, %753 : vector<3x2xf32>
    %c0_342 = arith.constant 0 : index
    %c0_343 = arith.constant 0 : index
    %c0_344 = arith.constant 0 : index
    %755 = vector.load %arg5[%c0_342, %c0_343, %c0_344] : memref<1x3x2xf32, #tpu.memory_space<vmem>>, vector<1x3x2xf32>
    %756 = vector.shape_cast %755 : vector<1x3x2xf32> to vector<3x2xf32>
    %757 = vector.shape_cast %754 : vector<3x2xf32> to vector<1x3x2xf32>
    tpu.vector_store %arg5[%c0_342, %c0_343, %c0_344], %757 {strides = array<i32>} : memref<1x3x2xf32, #tpu.memory_space<vmem>>, vector<1x3x2xf32>,
    return
  }
  func.func @transform_0(%arg0: i32) -> (i32, i32, i32) {
    %c0_i32 = arith.constant 0 : i32
    %c0_i32_0 = arith.constant 0 : i32
    %c0_i32_1 = arith.constant 0 : i32
    return %arg0, %c0_i32, %c0_i32_0 : i32, i32, i32
  }
  func.func @transform_1(%arg0: i32) -> (i32, i32) {
    %c0_i32 = arith.constant 0 : i32
    %c0_i32_0 = arith.constant 0 : i32
    %c0_i32_1 = arith.constant 0 : i32
    return %c0_i32, %c0_i32_0 : i32, i32
  }
  func.func @transform_2(%arg0: i32) -> (i32, i32) {
    %c0_i32 = arith.constant 0 : i32
    %c0_i32_0 = arith.constant 0 : i32
    %c0_i32_1 = arith.constant 0 : i32
    return %c0_i32, %c0_i32_0 : i32, i32
  }
  func.func @transform_3(%arg0: i32) -> (i32, i32) {
    %c0_i32 = arith.constant 0 : i32
    %c0_i32_0 = arith.constant 0 : i32
    %c0_i32_1 = arith.constant 0 : i32
    return %c0_i32, %c0_i32_0 : i32, i32
  }
  func.func @transform_4(%arg0: i32) -> (i32, i32, i32) {
    %c0_i32 = arith.constant 0 : i32
    %c0_i32_0 = arith.constant 0 : i32
    %c0_i32_1 = arith.constant 0 : i32
    return %arg0, %c0_i32, %c0_i32_0 : i32, i32, i32
  }
}

</mosaic_0001>

<llo_original>
// kernel: tpu_custom_call.1
$region0: #{tpu_custom_call.1}
  #allocation0 [shape = 'u32[]', space=smem, size = 0x4, offset = 0x4, fixed_abs, tag = 'smem constant byte address 0x4 - core index']
  #allocation1 [shape = 'u32[72,128]{1,0:T(1,128)}', space=vmem, size = 0x9000, scoped, tag = 'internal scratch']
  #allocation2 [shape = 'f32[144,128]{1,0:T(8,128)}', space=vmem, size = 0x12000, scoped, tag = 'scratch operand']
  #allocation3 [shape = 'f32[24,128]{1,0:T(8,128)}', space=vmem, size = 0x3000, scoped, tag = 'scratch operand']
  %s0 = inlined_call_operand.hbm [shape: f32[2,8,128], index: 0, kind: input, shape index: {}]
  %s1 = inlined_call_operand.hbm [shape: f32[328,1152], index: 1, kind: input, shape index: {}]
  %s2 = inlined_call_operand.vmem [shape: f32[352,144], index: 2, kind: input, shape index: {}]
  %s3 = inlined_call_operand.hbm [shape: f32[640,128], index: 3, kind: input, shape index: {}]
  %s4 = inlined_call_operand.vmem [shape: f32[2,3,2], index: 4, kind: output, shape index: {}]
  %s5 = sld [smem:[#allocation0]]
  $region61: #{tpu_custom_call.1} parent=0
    _
  %s7 = ssub.s32 1, %s5
  %s8 = scalar_select 0, %s7, %s5
  $region1: #{tpu_custom_call.1} parent=0
    #allocation4 [shape = 'u8[8192]{0}', space=vmem, size = 0x2000, scoped, tag = 'input window, operand 0']
    #allocation5 [shape = 's32[2]{0}', space=sflag, size = 0x8, scoped, tag = 'scoped memory for tpu_custom_call.1']
    #allocation6 [shape = 'u8[1511424]{0}', space=vmem, size = 0x171000, scoped, tag = 'input window, operand 1, single buffered']
    #allocation7 [shape = 's32[1]{0}', space=sflag, size = 0x4, scoped, tag = 'scoped memory for tpu_custom_call.1']
    #allocation8 [shape = 'u8[327680]{0}', space=vmem, size = 0x50000, scoped, tag = 'input window, operand 3, single buffered']
    %9 = vsyncpa [#allocation5], 0
    %s10 = scalar_lea.sflag [#allocation5], 1
    %11 = vsyncpa %s10, 0
    %12 = vsyncpa [#allocation7], 0
    loop: start=0, step=1, limit=4
    $region2: #{tpu_custom_call.1} parent=1 // loop_pre_header
      _
    $region3: #{tpu_custom_call.1} parent=1 // loop_header
      %s14 = sphi 0, %s18
      %p15 = scmp.ge.s32.totalorder %s14, 4
      %s24 = sphi 0, %s26
      %s27 = sphi 0, %s24
      %s28 = sphi 0, %s27
      %s44 = sphi 0, %s28
      %s48 = sphi 0, %s48
      %s50 = sphi 0, %s48
      %s51 = sphi 0, %s50
      %s65 = sphi 0, %s51
      %s69 = sphi 0, %s69
      %s71 = sphi 0, %s69
      %s72 = sphi 0, %s71
      %s86 = sphi 0, %s72
      %s90 = sphi 0, %s90
      %s92 = sphi 0, %s90
      %s93 = sphi 0, %s92
      %s107 = sphi 0, %s93
      %s113 = sphi 0, %s115
      %s116 = sphi 0, %s113
      %s117 = sphi 0, %s116
      %s133 = sphi 0, %s117
    $region4: #{tpu_custom_call.1} parent=1 // loop_header_branch
      %17 = sbr.rel (%p15) target = $region8
    $region5: #{tpu_custom_call.1} parent=1 // loop_body
      %s19 = ssub.s32 %s14, 1
      %s20 = ssub.s32 %s14, 2
      %s21 = sadd.s32 %s14, 1
      %s22 = ssub.s32 %s14, %s21
      %p23 = scmp.eq.s32.totalorder %s22, 0
      %s25 = sadd.s32 %s24, 1
      %s26 = scalar_select %p23, %s24, %s25
      %p29 = pneg %p23
      %p30 = scmp.eq.s32.totalorder %s14, 1
      %p31 = por %p29, %p30
      %p32 = scmp.ne.s32.totalorder %s24, %s27
      %p33 = scmp.eq.s32.totalorder %s14, 0
      %p34 = por %p32, %p33
      %p35 = scmp.ne.s32.totalorder %s24, %s27
      %p36 = scmp.eq.s32.totalorder %s19, 1
      %p37 = por %p35, %p36
      %p38 = scmp.ne.s32.totalorder %s27, %s28
      %p39 = scmp.eq.s32.totalorder %s19, 0
      %p40 = por %p38, %p39
      %p41 = scmp.ne.s32.totalorder %s27, %s28
      %p42 = scmp.eq.s32.totalorder %s20, 1
      %p43 = por %p41, %p42
      %p45 = scmp.ne.s32.totalorder %s28, %s44
      %p46 = scmp.eq.s32.totalorder %s20, 0
      %p47 = por %p45, %p46
      %s49 = sadd.s32 %s48, 1
      %p52 = scmp.eq.s32.totalorder %s14, 1
      %p53 = scmp.ne.s32.totalorder %s48, %s50
      %p54 = scmp.eq.s32.totalorder %s14, 0
      %p55 = por %p53, %p54
      %p56 = scmp.ne.s32.totalorder %s48, %s50
      %p57 = scmp.eq.s32.totalorder %s19, 1
      %p58 = por %p56, %p57
      %p59 = scmp.ne.s32.totalorder %s50, %s51
      %p60 = scmp.eq.s32.totalorder %s19, 0
      %p61 = por %p59, %p60
      %p62 = scmp.ne.s32.totalorder %s50, %s51
      %p63 = scmp.eq.s32.totalorder %s20, 1
      %p64 = por %p62, %p63
      %p66 = scmp.ne.s32.totalorder %s51, %s65
      %p67 = scmp.eq.s32.totalorder %s20, 0
      %p68 = por %p66, %p67
      %s70 = sadd.s32 %s69, 1
      %p73 = scmp.eq.s32.totalorder %s14, 1
      %p74 = scmp.ne.s32.totalorder %s69, %s71
      %p75 = scmp.eq.s32.totalorder %s14, 0
      %p76 = por %p74, %p75
      %p77 = scmp.ne.s32.totalorder %s69, %s71
      %p78 = scmp.eq.s32.totalorder %s19, 1
      %p79 = por %p77, %p78
      %p80 = scmp.ne.s32.totalorder %s71, %s72
      %p81 = scmp.eq.s32.totalorder %s19, 0
      %p82 = por %p80, %p81
      %p83 = scmp.ne.s32.totalorder %s71, %s72
      %p84 = scmp.eq.s32.totalorder %s20, 1
      %p85 = por %p83, %p84
      %p87 = scmp.ne.s32.totalorder %s72, %s86
      %p88 = scmp.eq.s32.totalorder %s20, 0
      %p89 = por %p87, %p88
      %s91 = sadd.s32 %s90, 1
      %p94 = scmp.eq.s32.totalorder %s14, 1
      %p95 = scmp.ne.s32.totalorder %s90, %s92
      %p96 = scmp.eq.s32.totalorder %s14, 0
      %p97 = por %p95, %p96
      %p98 = scmp.ne.s32.totalorder %s90, %s92
      %p99 = scmp.eq.s32.totalorder %s19, 1
      %p100 = por %p98, %p99
      %p101 = scmp.ne.s32.totalorder %s92, %s93
      %p102 = scmp.eq.s32.totalorder %s19, 0
      %p103 = por %p101, %p102
      %p104 = scmp.ne.s32.totalorder %s92, %s93
      %p105 = scmp.eq.s32.totalorder %s20, 1
      %p106 = por %p104, %p105
      %p108 = scmp.ne.s32.totalorder %s93, %s107
      %p109 = scmp.eq.s32.totalorder %s20, 0
      %p110 = por %p108, %p109
      %s111 = ssub.s32 %s14, %s21
      %p112 = scmp.eq.s32.totalorder %s111, 0
      %s114 = sadd.s32 %s113, 1
      %s115 = scalar_select %p112, %s113, %s114
      %p118 = pneg %p112
      %p119 = scmp.eq.s32.totalorder %s14, 1
      %p120 = por %p118, %p119
      %p121 = scmp.ne.s32.totalorder %s113, %s116
      %p122 = scmp.eq.s32.totalorder %s14, 0
      %p123 = por %p121, %p122
      %p124 = scmp.ne.s32.totalorder %s113, %s116
      %p125 = scmp.eq.s32.totalorder %s19, 1
      %p126 = por %p124, %p125
      %p127 = scmp.ne.s32.totalorder %s116, %s117
      %p128 = scmp.eq.s32.totalorder %s19, 0
      %p129 = por %p127, %p128
      %p130 = scmp.ne.s32.totalorder %s116, %s117
      %p131 = scmp.eq.s32.totalorder %s20, 1
      %p132 = por %p130, %p131
      %p134 = scmp.ne.s32.totalorder %s117, %s133
      %p135 = scmp.eq.s32.totalorder %s20, 0
      %p136 = por %p134, %p135
      %p137 = scmp.le.s32.totalorder 1, %s14
      %p138 = scmp.lt.s32.totalorder %s14, 3
      %p139 = pnand %p137, %p138
      %p140 = pneg %p139
      // Predicated region
      $region9: #{tpu_custom_call.1} parent=5 // pred_check
        _
      $region10: #{tpu_custom_call.1} parent=5 // pred_check_branch
        %142 = sbr.rel (%p139) target = $region12
      $region11: #{tpu_custom_call.1} parent=5 // pred_region
        %s143 = ssub.s32 %s14, 1
        // Predicated region
        $region13: #{tpu_custom_call.1} parent=11 // pred_check
          %p144 = pneg %p61
        $region14: #{tpu_custom_call.1} parent=11 // pred_check_branch
          %146 = sbr.rel (%p144) target = $region16
        $region15: #{tpu_custom_call.1} parent=11 // pred_region
          %148 = vsyncadd [#allocation7], 0
          %s149 = sshll.u32 %s1, 4
          %s150 = int_to_ptr.hbm [resolvable:$true] %s149
          %s151 = sshll.u32 [#allocation6], 4
          %s152 = int_to_ptr.vmem [resolvable:$true] %s151
          %157 = dma.hbm_to_vmem [thread:$0]  %s150, 47232, %s152, [#allocation7], 1152, 1152, 72
        $region16: #{tpu_custom_call.1} parent=11 // pred_fallthru
          _
        // Predicated region
        $region17: #{tpu_custom_call.1} parent=11 // pred_check
          %p158 = pneg %p82
        $region18: #{tpu_custom_call.1} parent=11 // pred_check_branch
          %160 = sbr.rel (%p158) target = $region20
        $region19: #{tpu_custom_call.1} parent=11 // pred_region
          _
        $region20: #{tpu_custom_call.1} parent=11 // pred_fallthru
          _
        // Predicated region
        $region21: #{tpu_custom_call.1} parent=11 // pred_check
          %p161 = pneg %p103
        $region22: #{tpu_custom_call.1} parent=11 // pred_check_branch
          %163 = sbr.rel (%p161) target = $region24
        $region23: #{tpu_custom_call.1} parent=11 // pred_region
          %165 = vsyncadd [#allocation7], 0
          %s166 = sshll.u32 %s3, 4
          %s167 = int_to_ptr.hbm [resolvable:$true] %s166
          %s168 = sshll.u32 [#allocation8], 4
          %s169 = int_to_ptr.vmem [resolvable:$true] %s168
          %174 = dma.hbm_to_vmem [thread:$0]  %s167, 10240, %s169, [#allocation7], 128, 128, 8
        $region24: #{tpu_custom_call.1} parent=11 // pred_fallthru
          _
      $region12: #{tpu_custom_call.1} parent=5 // pred_fallthru
        _
      %p175 = scmp.lt.s32.totalorder %s14, 2
      // Predicated region
      $region25: #{tpu_custom_call.1} parent=5 // pred_check
        %p176 = pneg %p175
      $region26: #{tpu_custom_call.1} parent=5 // pred_check_branch
        %178 = sbr.rel (%p176) target = $region28
      $region27: #{tpu_custom_call.1} parent=5 // pred_region
        // Predicated region
        $region29: #{tpu_custom_call.1} parent=27 // pred_check
          %p179 = pneg %p34
        $region30: #{tpu_custom_call.1} parent=27 // pred_check_branch
          %181 = sbr.rel (%p179) target = $region32
        $region31: #{tpu_custom_call.1} parent=27 // pred_region
          %s182 = sand.u32 %s24, 1
          %s183 = scalar_lea.sflag [#allocation5], %s182
          %s184 = sand.u32 %s24, 1
          %s185 = smul.addr %s184, 8
          %s186 = scalar_lea.vmem [#allocation4], %s185
          %188 = vsyncadd %s183, 0
          %s189 = smul.addr %s14, 8
          %s190 = scalar_lea.hbm %s0, %s189
          %s192 = sshll.u32 %s190, 4
          %s193 = int_to_ptr.hbm [resolvable:$true] %s192
          %s194 = sshll.u32 %s186, 4
          %s195 = int_to_ptr.vmem [resolvable:$true] %s194
          %197 = dma.hbm_to_vmem [thread:$0]  %s193, 128, %s195, %s183
        $region32: #{tpu_custom_call.1} parent=27 // pred_fallthru
          _
      $region28: #{tpu_custom_call.1} parent=5 // pred_fallthru
        _
      %p198 = scmp.le.s32.totalorder 1, %s14
      %p199 = scmp.lt.s32.totalorder %s14, 3
      %p200 = pnand %p198, %p199
      %p201 = pneg %p200
      // Predicated region
      $region33: #{tpu_custom_call.1} parent=5 // pred_check
        _
      $region34: #{tpu_custom_call.1} parent=5 // pred_check_branch
        %203 = sbr.rel (%p200) target = $region36
      $region35: #{tpu_custom_call.1} parent=5 // pred_region
        %s204 = ssub.s32 %s14, 1
        %s205 = sand.u32 %s27, 1
        %s206 = scalar_lea.sflag [#allocation5], %s205
        %s207 = sand.u32 %s27, 1
        %s208 = smul.addr %s207, 8
        %s209 = scalar_lea.vmem [#allocation4], %s208
        // Predicated region
        $region37: #{tpu_custom_call.1} parent=35 // pred_check
          %p210 = pneg %p40
        $region38: #{tpu_custom_call.1} parent=35 // pred_check_branch
          %212 = sbr.rel (%p210) target = $region40
        $region39: #{tpu_custom_call.1} parent=35 // pred_region
          %214 = dma.done %s206, 128
        $region40: #{tpu_custom_call.1} parent=35 // pred_fallthru
          _
        // Predicated region
        $region41: #{tpu_custom_call.1} parent=35 // pred_check
          %p215 = pneg %p61
        $region42: #{tpu_custom_call.1} parent=35 // pred_check_branch
          %217 = sbr.rel (%p215) target = $region44
        $region43: #{tpu_custom_call.1} parent=35 // pred_region
          %219 = dma.done [#allocation7], 47232
        $region44: #{tpu_custom_call.1} parent=35 // pred_fallthru
          _
        // Predicated region
        $region45: #{tpu_custom_call.1} parent=35 // pred_check
          %p220 = pneg %p103
        $region46: #{tpu_custom_call.1} parent=35 // pred_check_branch
          %222 = sbr.rel (%p220) target = $region48
        $region47: #{tpu_custom_call.1} parent=35 // pred_region
          %224 = dma.done [#allocation7], 10240
        $region48: #{tpu_custom_call.1} parent=35 // pred_fallthru
          _
        %s225 = sand.u32 %s27, 1
        %s226 = scalar_lea.sflag [#allocation5], %s225
        %s227 = sand.u32 %s27, 1
        %s228 = smul.addr %s227, 8
        %s229 = scalar_lea.vmem [#allocation4], %s228
        %p230 = pneg %p40
        %p231 = pneg %p37
        %p232 = pneg %p61
        %p233 = pneg %p58
        %p234 = pneg %p82
        %p235 = pneg %p79
        %p236 = pneg %p103
        %p237 = pneg %p100
        %p238 = pneg %p129
        %p239 = pneg %p126
        %p240 = scmp.lt.s32.totalorder %s19, 1
        %s241 = scalar_select %p240, %s19, 1
        %s242 = smul.addr %s241, 4
        %s243 = scalar_lea.vmem %s4, %s242
        %p244 = scmp.lt.s32.totalorder %s19, 1
        %s245 = scalar_select %p244, %s19, 1
        %s246 = smul.addr %s245, 4
        %s247 = scalar_lea.vmem %s4, %s246
        %v248 = vld [vmem:[%s209] sm:$0xff]
        %v249 = vld [vmem:[#allocation6] sm:$0xff]
        %v250 = vld [vmem:[#allocation6 + $0x8] sm:$0xff]
        %v251 = vld [vmem:[#allocation6 + $0x10] sm:$0xff]
        %v252 = vld [vmem:[#allocation6 + $0x18] sm:$0xff]
        %v253 = vld [vmem:[#allocation6 + $0x20] sm:$0xff]
        %v254 = vld [vmem:[#allocation6 + $0x28] sm:$0xff]
        %v255 = vld [vmem:[#allocation6 + $0x30] sm:$0xff]
        %v256 = vld [vmem:[#allocation6 + $0x38] sm:$0xff]
        %v257 = vld [vmem:[#allocation6 + $0x40] sm:$0xff]
        %v258 = vld [vmem:[#allocation6 + $0x48] sm:$0xff]
        %v259 = vld [vmem:[#allocation6 + $0x50] sm:$0xff]
        %v260 = vld [vmem:[#allocation6 + $0x58] sm:$0xff]
        %v261 = vld [vmem:[#allocation6 + $0x60] sm:$0xff]
        %v262 = vld [vmem:[#allocation6 + $0x68] sm:$0xff]
        %v263 = vld [vmem:[#allocation6 + $0x70] sm:$0xff]
        %v264 = vld [vmem:[#allocation6 + $0x78] sm:$0xff]
        %v265 = vld [vmem:[#allocation6 + $0x80] sm:$0xff]
        %v266 = vld [vmem:[#allocation6 + $0x88] sm:$0xff]
        %v267 = vld [vmem:[#allocation6 + $0x90] sm:$0xff]
        %v268 = vld [vmem:[#allocation6 + $0x98] sm:$0xff]
        %v269 = vld [vmem:[#allocation6 + $0xa0] sm:$0xff]
        %v270 = vld [vmem:[#allocation6 + $0xa8] sm:$0xff]
        %v271 = vld [vmem:[#allocation6 + $0xb0] sm:$0xff]
        %v272 = vld [vmem:[#allocation6 + $0xb8] sm:$0xff]
        %v273 = vld [vmem:[#allocation6 + $0xc0] sm:$0xff]
        %v274 = vld [vmem:[#allocation6 + $0xc8] sm:$0xff]
        %v275 = vld [vmem:[#allocation6 + $0xd0] sm:$0xff]
        %v276 = vld [vmem:[#allocation6 + $0xd8] sm:$0xff]
        %v277 = vld [vmem:[#allocation6 + $0xe0] sm:$0xff]
        %v278 = vld [vmem:[#allocation6 + $0xe8] sm:$0xff]
        %v279 = vld [vmem:[#allocation6 + $0xf0] sm:$0xff]
        %v280 = vld [vmem:[#allocation6 + $0xf8] sm:$0xff]
        %v281 = vld [vmem:[#allocation6 + $0x100] sm:$0xff]
        %v282 = vld [vmem:[#allocation6 + $0x108] sm:$0xff]
        %v283 = vld [vmem:[#allocation6 + $0x110] sm:$0xff]
        %v284 = vld [vmem:[#allocation6 + $0x118] sm:$0xff]
        %v285 = vld [vmem:[#allocation6 + $0x120] sm:$0xff]
        %v286 = vld [vmem:[#allocation6 + $0x128] sm:$0xff]
        %v287 = vld [vmem:[#allocation6 + $0x130] sm:$0xff]
        %v288 = vld [vmem:[#allocation6 + $0x138] sm:$0xff]
        %v289 = vld [vmem:[#allocation6 + $0x140] sm:$0xff]
        %v290 = vld [vmem:[#allocation6 + $0x148] sm:$0xff]
        %v291 = vld [vmem:[#allocation6 + $0x150] sm:$0xff]
        %v292 = vld [vmem:[#allocation6 + $0x158] sm:$0xff]
        %v293 = vld [vmem:[#allocation6 + $0x160] sm:$0xff]
        %v294 = vld [vmem:[#allocation6 + $0x168] sm:$0xff]
        %v295 = vld [vmem:[#allocation6 + $0x170] sm:$0xff]
        %v296 = vld [vmem:[#allocation6 + $0x178] sm:$0xff]
        %v297 = vld [vmem:[#allocation6 + $0x180] sm:$0xff]
        %v298 = vld [vmem:[#allocation6 + $0x188] sm:$0xff]
        %v299 = vld [vmem:[#allocation6 + $0x190] sm:$0xff]
        %v300 = vld [vmem:[#allocation6 + $0x198] sm:$0xff]
        %v301 = vld [vmem:[#allocation6 + $0x1a0] sm:$0xff]
        %v302 = vld [vmem:[#allocation6 + $0x1a8] sm:$0xff]
        %v303 = vld [vmem:[#allocation6 + $0x1b0] sm:$0xff]
        %v304 = vld [vmem:[#allocation6 + $0x1b8] sm:$0xff]
        %v305 = vld [vmem:[#allocation6 + $0x1c0] sm:$0xff]
        %v306 = vld [vmem:[#allocation6 + $0x1c8] sm:$0xff]
        %v307 = vld [vmem:[#allocation6 + $0x1d0] sm:$0xff]
        %v308 = vld [vmem:[#allocation6 + $0x1d8] sm:$0xff]
        %v309 = vld [vmem:[#allocation6 + $0x1e0] sm:$0xff]
        %v310 = vld [vmem:[#allocation6 + $0x1e8] sm:$0xff]
        %v311 = vld [vmem:[#allocation6 + $0x1f0] sm:$0xff]
        %v312 = vld [vmem:[#allocation6 + $0x1f8] sm:$0xff]
        %v313 = vld [vmem:[#allocation6 + $0x200] sm:$0xff]
        %v314 = vld [vmem:[#allocation6 + $0x208] sm:$0xff]
        %v315 = vld [vmem:[#allocation6 + $0x210] sm:$0xff]
        %v316 = vld [vmem:[#allocation6 + $0x218] sm:$0xff]
        %v317 = vld [vmem:[#allocation6 + $0x220] sm:$0xff]
        %v318 = vld [vmem:[#allocation6 + $0x228] sm:$0xff]
        %v319 = vld [vmem:[#allocation6 + $0x230] sm:$0xff]
        %v320 = vld [vmem:[#allocation6 + $0x238] sm:$0xff]
        %v321 = vld [vmem:[#allocation6 + $0x240] sm:$0xff]
        %v322 = vld [vmem:[#allocation6 + $0x248] sm:$0xff]
        %v323 = vld [vmem:[#allocation6 + $0x250] sm:$0xff]
        %v324 = vld [vmem:[#allocation6 + $0x258] sm:$0xff]
        %v325 = vld [vmem:[#allocation6 + $0x260] sm:$0xff]
        %v326 = vld [vmem:[#allocation6 + $0x268] sm:$0xff]
        %v327 = vld [vmem:[#allocation6 + $0x270] sm:$0xff]
        %v328 = vld [vmem:[#allocation6 + $0x278] sm:$0xff]
        %v329 = vld [vmem:[#allocation6 + $0x280] sm:$0xff]
        %v330 = vld [vmem:[#allocation6 + $0x288] sm:$0xff]
        %v331 = vld [vmem:[#allocation6 + $0x290] sm:$0xff]
        %v332 = vld [vmem:[#allocation6 + $0x298] sm:$0xff]
        %v333 = vld [vmem:[#allocation6 + $0x2a0] sm:$0xff]
        %v334 = vld [vmem:[#allocation6 + $0x2a8] sm:$0xff]
        %v335 = vld [vmem:[#allocation6 + $0x2b0] sm:$0xff]
        %v336 = vld [vmem:[#allocation6 + $0x2b8] sm:$0xff]
        %v337 = vld [vmem:[#allocation6 + $0x2c0] sm:$0xff]
        %v338 = vld [vmem:[#allocation6 + $0x2c8] sm:$0xff]
        %v339 = vld [vmem:[#allocation6 + $0x2d0] sm:$0xff]
        %v340 = vld [vmem:[#allocation6 + $0x2d8] sm:$0xff]
        %v341 = vld [vmem:[#allocation6 + $0x2e0] sm:$0xff]
        %v342 = vld [vmem:[#allocation6 + $0x2e8] sm:$0xff]
        %v343 = vld [vmem:[#allocation6 + $0x2f0] sm:$0xff]
        %v344 = vld [vmem:[#allocation6 + $0x2f8] sm:$0xff]
        %v345 = vld [vmem:[#allocation6 + $0x300] sm:$0xff]
        %v346 = vld [vmem:[#allocation6 + $0x308] sm:$0xff]
        %v347 = vld [vmem:[#allocation6 + $0x310] sm:$0xff]
        %v348 = vld [vmem:[#allocation6 + $0x318] sm:$0xff]
        %v349 = vld [vmem:[#allocation6 + $0x320] sm:$0xff]
        %v350 = vld [vmem:[#allocation6 + $0x328] sm:$0xff]
        %v351 = vld [vmem:[#allocation6 + $0x330] sm:$0xff]
        %v352 = vld [vmem:[#allocation6 + $0x338] sm:$0xff]
        %v353 = vld [vmem:[#allocation6 + $0x340] sm:$0xff]
        %v354 = vld [vmem:[#allocation6 + $0x348] sm:$0xff]
        %v355 = vld [vmem:[#allocation6 + $0x350] sm:$0xff]
        %v356 = vld [vmem:[#allocation6 + $0x358] sm:$0xff]
        %v357 = vld [vmem:[#allocation6 + $0x360] sm:$0xff]
        %v358 = vld [vmem:[#allocation6 + $0x368] sm:$0xff]
        %v359 = vld [vmem:[#allocation6 + $0x370] sm:$0xff]
        %v360 = vld [vmem:[#allocation6 + $0x378] sm:$0xff]
        %v361 = vld [vmem:[#allocation6 + $0x380] sm:$0xff]
        %v362 = vld [vmem:[#allocation6 + $0x388] sm:$0xff]
        %v363 = vld [vmem:[#allocation6 + $0x390] sm:$0xff]
        %v364 = vld [vmem:[#allocation6 + $0x398] sm:$0xff]
        %v365 = vld [vmem:[#allocation6 + $0x3a0] sm:$0xff]
        %v366 = vld [vmem:[#allocation6 + $0x3a8] sm:$0xff]
        %v367 = vld [vmem:[#allocation6 + $0x3b0] sm:$0xff]
        %v368 = vld [vmem:[#allocation6 + $0x3b8] sm:$0xff]
        %v369 = vld [vmem:[#allocation6 + $0x3c0] sm:$0xff]
        %v370 = vld [vmem:[#allocation6 + $0x3c8] sm:$0xff]
        %v371 = vld [vmem:[#allocation6 + $0x3d0] sm:$0xff]
        %v372 = vld [vmem:[#allocation6 + $0x3d8] sm:$0xff]
        %v373 = vld [vmem:[#allocation6 + $0x3e0] sm:$0xff]
        %v374 = vld [vmem:[#allocation6 + $0x3e8] sm:$0xff]
        %v375 = vld [vmem:[#allocation6 + $0x3f0] sm:$0xff]
        %v376 = vld [vmem:[#allocation6 + $0x3f8] sm:$0xff]
        %v377 = vld [vmem:[#allocation6 + $0x400] sm:$0xff]
        %v378 = vld [vmem:[#allocation6 + $0x408] sm:$0xff]
        %v379 = vld [vmem:[#allocation6 + $0x410] sm:$0xff]
        %v380 = vld [vmem:[#allocation6 + $0x418] sm:$0xff]
        %v381 = vld [vmem:[#allocation6 + $0x420] sm:$0xff]
        %v382 = vld [vmem:[#allocation6 + $0x428] sm:$0xff]
        %v383 = vld [vmem:[#allocation6 + $0x430] sm:$0xff]
        %v384 = vld [vmem:[#allocation6 + $0x438] sm:$0xff]
        %v385 = vld [vmem:[#allocation6 + $0x440] sm:$0xff]
        %v386 = vld [vmem:[#allocation6 + $0x448] sm:$0xff]
        %v387 = vld [vmem:[#allocation6 + $0x450] sm:$0xff]
        %v388 = vld [vmem:[#allocation6 + $0x458] sm:$0xff]
        %v389 = vld [vmem:[#allocation6 + $0x460] sm:$0xff]
        %v390 = vld [vmem:[#allocation6 + $0x468] sm:$0xff]
        %v391 = vld [vmem:[#allocation6 + $0x470] sm:$0xff]
        %v392 = vld [vmem:[#allocation6 + $0x478] sm:$0xff]
        %393 = vmatpush.msra.mxu0 %v384
        %394 = vmatpush.msra.mxu0 %v375
        %395 = vmatpush.msra.mxu0 %v366
        %396 = vmatpush.msra.mxu0 %v357
        %397 = vmatpush.msra.mxu0 %v348
        %398 = vmatpush.msra.mxu0 %v339
        %399 = vmatpush.msra.mxu0 %v330
        %400 = vmatpush.msra.mxu0 %v321
        %401 = vmatpush.msra.mxu0 %v312
        %402 = vmatpush.msra.mxu0 %v303
        %403 = vmatpush.msra.mxu0 %v294
        %404 = vmatpush.msra.mxu0 %v285
        %405 = vmatpush.msra.mxu0 %v276
        %406 = vmatpush.msra.mxu0 %v267
        %407 = vmatpush.msra.mxu0 %v258
        %408 = vmatpush.msra.mxu0 %v249
        %409 = vmatmul.f32.gmra.mxu0 %v248
        %v410 = vpop.f32.mrf.mxu0
        %v411 = vadd.f32 0.0, %v410
        %412 = vdwg.mxu0
        %413 = vmatpush.msra.mxu0 %v385
        %414 = vmatpush.msra.mxu0 %v376
        %415 = vmatpush.msra.mxu0 %v367
        %416 = vmatpush.msra.mxu0 %v358
        %417 = vmatpush.msra.mxu0 %v349
        %418 = vmatpush.msra.mxu0 %v340
        %419 = vmatpush.msra.mxu0 %v331
        %420 = vmatpush.msra.mxu0 %v322
        %421 = vmatpush.msra.mxu0 %v313
        %422 = vmatpush.msra.mxu0 %v304
        %423 = vmatpush.msra.mxu0 %v295
        %424 = vmatpush.msra.mxu0 %v286
        %425 = vmatpush.msra.mxu0 %v277
        %426 = vmatpush.msra.mxu0 %v268
        %427 = vmatpush.msra.mxu0 %v259
        %428 = vmatpush.msra.mxu0 %v250
        %429 = vmatmul.f32.gmra.mxu0 %v248
        %v430 = vpop.f32.mrf.mxu0
        %v431 = vadd.f32 0.0, %v430
        %432 = vdwg.mxu0
        %433 = vmatpush.msra.mxu0 %v386
        %434 = vmatpush.msra.mxu0 %v377
        %435 = vmatpush.msra.mxu0 %v368
        %436 = vmatpush.msra.mxu0 %v359
        %437 = vmatpush.msra.mxu0 %v350
        %438 = vmatpush.msra.mxu0 %v341
        %439 = vmatpush.msra.mxu0 %v332
        %440 = vmatpush.msra.mxu0 %v323
        %441 = vmatpush.msra.mxu0 %v314
        %442 = vmatpush.msra.mxu0 %v305
        %443 = vmatpush.msra.mxu0 %v296
        %444 = vmatpush.msra.mxu0 %v287
        %445 = vmatpush.msra.mxu0 %v278
        %446 = vmatpush.msra.mxu0 %v269
        %447 = vmatpush.msra.mxu0 %v260
        %448 = vmatpush.msra.mxu0 %v251
        %449 = vmatmul.f32.gmra.mxu0 %v248
        %v450 = vpop.f32.mrf.mxu0
        %v451 = vadd.f32 0.0, %v450
        %452 = vdwg.mxu0
        %453 = vmatpush.msra.mxu0 %v387
        %454 = vmatpush.msra.mxu0 %v378
        %455 = vmatpush.msra.mxu0 %v369
        %456 = vmatpush.msra.mxu0 %v360
        %457 = vmatpush.msra.mxu0 %v351
        %458 = vmatpush.msra.mxu0 %v342
        %459 = vmatpush.msra.mxu0 %v333
        %460 = vmatpush.msra.mxu0 %v324
        %461 = vmatpush.msra.mxu0 %v315
        %462 = vmatpush.msra.mxu0 %v306
        %463 = vmatpush.msra.mxu0 %v297
        %464 = vmatpush.msra.mxu0 %v288
        %465 = vmatpush.msra.mxu0 %v279
        %466 = vmatpush.msra.mxu0 %v270
        %467 = vmatpush.msra.mxu0 %v261
        %468 = vmatpush.msra.mxu0 %v252
        %469 = vmatmul.f32.gmra.mxu0 %v248
        %v470 = vpop.f32.mrf.mxu0
        %v471 = vadd.f32 0.0, %v470
        %472 = vdwg.mxu0
        %473 = vmatpush.msra.mxu0 %v388
        %474 = vmatpush.msra.mxu0 %v379
        %475 = vmatpush.msra.mxu0 %v370
        %476 = vmatpush.msra.mxu0 %v361
        %477 = vmatpush.msra.mxu0 %v352
        %478 = vmatpush.msra.mxu0 %v343
        %479 = vmatpush.msra.mxu0 %v334
        %480 = vmatpush.msra.mxu0 %v325
        %481 = vmatpush.msra.mxu0 %v316
        %482 = vmatpush.msra.mxu0 %v307
        %483 = vmatpush.msra.mxu0 %v298
        %484 = vmatpush.msra.mxu0 %v289
        %485 = vmatpush.msra.mxu0 %v280
        %486 = vmatpush.msra.mxu0 %v271
        %487 = vmatpush.msra.mxu0 %v262
        %488 = vmatpush.msra.mxu0 %v253
        %489 = vmatmul.f32.gmra.mxu0 %v248
        %v490 = vpop.f32.mrf.mxu0
        %v491 = vadd.f32 0.0, %v490
        %492 = vdwg.mxu0
        %493 = vmatpush.msra.mxu0 %v389
        %494 = vmatpush.msra.mxu0 %v380
        %495 = vmatpush.msra.mxu0 %v371
        %496 = vmatpush.msra.mxu0 %v362
        %497 = vmatpush.msra.mxu0 %v353
        %498 = vmatpush.msra.mxu0 %v344
        %499 = vmatpush.msra.mxu0 %v335
        %500 = vmatpush.msra.mxu0 %v326
        %501 = vmatpush.msra.mxu0 %v317
        %502 = vmatpush.msra.mxu0 %v308
        %503 = vmatpush.msra.mxu0 %v299
        %504 = vmatpush.msra.mxu0 %v290
        %505 = vmatpush.msra.mxu0 %v281
        %506 = vmatpush.msra.mxu0 %v272
        %507 = vmatpush.msra.mxu0 %v263
        %508 = vmatpush.msra.mxu0 %v254
        %509 = vmatmul.f32.gmra.mxu0 %v248
        %v510 = vpop.f32.mrf.mxu0
        %v511 = vadd.f32 0.0, %v510
        %512 = vdwg.mxu0
        %513 = vmatpush.msra.mxu0 %v390
        %514 = vmatpush.msra.mxu0 %v381
        %515 = vmatpush.msra.mxu0 %v372
        %516 = vmatpush.msra.mxu0 %v363
        %517 = vmatpush.msra.mxu0 %v354
        %518 = vmatpush.msra.mxu0 %v345
        %519 = vmatpush.msra.mxu0 %v336
        %520 = vmatpush.msra.mxu0 %v327
        %521 = vmatpush.msra.mxu0 %v318
        %522 = vmatpush.msra.mxu0 %v309
        %523 = vmatpush.msra.mxu0 %v300
        %524 = vmatpush.msra.mxu0 %v291
        %525 = vmatpush.msra.mxu0 %v282
        %526 = vmatpush.msra.mxu0 %v273
        %527 = vmatpush.msra.mxu0 %v264
        %528 = vmatpush.msra.mxu0 %v255
        %529 = vmatmul.f32.gmra.mxu0 %v248
        %v530 = vpop.f32.mrf.mxu0
        %v531 = vadd.f32 0.0, %v530
        %532 = vdwg.mxu0
        %533 = vmatpush.msra.mxu0 %v391
        %534 = vmatpush.msra.mxu0 %v382
        %535 = vmatpush.msra.mxu0 %v373
        %536 = vmatpush.msra.mxu0 %v364
        %537 = vmatpush.msra.mxu0 %v355
        %538 = vmatpush.msra.mxu0 %v346
        %539 = vmatpush.msra.mxu0 %v337
        %540 = vmatpush.msra.mxu0 %v328
        %541 = vmatpush.msra.mxu0 %v319
        %542 = vmatpush.msra.mxu0 %v310
        %543 = vmatpush.msra.mxu0 %v301
        %544 = vmatpush.msra.mxu0 %v292
        %545 = vmatpush.msra.mxu0 %v283
        %546 = vmatpush.msra.mxu0 %v274
        %547 = vmatpush.msra.mxu0 %v265
        %548 = vmatpush.msra.mxu0 %v256
        %549 = vmatmul.f32.gmra.mxu0 %v248
        %v550 = vpop.f32.mrf.mxu0
        %v551 = vadd.f32 0.0, %v550
        %552 = vdwg.mxu0
        %553 = vmatpush.msra.mxu0 %v392
        %554 = vmatpush.msra.mxu0 %v383
        %555 = vmatpush.msra.mxu0 %v374
        %556 = vmatpush.msra.mxu0 %v365
        %557 = vmatpush.msra.mxu0 %v356
        %558 = vmatpush.msra.mxu0 %v347
        %559 = vmatpush.msra.mxu0 %v338
        %560 = vmatpush.msra.mxu0 %v329
        %561 = vmatpush.msra.mxu0 %v320
        %562 = vmatpush.msra.mxu0 %v311
        %563 = vmatpush.msra.mxu0 %v302
        %564 = vmatpush.msra.mxu0 %v293
        %565 = vmatpush.msra.mxu0 %v284
        %566 = vmatpush.msra.mxu0 %v275
        %567 = vmatpush.msra.mxu0 %v266
        %568 = vmatpush.msra.mxu0 %v257
        %569 = vmatmul.f32.gmra.mxu0 %v248
        %v570 = vpop.f32.mrf.mxu0
        %v571 = vadd.f32 0.0, %v570
        %572 = vdwg.mxu0
        %573 = vst [vmem:[#allocation2] sm:$0xff] %v411
        %574 = vst [vmem:[#allocation2 + $0x8] sm:$0xff] %v431
        %575 = vst [vmem:[#allocation2 + $0x10] sm:$0xff] %v451
        %576 = vst [vmem:[#allocation2 + $0x18] sm:$0xff] %v471
        %577 = vst [vmem:[#allocation2 + $0x20] sm:$0xff] %v491
        %578 = vst [vmem:[#allocation2 + $0x28] sm:$0xff] %v511
        %579 = vst [vmem:[#allocation2 + $0x30] sm:$0xff] %v531
        %580 = vst [vmem:[#allocation2 + $0x38] sm:$0xff] %v551
        %581 = vst [vmem:[#allocation2 + $0x40] sm:$0xff] %v571
        %v582 = vld [vmem:[%s2] sm:$0xff]
        %v583 = vld [vmem:[%s2 + $0x10] sm:$0xff]
        %v584 = vld [vmem:[%s2 + $0x20] sm:$0xff]
        %v585 = vld [vmem:[%s2 + $0x30] sm:$0xff]
        %v586 = vld [vmem:[%s2 + $0x40] sm:$0xff]
        %v587 = vld [vmem:[%s2 + $0x50] sm:$0xff]
        %v588 = vld [vmem:[%s2 + $0x60] sm:$0xff]
        %v589 = vld [vmem:[%s2 + $0x70] sm:$0xff]
        %v590 = vld [vmem:[#allocation8] sm:$0xff]
        %v591 = vld [vmem:[#allocation8 + $0x8] sm:$0xff]
        %v592 = vld [vmem:[#allocation8 + $0x10] sm:$0xff]
        %v593 = vld [vmem:[#allocation8 + $0x18] sm:$0xff]
        %v594 = vld [vmem:[#allocation8 + $0x20] sm:$0xff]
        %v595 = vld [vmem:[#allocation8 + $0x28] sm:$0xff]
        %v596 = vld [vmem:[#allocation8 + $0x30] sm:$0xff]
        %v597 = vld [vmem:[#allocation8 + $0x38] sm:$0xff]
        %v598 = vld [vmem:[#allocation2] sm:$0xff]
        %v599 = vld [vmem:[#allocation2 + $0x8] sm:$0xff]
        %v600 = vld [vmem:[#allocation2 + $0x10] sm:$0xff]
        %v601 = vld [vmem:[#allocation2 + $0x18] sm:$0xff]
        %v602 = vld [vmem:[#allocation2 + $0x20] sm:$0xff]
        %v603 = vld [vmem:[#allocation2 + $0x28] sm:$0xff]
        %v604 = vld [vmem:[#allocation2 + $0x30] sm:$0xff]
        %v605 = vld [vmem:[#allocation2 + $0x38] sm:$0xff]
        %v606 = vld [vmem:[#allocation2 + $0x40] sm:$0xff]
        %608 = vset.pattern.permute.xlu0 0
        %609 = vperm.xlu0 %608, %v590
        %v610 = vpop.permute.xlu0 %609
        %613 = vset.pattern.permute.xlu0 0
        %614 = vperm.xlu0 %613, %v591
        %v615 = vpop.permute.xlu0 %614
        %618 = vset.pattern.permute.xlu0 0
        %619 = vperm.xlu0 %618, %v592
        %v620 = vpop.permute.xlu0 %619
        %623 = vset.pattern.permute.xlu0 0
        %624 = vperm.xlu0 %623, %v593
        %v625 = vpop.permute.xlu0 %624
        %628 = vset.pattern.permute.xlu0 0
        %629 = vperm.xlu0 %628, %v594
        %v630 = vpop.permute.xlu0 %629
        %633 = vset.pattern.permute.xlu0 0
        %634 = vperm.xlu0 %633, %v595
        %v635 = vpop.permute.xlu0 %634
        %638 = vset.pattern.permute.xlu0 0
        %639 = vperm.xlu0 %638, %v596
        %v640 = vpop.permute.xlu0 %639
        %643 = vset.pattern.permute.xlu0 0
        %644 = vperm.xlu0 %643, %v597
        %v645 = vpop.permute.xlu0 %644
        %vm647 = vcmask 588800
        %v649 = vsel %vm647, %v582, 0
        %v652 = vsel %vm647, %v583, 0
        %v655 = vsel %vm647, %v584, 0
        %v658 = vsel %vm647, %v585, 0
        %v661 = vsel %vm647, %v586, 0
        %v664 = vsel %vm647, %v587, 0
        %v667 = vsel %vm647, %v588, 0
        %v670 = vsel %vm647, %v589, 0
        %672 = vmatpush.msra.mxu0 0.0
        %673 = vmatpush.msra.mxu0 0.0
        %674 = vmatpush.msra.mxu0 0.0
        %675 = vmatpush.msra.mxu0 0.0
        %676 = vmatpush.msra.mxu0 0.0
        %677 = vmatpush.msra.mxu0 0.0
        %678 = vmatpush.msra.mxu0 0.0
        %679 = vmatpush.msra.mxu0 %v606
        %680 = vmatpush.msra.mxu0 %v605
        %681 = vmatpush.msra.mxu0 %v604
        %682 = vmatpush.msra.mxu0 %v603
        %683 = vmatpush.msra.mxu0 %v602
        %684 = vmatpush.msra.mxu0 %v601
        %685 = vmatpush.msra.mxu0 %v600
        %686 = vmatpush.msra.mxu0 %v599
        %687 = vmatpush.msra.mxu0 %v598
        %688 = vmatmul.f32.gmra.mxu0 %v649
        %v689 = vpop.f32.mrf.mxu0
        %v690 = vadd.f32 %v610, %v689
        %691 = vmatmul.f32.gmra.mxu0 %v652
        %v692 = vpop.f32.mrf.mxu0
        %v693 = vadd.f32 %v615, %v692
        %694 = vmatmul.f32.gmra.mxu0 %v655
        %v695 = vpop.f32.mrf.mxu0
        %v696 = vadd.f32 %v620, %v695
        %697 = vmatmul.f32.gmra.mxu0 %v658
        %v698 = vpop.f32.mrf.mxu0
        %v699 = vadd.f32 %v625, %v698
        %700 = vmatmul.f32.gmra.mxu0 %v661
        %v701 = vpop.f32.mrf.mxu0
        %v702 = vadd.f32 %v630, %v701
        %703 = vmatmul.f32.gmra.mxu0 %v664
        %v704 = vpop.f32.mrf.mxu0
        %v705 = vadd.f32 %v635, %v704
        %706 = vmatmul.f32.gmra.mxu0 %v667
        %v707 = vpop.f32.mrf.mxu0
        %v708 = vadd.f32 %v640, %v707
        %709 = vmatmul.f32.gmra.mxu0 %v670
        %v710 = vpop.f32.mrf.mxu0
        %v711 = vadd.f32 %v645, %v710
        %712 = vdwg.mxu0
        %v713 = vld [vmem:[#allocation8 + $0x40] sm:$0xff]
        %v714 = vld [vmem:[#allocation8 + $0x48] sm:$0xff]
        %v715 = vld [vmem:[#allocation8 + $0x50] sm:$0xff]
        %v716 = vld [vmem:[#allocation8 + $0x58] sm:$0xff]
        %v717 = vld [vmem:[#allocation8 + $0x60] sm:$0xff]
        %v718 = vld [vmem:[#allocation8 + $0x68] sm:$0xff]
        %v719 = vld [vmem:[#allocation8 + $0x70] sm:$0xff]
        %v720 = vld [vmem:[#allocation8 + $0x78] sm:$0xff]
        %v721 = vld [vmem:[#allocation8 + $0x80] sm:$0xff]
        %v722 = vld [vmem:[#allocation8 + $0x88] sm:$0xff]
        %v723 = vld [vmem:[#allocation8 + $0x90] sm:$0xff]
        %v724 = vld [vmem:[#allocation8 + $0x98] sm:$0xff]
        %v725 = vld [vmem:[#allocation8 + $0xa0] sm:$0xff]
        %v726 = vld [vmem:[#allocation8 + $0xa8] sm:$0xff]
        %v727 = vld [vmem:[#allocation8 + $0xb0] sm:$0xff]
        %v728 = vld [vmem:[#allocation8 + $0xb8] sm:$0xff]
        %v729 = vld [vmem:[#allocation8 + $0xc0] sm:$0x3]
        %v730 = vadd.f32 %v690, %v696
        %v731 = vmul.f32 %v730, 0.5
        %v732 = vsub.f32 %v690, %v731
        %v733 = vmul.f32 %v732, %v732
        %v734 = vsub.f32 %v696, %v731
        %v735 = vmul.f32 %v734, %v734
        %v736 = vadd.f32 %v733, %v735
        %v737 = vmul.f32 %v736, 0.5
        %v738 = vadd.f32 %v737, 1e-30
        %v739 = vrsqrt.pop %v738
        %v740 = vmul.f32 %v739, %v738
        %v741 = vmul.f32 %v740, %v739
        %v742 = vmul.f32 0.5, %v741
        %v743 = vsub.f32 1.5, %v742
        %v744 = vmul.f32 %v739, %v743
        %vm745 = vweird.f32 %v738
        %vm746 = vweird.f32 %v739
        %vm747 = vmor %vm745, %vm746
        %v748 = vsel %vm747, %v739, %v744
        %v749 = vmul.f32 %v748, %v731
        %v750 = vadd.f32 %v702, %v708
        %v751 = vmul.f32 %v750, 0.5
        %v752 = vsub.f32 %v702, %v751
        %v753 = vmul.f32 %v752, %v752
        %v754 = vsub.f32 %v708, %v751
        %v755 = vmul.f32 %v754, %v754
        %v756 = vadd.f32 %v753, %v755
        %v757 = vmul.f32 %v756, 0.5
        %v758 = vadd.f32 %v757, 1e-30
        %v759 = vrsqrt.pop %v758
        %v760 = vmul.f32 %v759, %v758
        %v761 = vmul.f32 %v760, %v759
        %v762 = vmul.f32 0.5, %v761
        %v763 = vsub.f32 1.5, %v762
        %v764 = vmul.f32 %v759, %v763
        %vm765 = vweird.f32 %v758
        %vm766 = vweird.f32 %v759
        %vm767 = vmor %vm765, %vm766
        %v768 = vsel %vm767, %v759, %v764
        %v769 = vadd.f32 %v748, %v768
        %v770 = vmul.f32 %v768, %v751
        %v771 = vadd.f32 %v749, %v770
        %v772 = vrcp.pop %v769
        %v773 = vmul.f32 %v769, %v772
        %v774 = vsub.f32 1.0, %v773
        %v775 = vmul.f32 %v772, %v774
        %v776 = vadd.f32 %v772, %v775
        %vm777 = vweird.f32 %v769
        %vm778 = vweird.f32 %v772
        %vm779 = vmor %vm777, %vm778
        %v780 = vsel %vm779, %v772, %v776
        %v781 = vand.u32 2147483647, %v769
        %vm782 = vcmp.eq.f32.partialorder %v781, 8.507059e+37
        %v783 = vand.u32 %v769, 2147483648
        %v784 = vor.u32 1.1754944e-38, %v783
        %v785 = vsel %vm782, %v784, %v780
        %v786 = vmul.f32 %v771, %v785
        %vm787 = vcmask 64512
        %v789 = vsel %vm787, 1.0, 0
        %791 = vmatpush.msra.mxu0 0.0
        %792 = vmatpush.msra.mxu0 0.0
        %793 = vmatpush.msra.mxu0 0.0
        %794 = vmatpush.msra.mxu0 0.0
        %795 = vmatpush.msra.mxu0 0.0
        %796 = vmatpush.msra.mxu0 0.0
        %797 = vmatpush.msra.mxu0 0.0
        %798 = vmatpush.msra.mxu0 0.0
        %799 = vmatpush.msra.mxu0 0.0
        %800 = vmatpush.msra.mxu0 0.0
        %801 = vmatpush.msra.mxu0 0.0
        %802 = vmatpush.msra.mxu0 0.0
        %803 = vmatpush.msra.mxu0 0.0
        %804 = vmatpush.msra.mxu0 0.0
        %805 = vmatpush.msra.mxu0 0.0
        %806 = vmatpush.msra.mxu0 %v786
        %807 = vmatmul.f32.gmra.mxu0 %v789
        %v808 = vpop.f32.mrf.mxu0
        %v809 = vadd.f32 0.0, %v808
        %810 = vdwg.mxu0
        %811 = vmatpush.msra.mxu0 %v728
        %812 = vmatpush.msra.mxu0 %v727
        %813 = vmatpush.msra.mxu0 %v726
        %814 = vmatpush.msra.mxu0 %v725
        %815 = vmatpush.msra.mxu0 %v724
        %816 = vmatpush.msra.mxu0 %v723
        %817 = vmatpush.msra.mxu0 %v722
        %818 = vmatpush.msra.mxu0 %v721
        %819 = vmatpush.msra.mxu0 %v720
        %820 = vmatpush.msra.mxu0 %v719
        %821 = vmatpush.msra.mxu0 %v718
        %822 = vmatpush.msra.mxu0 %v717
        %823 = vmatpush.msra.mxu0 %v716
        %824 = vmatpush.msra.mxu0 %v715
        %825 = vmatpush.msra.mxu0 %v714
        %826 = vmatpush.msra.mxu0 %v713
        %827 = vmatmul.f32.gmra.mxu0 %v809
        %v828 = vpop.f32.mrf.mxu0
        %v829 = vadd.f32 0.0, %v828
        %830 = vdwg.mxu0
        %v831 = vmul.f32 %v829, 0.001953125
        %vm832 = vcmask 15360
        %v834 = vsel %vm832, %v831, 0
        %vm836 = vcmask 1041408
        %v838 = vsel %vm836, %v729, 0
        %840 = vmatpush.msra.mxu0 0.0
        %841 = vmatpush.msra.mxu0 0.0
        %842 = vmatpush.msra.mxu0 0.0
        %843 = vmatpush.msra.mxu0 0.0
        %844 = vmatpush.msra.mxu0 0.0
        %845 = vmatpush.msra.mxu0 0.0
        %846 = vmatpush.msra.mxu0 0.0
        %847 = vmatpush.msra.mxu0 0.0
        %848 = vmatpush.msra.mxu0 0.0
        %849 = vmatpush.msra.mxu0 0.0
        %850 = vmatpush.msra.mxu0 0.0
        %851 = vmatpush.msra.mxu0 0.0
        %852 = vmatpush.msra.mxu0 0.0
        %853 = vmatpush.msra.mxu0 0.0
        %854 = vmatpush.msra.mxu0 0.0
        %855 = vmatpush.msra.mxu0 %v838
        %856 = vmatmul.f32.gmra.mxu0 %v834
        %v857 = vpop.f32.mrf.mxu0
        %v858 = vadd.f32 0.0, %v857
        %859 = vdwg.mxu0
        %v860 = vperm.slane %v858, 0
        %v861 = vsub.f32 %v786, %v860
        %v862 = vmul.f32 %v861, %v861
        %863 = vmatpush.msra.mxu0 0.0
        %864 = vmatpush.msra.mxu0 0.0
        %865 = vmatpush.msra.mxu0 0.0
        %866 = vmatpush.msra.mxu0 0.0
        %867 = vmatpush.msra.mxu0 0.0
        %868 = vmatpush.msra.mxu0 0.0
        %869 = vmatpush.msra.mxu0 0.0
        %870 = vmatpush.msra.mxu0 0.0
        %871 = vmatpush.msra.mxu0 0.0
        %872 = vmatpush.msra.mxu0 0.0
        %873 = vmatpush.msra.mxu0 0.0
        %874 = vmatpush.msra.mxu0 0.0
        %875 = vmatpush.msra.mxu0 0.0
        %876 = vmatpush.msra.mxu0 0.0
        %877 = vmatpush.msra.mxu0 0.0
        %878 = vmatpush.msra.mxu0 %v862
        %879 = vmatmul.f32.gmra.mxu0 %v789
        %v880 = vpop.f32.mrf.mxu0
        %v881 = vadd.f32 0.0, %v880
        %882 = vdwg.mxu0
        %883 = vmatpush.msra.mxu0 %v728
        %884 = vmatpush.msra.mxu0 %v727
        %885 = vmatpush.msra.mxu0 %v726
        %886 = vmatpush.msra.mxu0 %v725
        %887 = vmatpush.msra.mxu0 %v724
        %888 = vmatpush.msra.mxu0 %v723
        %889 = vmatpush.msra.mxu0 %v722
        %890 = vmatpush.msra.mxu0 %v721
        %891 = vmatpush.msra.mxu0 %v720
        %892 = vmatpush.msra.mxu0 %v719
        %893 = vmatpush.msra.mxu0 %v718
        %894 = vmatpush.msra.mxu0 %v717
        %895 = vmatpush.msra.mxu0 %v716
        %896 = vmatpush.msra.mxu0 %v715
        %897 = vmatpush.msra.mxu0 %v714
        %898 = vmatpush.msra.mxu0 %v713
        %899 = vmatmul.f32.gmra.mxu0 %v881
        %v900 = vpop.f32.mrf.mxu0
        %v901 = vadd.f32 0.0, %v900
        %902 = vdwg.mxu0
        %v903 = vmul.f32 %v901, 0.001953125
        %v904 = vadd.f32 %v903, 1e-05
        %v905 = vrsqrt.pop %v904
        %v906 = vmul.f32 %v905, %v904
        %v907 = vmul.f32 %v906, %v905
        %v908 = vmul.f32 0.5, %v907
        %v909 = vsub.f32 1.5, %v908
        %v910 = vmul.f32 %v905, %v909
        %vm911 = vweird.f32 %v904
        %vm912 = vweird.f32 %v905
        %vm913 = vmor %vm911, %vm912
        %v914 = vsel %vm913, %v905, %v910
        %v916 = vsel %vm832, %v914, 0
        %918 = vmatpush.msra.mxu0 0.0
        %919 = vmatpush.msra.mxu0 0.0
        %920 = vmatpush.msra.mxu0 0.0
        %921 = vmatpush.msra.mxu0 0.0
        %922 = vmatpush.msra.mxu0 0.0
        %923 = vmatpush.msra.mxu0 0.0
        %924 = vmatpush.msra.mxu0 0.0
        %925 = vmatpush.msra.mxu0 0.0
        %926 = vmatpush.msra.mxu0 0.0
        %927 = vmatpush.msra.mxu0 0.0
        %928 = vmatpush.msra.mxu0 0.0
        %929 = vmatpush.msra.mxu0 0.0
        %930 = vmatpush.msra.mxu0 0.0
        %931 = vmatpush.msra.mxu0 0.0
        %932 = vmatpush.msra.mxu0 0.0
        %933 = vmatpush.msra.mxu0 %v838
        %934 = vmatmul.f32.gmra.mxu0 %v916
        %v935 = vpop.f32.mrf.mxu0
        %v936 = vadd.f32 0.0, %v935
        %937 = vdwg.mxu0
        %v938 = vperm.slane %v936, 0
        %v939 = vmul.f32 %v861, %v938
        %940 = vst [vmem:[#allocation3] sm:$0xff] %v939
        %v941 = vadd.f32 %v693, %v699
        %v942 = vmul.f32 %v941, 0.5
        %v943 = vsub.f32 %v693, %v942
        %v944 = vmul.f32 %v943, %v943
        %v945 = vsub.f32 %v699, %v942
        %v946 = vmul.f32 %v945, %v945
        %v947 = vadd.f32 %v944, %v946
        %v948 = vmul.f32 %v947, 0.5
        %v949 = vadd.f32 %v948, 1e-30
        %v950 = vrsqrt.pop %v949
        %v951 = vmul.f32 %v950, %v949
        %v952 = vmul.f32 %v951, %v950
        %v953 = vmul.f32 0.5, %v952
        %v954 = vsub.f32 1.5, %v953
        %v955 = vmul.f32 %v950, %v954
        %vm956 = vweird.f32 %v949
        %vm957 = vweird.f32 %v950
        %vm958 = vmor %vm956, %vm957
        %v959 = vsel %vm958, %v950, %v955
        %v960 = vmul.f32 %v959, %v942
        %v961 = vadd.f32 %v705, %v711
        %v962 = vmul.f32 %v961, 0.5
        %v963 = vsub.f32 %v705, %v962
        %v964 = vmul.f32 %v963, %v963
        %v965 = vsub.f32 %v711, %v962
        %v966 = vmul.f32 %v965, %v965
        %v967 = vadd.f32 %v964, %v966
        %v968 = vmul.f32 %v967, 0.5
        %v969 = vadd.f32 %v968, 1e-30
        %v970 = vrsqrt.pop %v969
        %v971 = vmul.f32 %v970, %v969
        %v972 = vmul.f32 %v971, %v970
        %v973 = vmul.f32 0.5, %v972
        %v974 = vsub.f32 1.5, %v973
        %v975 = vmul.f32 %v970, %v974
        %vm976 = vweird.f32 %v969
        %vm977 = vweird.f32 %v970
        %vm978 = vmor %vm976, %vm977
        %v979 = vsel %vm978, %v970, %v975
        %v980 = vadd.f32 %v959, %v979
        %v981 = vmul.f32 %v979, %v962
        %v982 = vadd.f32 %v960, %v981
        %v983 = vrcp.pop %v980
        %v984 = vmul.f32 %v980, %v983
        %v985 = vsub.f32 1.0, %v984
        %v986 = vmul.f32 %v983, %v985
        %v987 = vadd.f32 %v983, %v986
        %vm988 = vweird.f32 %v980
        %vm989 = vweird.f32 %v983
        %vm990 = vmor %vm988, %vm989
        %v991 = vsel %vm990, %v983, %v987
        %v992 = vand.u32 2147483647, %v980
        %vm993 = vcmp.eq.f32.partialorder %v992, 8.507059e+37
        %v994 = vand.u32 %v980, 2147483648
        %v995 = vor.u32 1.1754944e-38, %v994
        %v996 = vsel %vm993, %v995, %v991
        %v997 = vmul.f32 %v982, %v996
        %998 = vmatpush.msra.mxu0 0.0
        %999 = vmatpush.msra.mxu0 0.0
        %1000 = vmatpush.msra.mxu0 0.0
        %1001 = vmatpush.msra.mxu0 0.0
        %1002 = vmatpush.msra.mxu0 0.0
        %1003 = vmatpush.msra.mxu0 0.0
        %1004 = vmatpush.msra.mxu0 0.0
        %1005 = vmatpush.msra.mxu0 0.0
        %1006 = vmatpush.msra.mxu0 0.0
        %1007 = vmatpush.msra.mxu0 0.0
        %1008 = vmatpush.msra.mxu0 0.0
        %1009 = vmatpush.msra.mxu0 0.0
        %1010 = vmatpush.msra.mxu0 0.0
        %1011 = vmatpush.msra.mxu0 0.0
        %1012 = vmatpush.msra.mxu0 0.0
        %1013 = vmatpush.msra.mxu0 %v997
        %1014 = vmatmul.f32.gmra.mxu0 %v789
        %v1015 = vpop.f32.mrf.mxu0
        %v1016 = vadd.f32 0.0, %v1015
        %1017 = vdwg.mxu0
        %1018 = vmatpush.msra.mxu0 %v728
        %1019 = vmatpush.msra.mxu0 %v727
        %1020 = vmatpush.msra.mxu0 %v726
        %1021 = vmatpush.msra.mxu0 %v725
        %1022 = vmatpush.msra.mxu0 %v724
        %1023 = vmatpush.msra.mxu0 %v723
        %1024 = vmatpush.msra.mxu0 %v722
        %1025 = vmatpush.msra.mxu0 %v721
        %1026 = vmatpush.msra.mxu0 %v720
        %1027 = vmatpush.msra.mxu0 %v719
        %1028 = vmatpush.msra.mxu0 %v718
        %1029 = vmatpush.msra.mxu0 %v717
        %1030 = vmatpush.msra.mxu0 %v716
        %1031 = vmatpush.msra.mxu0 %v715
        %1032 = vmatpush.msra.mxu0 %v714
        %1033 = vmatpush.msra.mxu0 %v713
        %1034 = vmatmul.f32.gmra.mxu0 %v1016
        %v1035 = vpop.f32.mrf.mxu0
        %v1036 = vadd.f32 0.0, %v1035
        %1037 = vdwg.mxu0
        %v1038 = vmul.f32 %v1036, 0.001953125
        %v1040 = vsel %vm832, %v1038, 0
        %1042 = vmatpush.msra.mxu0 0.0
        %1043 = vmatpush.msra.mxu0 0.0
        %1044 = vmatpush.msra.mxu0 0.0
        %1045 = vmatpush.msra.mxu0 0.0
        %1046 = vmatpush.msra.mxu0 0.0
        %1047 = vmatpush.msra.mxu0 0.0
        %1048 = vmatpush.msra.mxu0 0.0
        %1049 = vmatpush.msra.mxu0 0.0
        %1050 = vmatpush.msra.mxu0 0.0
        %1051 = vmatpush.msra.mxu0 0.0
        %1052 = vmatpush.msra.mxu0 0.0
        %1053 = vmatpush.msra.mxu0 0.0
        %1054 = vmatpush.msra.mxu0 0.0
        %1055 = vmatpush.msra.mxu0 0.0
        %1056 = vmatpush.msra.mxu0 0.0
        %1057 = vmatpush.msra.mxu0 %v838
        %1058 = vmatmul.f32.gmra.mxu0 %v1040
        %v1059 = vpop.f32.mrf.mxu0
        %v1060 = vadd.f32 0.0, %v1059
        %1061 = vdwg.mxu0
        %v1062 = vperm.slane %v1060, 0
        %v1063 = vsub.f32 %v997, %v1062
        %v1064 = vmul.f32 %v1063, %v1063
        %1065 = vmatpush.msra.mxu0 0.0
        %1066 = vmatpush.msra.mxu0 0.0
        %1067 = vmatpush.msra.mxu0 0.0
        %1068 = vmatpush.msra.mxu0 0.0
        %1069 = vmatpush.msra.mxu0 0.0
        %1070 = vmatpush.msra.mxu0 0.0
        %1071 = vmatpush.msra.mxu0 0.0
        %1072 = vmatpush.msra.mxu0 0.0
        %1073 = vmatpush.msra.mxu0 0.0
        %1074 = vmatpush.msra.mxu0 0.0
        %1075 = vmatpush.msra.mxu0 0.0
        %1076 = vmatpush.msra.mxu0 0.0
        %1077 = vmatpush.msra.mxu0 0.0
        %1078 = vmatpush.msra.mxu0 0.0
        %1079 = vmatpush.msra.mxu0 0.0
        %1080 = vmatpush.msra.mxu0 %v1064
        %1081 = vmatmul.f32.gmra.mxu0 %v789
        %v1082 = vpop.f32.mrf.mxu0
        %v1083 = vadd.f32 0.0, %v1082
        %1084 = vdwg.mxu0
        %1085 = vmatpush.msra.mxu0 %v728
        %1086 = vmatpush.msra.mxu0 %v727
        %1087 = vmatpush.msra.mxu0 %v726
        %1088 = vmatpush.msra.mxu0 %v725
        %1089 = vmatpush.msra.mxu0 %v724
        %1090 = vmatpush.msra.mxu0 %v723
        %1091 = vmatpush.msra.mxu0 %v722
        %1092 = vmatpush.msra.mxu0 %v721
        %1093 = vmatpush.msra.mxu0 %v720
        %1094 = vmatpush.msra.mxu0 %v719
        %1095 = vmatpush.msra.mxu0 %v718
        %1096 = vmatpush.msra.mxu0 %v717
        %1097 = vmatpush.msra.mxu0 %v716
        %1098 = vmatpush.msra.mxu0 %v715
        %1099 = vmatpush.msra.mxu0 %v714
        %1100 = vmatpush.msra.mxu0 %v713
        %1101 = vmatmul.f32.gmra.mxu0 %v1083
        %v1102 = vpop.f32.mrf.mxu0
        %v1103 = vadd.f32 0.0, %v1102
        %1104 = vdwg.mxu0
        %v1105 = vmul.f32 %v1103, 0.001953125
        %v1106 = vadd.f32 %v1105, 1e-05
        %v1107 = vrsqrt.pop %v1106
        %v1108 = vmul.f32 %v1107, %v1106
        %v1109 = vmul.f32 %v1108, %v1107
        %v1110 = vmul.f32 0.5, %v1109
        %v1111 = vsub.f32 1.5, %v1110
        %v1112 = vmul.f32 %v1107, %v1111
        %vm1113 = vweird.f32 %v1106
        %vm1114 = vweird.f32 %v1107
        %vm1115 = vmor %vm1113, %vm1114
        %v1116 = vsel %vm1115, %v1107, %v1112
        %v1118 = vsel %vm832, %v1116, 0
        %1120 = vmatpush.msra.mxu0 0.0
        %1121 = vmatpush.msra.mxu0 0.0
        %1122 = vmatpush.msra.mxu0 0.0
        %1123 = vmatpush.msra.mxu0 0.0
        %1124 = vmatpush.msra.mxu0 0.0
        %1125 = vmatpush.msra.mxu0 0.0
        %1126 = vmatpush.msra.mxu0 0.0
        %1127 = vmatpush.msra.mxu0 0.0
        %1128 = vmatpush.msra.mxu0 0.0
        %1129 = vmatpush.msra.mxu0 0.0
        %1130 = vmatpush.msra.mxu0 0.0
        %1131 = vmatpush.msra.mxu0 0.0
        %1132 = vmatpush.msra.mxu0 0.0
        %1133 = vmatpush.msra.mxu0 0.0
        %1134 = vmatpush.msra.mxu0 0.0
        %1135 = vmatpush.msra.mxu0 %v838
        %1136 = vmatmul.f32.gmra.mxu0 %v1118
        %v1137 = vpop.f32.mrf.mxu0
        %v1138 = vadd.f32 0.0, %v1137
        %1139 = vdwg.mxu0
        %v1140 = vperm.slane %v1138, 0
        %v1141 = vmul.f32 %v1063, %v1140
        %1142 = vst [vmem:[#allocation3 + $0x8] sm:$0xff] %v1141
        %v1143 = vld [vmem:[#allocation3] sm:$0xff]
        %v1144 = vld [vmem:[#allocation3 + $0x8] sm:$0xff]
        %v1145 = vld [vmem:[#allocation6 + $0x480] sm:$0xff]
        %v1146 = vld [vmem:[#allocation6 + $0x488] sm:$0xff]
        %v1147 = vld [vmem:[#allocation6 + $0x490] sm:$0xff]
        %v1148 = vld [vmem:[#allocation6 + $0x4c8] sm:$0xff]
        %v1149 = vld [vmem:[#allocation6 + $0x4d0] sm:$0xff]
        %v1150 = vld [vmem:[#allocation6 + $0x4d8] sm:$0xff]
        %v1151 = vld [vmem:[#allocation6 + $0x510] sm:$0xff]
        %v1152 = vld [vmem:[#allocation6 + $0x518] sm:$0xff]
        %v1153 = vld [vmem:[#allocation6 + $0x520] sm:$0xff]
        %v1154 = vld [vmem:[#allocation6 + $0x558] sm:$0xff]
        %v1155 = vld [vmem:[#allocation6 + $0x560] sm:$0xff]
        %v1156 = vld [vmem:[#allocation6 + $0x568] sm:$0xff]
        %v1157 = vld [vmem:[#allocation6 + $0x5a0] sm:$0xff]
        %v1158 = vld [vmem:[#allocation6 + $0x5a8] sm:$0xff]
        %v1159 = vld [vmem:[#allocation6 + $0x5b0] sm:$0xff]
        %v1160 = vld [vmem:[#allocation6 + $0x5e8] sm:$0xff]
        %v1161 = vld [vmem:[#allocation6 + $0x5f0] sm:$0xff]
        %v1162 = vld [vmem:[#allocation6 + $0x5f8] sm:$0xff]
        %v1163 = vld [vmem:[#allocation6 + $0x630] sm:$0xff]
        %v1164 = vld [vmem:[#allocation6 + $0x638] sm:$0xff]
        %v1165 = vld [vmem:[#allocation6 + $0x640] sm:$0xff]
        %v1166 = vld [vmem:[#allocation6 + $0x678] sm:$0xff]
        %v1167 = vld [vmem:[#allocation6 + $0x680] sm:$0xff]
        %v1168 = vld [vmem:[#allocation6 + $0x688] sm:$0xff]
        %v1169 = vld [vmem:[#allocation6 + $0x6c0] sm:$0xff]
        %v1170 = vld [vmem:[#allocation6 + $0x6c8] sm:$0xff]
        %v1171 = vld [vmem:[#allocation6 + $0x6d0] sm:$0xff]
        %v1172 = vld [vmem:[#allocation6 + $0x708] sm:$0xff]
        %v1173 = vld [vmem:[#allocation6 + $0x710] sm:$0xff]
        %v1174 = vld [vmem:[#allocation6 + $0x718] sm:$0xff]
        %v1175 = vld [vmem:[#allocation6 + $0x750] sm:$0xff]
        %v1176 = vld [vmem:[#allocation6 + $0x758] sm:$0xff]
        %v1177 = vld [vmem:[#allocation6 + $0x760] sm:$0xff]
        %v1178 = vld [vmem:[#allocation6 + $0x798] sm:$0xff]
        %v1179 = vld [vmem:[#allocation6 + $0x7a0] sm:$0xff]
        %v1180 = vld [vmem:[#allocation6 + $0x7a8] sm:$0xff]
        %v1181 = vld [vmem:[#allocation6 + $0x7e0] sm:$0xff]
        %v1182 = vld [vmem:[#allocation6 + $0x7e8] sm:$0xff]
        %v1183 = vld [vmem:[#allocation6 + $0x7f0] sm:$0xff]
        %v1184 = vld [vmem:[#allocation6 + $0x828] sm:$0xff]
        %v1185 = vld [vmem:[#allocation6 + $0x830] sm:$0xff]
        %v1186 = vld [vmem:[#allocation6 + $0x838] sm:$0xff]
        %v1187 = vld [vmem:[#allocation6 + $0x870] sm:$0xff]
        %v1188 = vld [vmem:[#allocation6 + $0x878] sm:$0xff]
        %v1189 = vld [vmem:[#allocation6 + $0x880] sm:$0xff]
        %v1190 = vld [vmem:[#allocation6 + $0x8b8] sm:$0xff]
        %v1191 = vld [vmem:[#allocation6 + $0x8c0] sm:$0xff]
        %v1192 = vld [vmem:[#allocation6 + $0x8c8] sm:$0xff]
        %1193 = vmatpush.msra.mxu0 %v1190
        %1194 = vmatpush.msra.mxu0 %v1187
        %1195 = vmatpush.msra.mxu0 %v1184
        %1196 = vmatpush.msra.mxu0 %v1181
        %1197 = vmatpush.msra.mxu0 %v1178
        %1198 = vmatpush.msra.mxu0 %v1175
        %1199 = vmatpush.msra.mxu0 %v1172
        %1200 = vmatpush.msra.mxu0 %v1169
        %1201 = vmatpush.msra.mxu0 %v1166
        %1202 = vmatpush.msra.mxu0 %v1163
        %1203 = vmatpush.msra.mxu0 %v1160
        %1204 = vmatpush.msra.mxu0 %v1157
        %1205 = vmatpush.msra.mxu0 %v1154
        %1206 = vmatpush.msra.mxu0 %v1151
        %1207 = vmatpush.msra.mxu0 %v1148
        %1208 = vmatpush.msra.mxu0 %v1145
        %1209 = vmatmul.f32.gmra.mxu0 %v1143
        %v1210 = vpop.f32.mrf.mxu0
        %v1211 = vadd.f32 0.0, %v1210
        %1212 = vmatmul.f32.gmra.mxu0 %v1144
        %v1213 = vpop.f32.mrf.mxu0
        %v1214 = vadd.f32 0.0, %v1213
        %1215 = vdwg.mxu0
        %1216 = vmatpush.msra.mxu0 %v1191
        %1217 = vmatpush.msra.mxu0 %v1188
        %1218 = vmatpush.msra.mxu0 %v1185
        %1219 = vmatpush.msra.mxu0 %v1182
        %1220 = vmatpush.msra.mxu0 %v1179
        %1221 = vmatpush.msra.mxu0 %v1176
        %1222 = vmatpush.msra.mxu0 %v1173
        %1223 = vmatpush.msra.mxu0 %v1170
        %1224 = vmatpush.msra.mxu0 %v1167
        %1225 = vmatpush.msra.mxu0 %v1164
        %1226 = vmatpush.msra.mxu0 %v1161
        %1227 = vmatpush.msra.mxu0 %v1158
        %1228 = vmatpush.msra.mxu0 %v1155
        %1229 = vmatpush.msra.mxu0 %v1152
        %1230 = vmatpush.msra.mxu0 %v1149
        %1231 = vmatpush.msra.mxu0 %v1146
        %1232 = vmatmul.f32.gmra.mxu0 %v1143
        %v1233 = vpop.f32.mrf.mxu0
        %v1234 = vadd.f32 0.0, %v1233
        %1235 = vmatmul.f32.gmra.mxu0 %v1144
        %v1236 = vpop.f32.mrf.mxu0
        %v1237 = vadd.f32 0.0, %v1236
        %1238 = vdwg.mxu0
        %1239 = vmatpush.msra.mxu0 %v1192
        %1240 = vmatpush.msra.mxu0 %v1189
        %1241 = vmatpush.msra.mxu0 %v1186
        %1242 = vmatpush.msra.mxu0 %v1183
        %1243 = vmatpush.msra.mxu0 %v1180
        %1244 = vmatpush.msra.mxu0 %v1177
        %1245 = vmatpush.msra.mxu0 %v1174
        %1246 = vmatpush.msra.mxu0 %v1171
        %1247 = vmatpush.msra.mxu0 %v1168
        %1248 = vmatpush.msra.mxu0 %v1165
        %1249 = vmatpush.msra.mxu0 %v1162
        %1250 = vmatpush.msra.mxu0 %v1159
        %1251 = vmatpush.msra.mxu0 %v1156
        %1252 = vmatpush.msra.mxu0 %v1153
        %1253 = vmatpush.msra.mxu0 %v1150
        %1254 = vmatpush.msra.mxu0 %v1147
        %1255 = vmatmul.f32.gmra.mxu0 %v1143
        %v1256 = vpop.f32.mrf.mxu0
        %v1257 = vadd.f32 0.0, %v1256
        %1258 = vmatmul.f32.gmra.mxu0 %v1144
        %v1259 = vpop.f32.mrf.mxu0
        %v1260 = vadd.f32 0.0, %v1259
        %1261 = vdwg.mxu0
        %vm1262 = vcmask 261120
        %1263 = vst.msk [vmem:[#allocation2] sm:$0xff] %vm1262, %v1211
        %1264 = vst.msk [vmem:[#allocation2 + $0x8] sm:$0xff] %vm1262, %v1214
        %1267 = vrot.lane.b32.xlu0 %v1211, 96
        %v1268 = vpop.permute.xlu0 %1267
        %1269 = vrot.lane.b32.xlu0 %v1214, 96
        %v1270 = vpop.permute.xlu0 %1269
        %1273 = vst.msk [vmem:[#allocation2 + $0x10] sm:$0xff] %vm1262, %v1268
        %1274 = vst.msk [vmem:[#allocation2 + $0x18] sm:$0xff] %vm1262, %v1270
        %1275 = vrot.lane.b32.xlu0 %v1211, 64
        %v1276 = vpop.permute.xlu0 %1275
        %1277 = vrot.lane.b32.xlu0 %v1214, 64
        %v1278 = vpop.permute.xlu0 %1277
        %1281 = vst.msk [vmem:[#allocation2 + $0x20] sm:$0xff] %vm1262, %v1276
        %1282 = vst.msk [vmem:[#allocation2 + $0x28] sm:$0xff] %vm1262, %v1278
        %1283 = vrot.lane.b32.xlu0 %v1211, 32
        %v1284 = vpop.permute.xlu0 %1283
        %1285 = vrot.lane.b32.xlu0 %v1214, 32
        %v1286 = vpop.permute.xlu0 %1285
        %1289 = vst.msk [vmem:[#allocation2 + $0x30] sm:$0xff] %vm1262, %v1284
        %1290 = vst.msk [vmem:[#allocation2 + $0x38] sm:$0xff] %vm1262, %v1286
        %1291 = vst.msk [vmem:[#allocation2 + $0x40] sm:$0xff] %vm1262, %v1234
        %1292 = vst.msk [vmem:[#allocation2 + $0x48] sm:$0xff] %vm1262, %v1237
        %1295 = vrot.lane.b32.xlu0 %v1234, 96
        %v1296 = vpop.permute.xlu0 %1295
        %1297 = vrot.lane.b32.xlu0 %v1237, 96
        %v1298 = vpop.permute.xlu0 %1297
        %1301 = vst.msk [vmem:[#allocation2 + $0x50] sm:$0xff] %vm1262, %v1296
        %1302 = vst.msk [vmem:[#allocation2 + $0x58] sm:$0xff] %vm1262, %v1298
        %1303 = vrot.lane.b32.xlu0 %v1234, 64
        %v1304 = vpop.permute.xlu0 %1303
        %1305 = vrot.lane.b32.xlu0 %v1237, 64
        %v1306 = vpop.permute.xlu0 %1305
        %1309 = vst.msk [vmem:[#allocation2 + $0x60] sm:$0xff] %vm1262, %v1304
        %1310 = vst.msk [vmem:[#allocation2 + $0x68] sm:$0xff] %vm1262, %v1306
        %1311 = vrot.lane.b32.xlu0 %v1234, 32
        %v1312 = vpop.permute.xlu0 %1311
        %1313 = vrot.lane.b32.xlu0 %v1237, 32
        %v1314 = vpop.permute.xlu0 %1313
        %1317 = vst.msk [vmem:[#allocation2 + $0x70] sm:$0xff] %vm1262, %v1312
        %1318 = vst.msk [vmem:[#allocation2 + $0x78] sm:$0xff] %vm1262, %v1314
        %1319 = vst.msk [vmem:[#allocation2 + $0x80] sm:$0xff] %vm1262, %v1257
        %1320 = vst.msk [vmem:[#allocation2 + $0x88] sm:$0xff] %vm1262, %v1260
        %v1321 = vld [vmem:[%s2 + $0x80] sm:$0xff]
        %v1322 = vld [vmem:[%s2 + $0x88] sm:$0xff]
        %v1323 = vld [vmem:[%s2 + $0x90] sm:$0xff]
        %v1324 = vld [vmem:[%s2 + $0x98] sm:$0xff]
        %v1325 = vld [vmem:[%s2 + $0xa0] sm:$0xff]
        %v1326 = vld [vmem:[%s2 + $0xa8] sm:$0xff]
        %v1327 = vld [vmem:[%s2 + $0xb0] sm:$0xff]
        %v1328 = vld [vmem:[%s2 + $0xb8] sm:$0xff]
        %v1329 = vld [vmem:[%s2 + $0xc0] sm:$0xff]
        %v1330 = vld [vmem:[%s2 + $0xc8] sm:$0xff]
        %v1331 = vld [vmem:[%s2 + $0xd0] sm:$0xff]
        %v1332 = vld [vmem:[%s2 + $0xd8] sm:$0xff]
        %v1333 = vld [vmem:[%s2 + $0xe0] sm:$0xff]
        %v1334 = vld [vmem:[%s2 + $0xe8] sm:$0xff]
        %v1335 = vld [vmem:[%s2 + $0xf0] sm:$0xff]
        %v1336 = vld [vmem:[%s2 + $0xf8] sm:$0xff]
        %v1337 = vld [vmem:[#allocation8 + $0xc8] sm:$0xff]
        %v1338 = vld [vmem:[#allocation8 + $0xd0] sm:$0xff]
        %v1339 = vld [vmem:[#allocation8 + $0xd8] sm:$0xff]
        %v1340 = vld [vmem:[#allocation8 + $0xe0] sm:$0xff]
        %v1341 = vld [vmem:[#allocation8 + $0xe8] sm:$0xff]
        %v1342 = vld [vmem:[#allocation8 + $0xf0] sm:$0xff]
        %v1343 = vld [vmem:[#allocation8 + $0xf8] sm:$0xff]
        %v1344 = vld [vmem:[#allocation8 + $0x100] sm:$0xff]
        %v1345 = vld [vmem:[#allocation2] sm:$0xff]
        %v1346 = vld [vmem:[#allocation2 + $0x8] sm:$0xff]
        %v1347 = vld [vmem:[#allocation2 + $0x10] sm:$0xff]
        %v1348 = vld [vmem:[#allocation2 + $0x18] sm:$0xff]
        %v1349 = vld [vmem:[#allocation2 + $0x20] sm:$0xff]
        %v1350 = vld [vmem:[#allocation2 + $0x28] sm:$0xff]
        %v1351 = vld [vmem:[#allocation2 + $0x30] sm:$0xff]
        %v1352 = vld [vmem:[#allocation2 + $0x38] sm:$0xff]
        %v1353 = vld [vmem:[#allocation2 + $0x40] sm:$0xff]
        %v1354 = vld [vmem:[#allocation2 + $0x48] sm:$0xff]
        %v1355 = vld [vmem:[#allocation2 + $0x50] sm:$0xff]
        %v1356 = vld [vmem:[#allocation2 + $0x58] sm:$0xff]
        %v1357 = vld [vmem:[#allocation2 + $0x60] sm:$0xff]
        %v1358 = vld [vmem:[#allocation2 + $0x68] sm:$0xff]
        %v1359 = vld [vmem:[#allocation2 + $0x70] sm:$0xff]
        %v1360 = vld [vmem:[#allocation2 + $0x78] sm:$0xff]
        %v1361 = vld [vmem:[#allocation2 + $0x80] sm:$0xff]
        %v1362 = vld [vmem:[#allocation2 + $0x88] sm:$0xff]
        %1364 = vset.pattern.permute.xlu0 0
        %1365 = vperm.xlu0 %1364, %v1337
        %v1366 = vpop.permute.xlu0 %1365
        %1369 = vset.pattern.permute.xlu0 0
        %1370 = vperm.xlu0 %1369, %v1338
        %v1371 = vpop.permute.xlu0 %1370
        %1374 = vset.pattern.permute.xlu0 0
        %1375 = vperm.xlu0 %1374, %v1339
        %v1376 = vpop.permute.xlu0 %1375
        %1379 = vset.pattern.permute.xlu0 0
        %1380 = vperm.xlu0 %1379, %v1340
        %v1381 = vpop.permute.xlu0 %1380
        %1384 = vset.pattern.permute.xlu0 0
        %1385 = vperm.xlu0 %1384, %v1341
        %v1386 = vpop.permute.xlu0 %1385
        %1389 = vset.pattern.permute.xlu0 0
        %1390 = vperm.xlu0 %1389, %v1342
        %v1391 = vpop.permute.xlu0 %1390
        %1394 = vset.pattern.permute.xlu0 0
        %1395 = vperm.xlu0 %1394, %v1343
        %v1396 = vpop.permute.xlu0 %1395
        %1399 = vset.pattern.permute.xlu0 0
        %1400 = vperm.xlu0 %1399, %v1344
        %v1401 = vpop.permute.xlu0 %1400
        %vm1403 = vcmask 130048
        %v1405 = vsel %vm1403, %v1322, 0
        %v1408 = vsel %vm1403, %v1324, 0
        %v1411 = vsel %vm1403, %v1326, 0
        %v1414 = vsel %vm1403, %v1328, 0
        %v1417 = vsel %vm1403, %v1330, 0
        %v1420 = vsel %vm1403, %v1332, 0
        %v1423 = vsel %vm1403, %v1334, 0
        %v1426 = vsel %vm1403, %v1336, 0
        %1428 = vmatpush.msra.mxu0 %v1360
        %1429 = vmatpush.msra.mxu0 %v1359
        %1430 = vmatpush.msra.mxu0 %v1358
        %1431 = vmatpush.msra.mxu0 %v1357
        %1432 = vmatpush.msra.mxu0 %v1356
        %1433 = vmatpush.msra.mxu0 %v1355
        %1434 = vmatpush.msra.mxu0 %v1354
        %1435 = vmatpush.msra.mxu0 %v1353
        %1436 = vmatpush.msra.mxu0 %v1352
        %1437 = vmatpush.msra.mxu0 %v1351
        %1438 = vmatpush.msra.mxu0 %v1350
        %1439 = vmatpush.msra.mxu0 %v1349
        %1440 = vmatpush.msra.mxu0 %v1348
        %1441 = vmatpush.msra.mxu0 %v1347
        %1442 = vmatpush.msra.mxu0 %v1346
        %1443 = vmatpush.msra.mxu0 %v1345
        %1444 = vmatmul.f32.gmra.mxu0 %v1321
        %v1445 = vpop.f32.mrf.mxu0
        %v1446 = vadd.f32 %v1366, %v1445
        %1447 = vmatmul.f32.gmra.mxu0 %v1323
        %v1448 = vpop.f32.mrf.mxu0
        %v1449 = vadd.f32 %v1371, %v1448
        %1450 = vmatmul.f32.gmra.mxu0 %v1325
        %v1451 = vpop.f32.mrf.mxu0
        %v1452 = vadd.f32 %v1376, %v1451
        %1453 = vmatmul.f32.gmra.mxu0 %v1327
        %v1454 = vpop.f32.mrf.mxu0
        %v1455 = vadd.f32 %v1381, %v1454
        %1456 = vmatmul.f32.gmra.mxu0 %v1329
        %v1457 = vpop.f32.mrf.mxu0
        %v1458 = vadd.f32 %v1386, %v1457
        %1459 = vmatmul.f32.gmra.mxu0 %v1331
        %v1460 = vpop.f32.mrf.mxu0
        %v1461 = vadd.f32 %v1391, %v1460
        %1462 = vmatmul.f32.gmra.mxu0 %v1333
        %v1463 = vpop.f32.mrf.mxu0
        %v1464 = vadd.f32 %v1396, %v1463
        %1465 = vmatmul.f32.gmra.mxu0 %v1335
        %v1466 = vpop.f32.mrf.mxu0
        %v1467 = vadd.f32 %v1401, %v1466
        %1468 = vdwg.mxu0
        %1469 = vmatpush.msra.mxu0 0.0
        %1470 = vmatpush.msra.mxu0 0.0
        %1471 = vmatpush.msra.mxu0 0.0
        %1472 = vmatpush.msra.mxu0 0.0
        %1473 = vmatpush.msra.mxu0 0.0
        %1474 = vmatpush.msra.mxu0 0.0
        %1475 = vmatpush.msra.mxu0 0.0
        %1476 = vmatpush.msra.mxu0 0.0
        %1477 = vmatpush.msra.mxu0 0.0
        %1478 = vmatpush.msra.mxu0 0.0
        %1479 = vmatpush.msra.mxu0 0.0
        %1480 = vmatpush.msra.mxu0 0.0
        %1481 = vmatpush.msra.mxu0 0.0
        %1482 = vmatpush.msra.mxu0 0.0
        %1483 = vmatpush.msra.mxu0 %v1362
        %1484 = vmatpush.msra.mxu0 %v1361
        %1485 = vmatmul.f32.gmra.mxu0 %v1405
        %v1486 = vpop.f32.mrf.mxu0
        %v1487 = vadd.f32 %v1446, %v1486
        %1488 = vmatmul.f32.gmra.mxu0 %v1408
        %v1489 = vpop.f32.mrf.mxu0
        %v1490 = vadd.f32 %v1449, %v1489
        %1491 = vmatmul.f32.gmra.mxu0 %v1411
        %v1492 = vpop.f32.mrf.mxu0
        %v1493 = vadd.f32 %v1452, %v1492
        %1494 = vmatmul.f32.gmra.mxu0 %v1414
        %v1495 = vpop.f32.mrf.mxu0
        %v1496 = vadd.f32 %v1455, %v1495
        %1497 = vmatmul.f32.gmra.mxu0 %v1417
        %v1498 = vpop.f32.mrf.mxu0
        %v1499 = vadd.f32 %v1458, %v1498
        %1500 = vmatmul.f32.gmra.mxu0 %v1420
        %v1501 = vpop.f32.mrf.mxu0
        %v1502 = vadd.f32 %v1461, %v1501
        %1503 = vmatmul.f32.gmra.mxu0 %v1423
        %v1504 = vpop.f32.mrf.mxu0
        %v1505 = vadd.f32 %v1464, %v1504
        %1506 = vmatmul.f32.gmra.mxu0 %v1426
        %v1507 = vpop.f32.mrf.mxu0
        %v1508 = vadd.f32 %v1467, %v1507
        %1509 = vdwg.mxu0
        %v1510 = vld [vmem:[#allocation8 + $0x108] sm:$0xff]
        %v1511 = vld [vmem:[#allocation8 + $0x110] sm:$0xff]
        %v1512 = vld [vmem:[#allocation8 + $0x118] sm:$0xff]
        %v1513 = vld [vmem:[#allocation8 + $0x120] sm:$0xff]
        %v1514 = vld [vmem:[#allocation8 + $0x128] sm:$0x3]
        %v1515 = vadd.f32 %v1487, %v1493
        %v1516 = vmul.f32 %v1515, 0.5
        %v1517 = vsub.f32 %v1487, %v1516
        %v1518 = vmul.f32 %v1517, %v1517
        %v1519 = vsub.f32 %v1493, %v1516
        %v1520 = vmul.f32 %v1519, %v1519
        %v1521 = vadd.f32 %v1518, %v1520
        %v1522 = vmul.f32 %v1521, 0.5
        %v1523 = vadd.f32 %v1522, 1e-30
        %v1524 = vrsqrt.pop %v1523
        %v1525 = vmul.f32 %v1524, %v1523
        %v1526 = vmul.f32 %v1525, %v1524
        %v1527 = vmul.f32 0.5, %v1526
        %v1528 = vsub.f32 1.5, %v1527
        %v1529 = vmul.f32 %v1524, %v1528
        %vm1530 = vweird.f32 %v1523
        %vm1531 = vweird.f32 %v1524
        %vm1532 = vmor %vm1530, %vm1531
        %v1533 = vsel %vm1532, %v1524, %v1529
        %v1534 = vmul.f32 %v1533, %v1516
        %v1535 = vadd.f32 %v1499, %v1505
        %v1536 = vmul.f32 %v1535, 0.5
        %v1537 = vsub.f32 %v1499, %v1536
        %v1538 = vmul.f32 %v1537, %v1537
        %v1539 = vsub.f32 %v1505, %v1536
        %v1540 = vmul.f32 %v1539, %v1539
        %v1541 = vadd.f32 %v1538, %v1540
        %v1542 = vmul.f32 %v1541, 0.5
        %v1543 = vadd.f32 %v1542, 1e-30
        %v1544 = vrsqrt.pop %v1543
        %v1545 = vmul.f32 %v1544, %v1543
        %v1546 = vmul.f32 %v1545, %v1544
        %v1547 = vmul.f32 0.5, %v1546
        %v1548 = vsub.f32 1.5, %v1547
        %v1549 = vmul.f32 %v1544, %v1548
        %vm1550 = vweird.f32 %v1543
        %vm1551 = vweird.f32 %v1544
        %vm1552 = vmor %vm1550, %vm1551
        %v1553 = vsel %vm1552, %v1544, %v1549
        %v1554 = vadd.f32 %v1533, %v1553
        %v1555 = vmul.f32 %v1553, %v1536
        %v1556 = vadd.f32 %v1534, %v1555
        %v1557 = vrcp.pop %v1554
        %v1558 = vmul.f32 %v1554, %v1557
        %v1559 = vsub.f32 1.0, %v1558
        %v1560 = vmul.f32 %v1557, %v1559
        %v1561 = vadd.f32 %v1557, %v1560
        %vm1562 = vweird.f32 %v1554
        %vm1563 = vweird.f32 %v1557
        %vm1564 = vmor %vm1562, %vm1563
        %v1565 = vsel %vm1564, %v1557, %v1561
        %v1566 = vand.u32 2147483647, %v1554
        %vm1567 = vcmp.eq.f32.partialorder %v1566, 8.507059e+37
        %v1568 = vand.u32 %v1554, 2147483648
        %v1569 = vor.u32 1.1754944e-38, %v1568
        %v1570 = vsel %vm1567, %v1569, %v1565
        %v1571 = vmul.f32 %v1556, %v1570
        %1572 = vmatpush.msra.mxu0 0.0
        %1573 = vmatpush.msra.mxu0 0.0
        %1574 = vmatpush.msra.mxu0 0.0
        %1575 = vmatpush.msra.mxu0 0.0
        %1576 = vmatpush.msra.mxu0 0.0
        %1577 = vmatpush.msra.mxu0 0.0
        %1578 = vmatpush.msra.mxu0 0.0
        %1579 = vmatpush.msra.mxu0 0.0
        %1580 = vmatpush.msra.mxu0 0.0
        %1581 = vmatpush.msra.mxu0 0.0
        %1582 = vmatpush.msra.mxu0 0.0
        %1583 = vmatpush.msra.mxu0 0.0
        %1584 = vmatpush.msra.mxu0 0.0
        %1585 = vmatpush.msra.mxu0 0.0
        %1586 = vmatpush.msra.mxu0 0.0
        %1587 = vmatpush.msra.mxu0 %v1571
        %1588 = vmatmul.f32.gmra.mxu0 %v789
        %v1589 = vpop.f32.mrf.mxu0
        %v1590 = vadd.f32 0.0, %v1589
        %1591 = vdwg.mxu0
        %v1593 = vsel %vm1262, %v1590, 0
        %1595 = vmatpush.msra.mxu0 0.0
        %1596 = vmatpush.msra.mxu0 0.0
        %1597 = vmatpush.msra.mxu0 0.0
        %1598 = vmatpush.msra.mxu0 0.0
        %1599 = vmatpush.msra.mxu0 0.0
        %1600 = vmatpush.msra.mxu0 0.0
        %1601 = vmatpush.msra.mxu0 0.0
        %1602 = vmatpush.msra.mxu0 0.0
        %1603 = vmatpush.msra.mxu0 0.0
        %1604 = vmatpush.msra.mxu0 0.0
        %1605 = vmatpush.msra.mxu0 0.0
        %1606 = vmatpush.msra.mxu0 0.0
        %1607 = vmatpush.msra.mxu0 %v1513
        %1608 = vmatpush.msra.mxu0 %v1512
        %1609 = vmatpush.msra.mxu0 %v1511
        %1610 = vmatpush.msra.mxu0 %v1510
        %1611 = vmatmul.f32.gmra.mxu0 %v1593
        %v1612 = vpop.f32.mrf.mxu0
        %v1613 = vadd.f32 0.0, %v1612
        %1614 = vdwg.mxu0
        %v1615 = vmul.f32 %v1613, 0.0078125
        %v1617 = vsel %vm832, %v1615, 0
        %v1620 = vsel %vm836, %v1514, 0
        %1622 = vmatpush.msra.mxu0 0.0
        %1623 = vmatpush.msra.mxu0 0.0
        %1624 = vmatpush.msra.mxu0 0.0
        %1625 = vmatpush.msra.mxu0 0.0
        %1626 = vmatpush.msra.mxu0 0.0
        %1627 = vmatpush.msra.mxu0 0.0
        %1628 = vmatpush.msra.mxu0 0.0
        %1629 = vmatpush.msra.mxu0 0.0
        %1630 = vmatpush.msra.mxu0 0.0
        %1631 = vmatpush.msra.mxu0 0.0
        %1632 = vmatpush.msra.mxu0 0.0
        %1633 = vmatpush.msra.mxu0 0.0
        %1634 = vmatpush.msra.mxu0 0.0
        %1635 = vmatpush.msra.mxu0 0.0
        %1636 = vmatpush.msra.mxu0 0.0
        %1637 = vmatpush.msra.mxu0 %v1620
        %1638 = vmatmul.f32.gmra.mxu0 %v1617
        %v1639 = vpop.f32.mrf.mxu0
        %v1640 = vadd.f32 0.0, %v1639
        %1641 = vdwg.mxu0
        %v1642 = vperm.slane %v1640, 0
        %v1643 = vsub.f32 %v1571, %v1642
        %v1644 = vmul.f32 %v1643, %v1643
        %1645 = vmatpush.msra.mxu0 0.0
        %1646 = vmatpush.msra.mxu0 0.0
        %1647 = vmatpush.msra.mxu0 0.0
        %1648 = vmatpush.msra.mxu0 0.0
        %1649 = vmatpush.msra.mxu0 0.0
        %1650 = vmatpush.msra.mxu0 0.0
        %1651 = vmatpush.msra.mxu0 0.0
        %1652 = vmatpush.msra.mxu0 0.0
        %1653 = vmatpush.msra.mxu0 0.0
        %1654 = vmatpush.msra.mxu0 0.0
        %1655 = vmatpush.msra.mxu0 0.0
        %1656 = vmatpush.msra.mxu0 0.0
        %1657 = vmatpush.msra.mxu0 0.0
        %1658 = vmatpush.msra.mxu0 0.0
        %1659 = vmatpush.msra.mxu0 0.0
        %1660 = vmatpush.msra.mxu0 %v1644
        %1661 = vmatmul.f32.gmra.mxu0 %v789
        %v1662 = vpop.f32.mrf.mxu0
        %v1663 = vadd.f32 0.0, %v1662
        %1664 = vdwg.mxu0
        %v1666 = vsel %vm1262, %v1663, 0
        %1668 = vmatpush.msra.mxu0 0.0
        %1669 = vmatpush.msra.mxu0 0.0
        %1670 = vmatpush.msra.mxu0 0.0
        %1671 = vmatpush.msra.mxu0 0.0
        %1672 = vmatpush.msra.mxu0 0.0
        %1673 = vmatpush.msra.mxu0 0.0
        %1674 = vmatpush.msra.mxu0 0.0
        %1675 = vmatpush.msra.mxu0 0.0
        %1676 = vmatpush.msra.mxu0 0.0
        %1677 = vmatpush.msra.mxu0 0.0
        %1678 = vmatpush.msra.mxu0 0.0
        %1679 = vmatpush.msra.mxu0 0.0
        %1680 = vmatpush.msra.mxu0 %v1513
        %1681 = vmatpush.msra.mxu0 %v1512
        %1682 = vmatpush.msra.mxu0 %v1511
        %1683 = vmatpush.msra.mxu0 %v1510
        %1684 = vmatmul.f32.gmra.mxu0 %v1666
        %v1685 = vpop.f32.mrf.mxu0
        %v1686 = vadd.f32 0.0, %v1685
        %1687 = vdwg.mxu0
        %v1688 = vmul.f32 %v1686, 0.0078125
        %v1689 = vadd.f32 %v1688, 1e-05
        %v1690 = vrsqrt.pop %v1689
        %v1691 = vmul.f32 %v1690, %v1689
        %v1692 = vmul.f32 %v1691, %v1690
        %v1693 = vmul.f32 0.5, %v1692
        %v1694 = vsub.f32 1.5, %v1693
        %v1695 = vmul.f32 %v1690, %v1694
        %vm1696 = vweird.f32 %v1689
        %vm1697 = vweird.f32 %v1690
        %vm1698 = vmor %vm1696, %vm1697
        %v1699 = vsel %vm1698, %v1690, %v1695
        %v1701 = vsel %vm832, %v1699, 0
        %1703 = vmatpush.msra.mxu0 0.0
        %1704 = vmatpush.msra.mxu0 0.0
        %1705 = vmatpush.msra.mxu0 0.0
        %1706 = vmatpush.msra.mxu0 0.0
        %1707 = vmatpush.msra.mxu0 0.0
        %1708 = vmatpush.msra.mxu0 0.0
        %1709 = vmatpush.msra.mxu0 0.0
        %1710 = vmatpush.msra.mxu0 0.0
        %1711 = vmatpush.msra.mxu0 0.0
        %1712 = vmatpush.msra.mxu0 0.0
        %1713 = vmatpush.msra.mxu0 0.0
        %1714 = vmatpush.msra.mxu0 0.0
        %1715 = vmatpush.msra.mxu0 0.0
        %1716 = vmatpush.msra.mxu0 0.0
        %1717 = vmatpush.msra.mxu0 0.0
        %1718 = vmatpush.msra.mxu0 %v1620
        %1719 = vmatmul.f32.gmra.mxu0 %v1701
        %v1720 = vpop.f32.mrf.mxu0
        %v1721 = vadd.f32 0.0, %v1720
        %1722 = vdwg.mxu0
        %v1723 = vperm.slane %v1721, 0
        %v1724 = vmul.f32 %v1643, %v1723
        %1725 = vst.msk [vmem:[#allocation3] sm:$0xff] %vm1262, %v1724
        %v1726 = vadd.f32 %v1490, %v1496
        %v1727 = vmul.f32 %v1726, 0.5
        %v1728 = vsub.f32 %v1490, %v1727
        %v1729 = vmul.f32 %v1728, %v1728
        %v1730 = vsub.f32 %v1496, %v1727
        %v1731 = vmul.f32 %v1730, %v1730
        %v1732 = vadd.f32 %v1729, %v1731
        %v1733 = vmul.f32 %v1732, 0.5
        %v1734 = vadd.f32 %v1733, 1e-30
        %v1735 = vrsqrt.pop %v1734
        %v1736 = vmul.f32 %v1735, %v1734
        %v1737 = vmul.f32 %v1736, %v1735
        %v1738 = vmul.f32 0.5, %v1737
        %v1739 = vsub.f32 1.5, %v1738
        %v1740 = vmul.f32 %v1735, %v1739
        %vm1741 = vweird.f32 %v1734
        %vm1742 = vweird.f32 %v1735
        %vm1743 = vmor %vm1741, %vm1742
        %v1744 = vsel %vm1743, %v1735, %v1740
        %v1745 = vmul.f32 %v1744, %v1727
        %v1746 = vadd.f32 %v1502, %v1508
        %v1747 = vmul.f32 %v1746, 0.5
        %v1748 = vsub.f32 %v1502, %v1747
        %v1749 = vmul.f32 %v1748, %v1748
        %v1750 = vsub.f32 %v1508, %v1747
        %v1751 = vmul.f32 %v1750, %v1750
        %v1752 = vadd.f32 %v1749, %v1751
        %v1753 = vmul.f32 %v1752, 0.5
        %v1754 = vadd.f32 %v1753, 1e-30
        %v1755 = vrsqrt.pop %v1754
        %v1756 = vmul.f32 %v1755, %v1754
        %v1757 = vmul.f32 %v1756, %v1755
        %v1758 = vmul.f32 0.5, %v1757
        %v1759 = vsub.f32 1.5, %v1758
        %v1760 = vmul.f32 %v1755, %v1759
        %vm1761 = vweird.f32 %v1754
        %vm1762 = vweird.f32 %v1755
        %vm1763 = vmor %vm1761, %vm1762
        %v1764 = vsel %vm1763, %v1755, %v1760
        %v1765 = vadd.f32 %v1744, %v1764
        %v1766 = vmul.f32 %v1764, %v1747
        %v1767 = vadd.f32 %v1745, %v1766
        %v1768 = vrcp.pop %v1765
        %v1769 = vmul.f32 %v1765, %v1768
        %v1770 = vsub.f32 1.0, %v1769
        %v1771 = vmul.f32 %v1768, %v1770
        %v1772 = vadd.f32 %v1768, %v1771
        %vm1773 = vweird.f32 %v1765
        %vm1774 = vweird.f32 %v1768
        %vm1775 = vmor %vm1773, %vm1774
        %v1776 = vsel %vm1775, %v1768, %v1772
        %v1777 = vand.u32 2147483647, %v1765
        %vm1778 = vcmp.eq.f32.partialorder %v1777, 8.507059e+37
        %v1779 = vand.u32 %v1765, 2147483648
        %v1780 = vor.u32 1.1754944e-38, %v1779
        %v1781 = vsel %vm1778, %v1780, %v1776
        %v1782 = vmul.f32 %v1767, %v1781
        %1783 = vmatpush.msra.mxu0 0.0
        %1784 = vmatpush.msra.mxu0 0.0
        %1785 = vmatpush.msra.mxu0 0.0
        %1786 = vmatpush.msra.mxu0 0.0
        %1787 = vmatpush.msra.mxu0 0.0
        %1788 = vmatpush.msra.mxu0 0.0
        %1789 = vmatpush.msra.mxu0 0.0
        %1790 = vmatpush.msra.mxu0 0.0
        %1791 = vmatpush.msra.mxu0 0.0
        %1792 = vmatpush.msra.mxu0 0.0
        %1793 = vmatpush.msra.mxu0 0.0
        %1794 = vmatpush.msra.mxu0 0.0
        %1795 = vmatpush.msra.mxu0 0.0
        %1796 = vmatpush.msra.mxu0 0.0
        %1797 = vmatpush.msra.mxu0 0.0
        %1798 = vmatpush.msra.mxu0 %v1782
        %1799 = vmatmul.f32.gmra.mxu0 %v789
        %v1800 = vpop.f32.mrf.mxu0
        %v1801 = vadd.f32 0.0, %v1800
        %1802 = vdwg.mxu0
        %v1804 = vsel %vm1262, %v1801, 0
        %1806 = vmatpush.msra.mxu0 0.0
        %1807 = vmatpush.msra.mxu0 0.0
        %1808 = vmatpush.msra.mxu0 0.0
        %1809 = vmatpush.msra.mxu0 0.0
        %1810 = vmatpush.msra.mxu0 0.0
        %1811 = vmatpush.msra.mxu0 0.0
        %1812 = vmatpush.msra.mxu0 0.0
        %1813 = vmatpush.msra.mxu0 0.0
        %1814 = vmatpush.msra.mxu0 0.0
        %1815 = vmatpush.msra.mxu0 0.0
        %1816 = vmatpush.msra.mxu0 0.0
        %1817 = vmatpush.msra.mxu0 0.0
        %1818 = vmatpush.msra.mxu0 %v1513
        %1819 = vmatpush.msra.mxu0 %v1512
        %1820 = vmatpush.msra.mxu0 %v1511
        %1821 = vmatpush.msra.mxu0 %v1510
        %1822 = vmatmul.f32.gmra.mxu0 %v1804
        %v1823 = vpop.f32.mrf.mxu0
        %v1824 = vadd.f32 0.0, %v1823
        %1825 = vdwg.mxu0
        %v1826 = vmul.f32 %v1824, 0.0078125
        %v1828 = vsel %vm832, %v1826, 0
        %1830 = vmatpush.msra.mxu0 0.0
        %1831 = vmatpush.msra.mxu0 0.0
        %1832 = vmatpush.msra.mxu0 0.0
        %1833 = vmatpush.msra.mxu0 0.0
        %1834 = vmatpush.msra.mxu0 0.0
        %1835 = vmatpush.msra.mxu0 0.0
        %1836 = vmatpush.msra.mxu0 0.0
        %1837 = vmatpush.msra.mxu0 0.0
        %1838 = vmatpush.msra.mxu0 0.0
        %1839 = vmatpush.msra.mxu0 0.0
        %1840 = vmatpush.msra.mxu0 0.0
        %1841 = vmatpush.msra.mxu0 0.0
        %1842 = vmatpush.msra.mxu0 0.0
        %1843 = vmatpush.msra.mxu0 0.0
        %1844 = vmatpush.msra.mxu0 0.0
        %1845 = vmatpush.msra.mxu0 %v1620
        %1846 = vmatmul.f32.gmra.mxu0 %v1828
        %v1847 = vpop.f32.mrf.mxu0
        %v1848 = vadd.f32 0.0, %v1847
        %1849 = vdwg.mxu0
        %v1850 = vperm.slane %v1848, 0
        %v1851 = vsub.f32 %v1782, %v1850
        %v1852 = vmul.f32 %v1851, %v1851
        %1853 = vmatpush.msra.mxu0 0.0
        %1854 = vmatpush.msra.mxu0 0.0
        %1855 = vmatpush.msra.mxu0 0.0
        %1856 = vmatpush.msra.mxu0 0.0
        %1857 = vmatpush.msra.mxu0 0.0
        %1858 = vmatpush.msra.mxu0 0.0
        %1859 = vmatpush.msra.mxu0 0.0
        %1860 = vmatpush.msra.mxu0 0.0
        %1861 = vmatpush.msra.mxu0 0.0
        %1862 = vmatpush.msra.mxu0 0.0
        %1863 = vmatpush.msra.mxu0 0.0
        %1864 = vmatpush.msra.mxu0 0.0
        %1865 = vmatpush.msra.mxu0 0.0
        %1866 = vmatpush.msra.mxu0 0.0
        %1867 = vmatpush.msra.mxu0 0.0
        %1868 = vmatpush.msra.mxu0 %v1852
        %1869 = vmatmul.f32.gmra.mxu0 %v789
        %v1870 = vpop.f32.mrf.mxu0
        %v1871 = vadd.f32 0.0, %v1870
        %1872 = vdwg.mxu0
        %v1874 = vsel %vm1262, %v1871, 0
        %1876 = vmatpush.msra.mxu0 0.0
        %1877 = vmatpush.msra.mxu0 0.0
        %1878 = vmatpush.msra.mxu0 0.0
        %1879 = vmatpush.msra.mxu0 0.0
        %1880 = vmatpush.msra.mxu0 0.0
        %1881 = vmatpush.msra.mxu0 0.0
        %1882 = vmatpush.msra.mxu0 0.0
        %1883 = vmatpush.msra.mxu0 0.0
        %1884 = vmatpush.msra.mxu0 0.0
        %1885 = vmatpush.msra.mxu0 0.0
        %1886 = vmatpush.msra.mxu0 0.0
        %1887 = vmatpush.msra.mxu0 0.0
        %1888 = vmatpush.msra.mxu0 %v1513
        %1889 = vmatpush.msra.mxu0 %v1512
        %1890 = vmatpush.msra.mxu0 %v1511
        %1891 = vmatpush.msra.mxu0 %v1510
        %1892 = vmatmul.f32.gmra.mxu0 %v1874
        %v1893 = vpop.f32.mrf.mxu0
        %v1894 = vadd.f32 0.0, %v1893
        %1895 = vdwg.mxu0
        %v1896 = vmul.f32 %v1894, 0.0078125
        %v1897 = vadd.f32 %v1896, 1e-05
        %v1898 = vrsqrt.pop %v1897
        %v1899 = vmul.f32 %v1898, %v1897
        %v1900 = vmul.f32 %v1899, %v1898
        %v1901 = vmul.f32 0.5, %v1900
        %v1902 = vsub.f32 1.5, %v1901
        %v1903 = vmul.f32 %v1898, %v1902
        %vm1904 = vweird.f32 %v1897
        %vm1905 = vweird.f32 %v1898
        %vm1906 = vmor %vm1904, %vm1905
        %v1907 = vsel %vm1906, %v1898, %v1903
        %v1909 = vsel %vm832, %v1907, 0
        %1911 = vmatpush.msra.mxu0 0.0
        %1912 = vmatpush.msra.mxu0 0.0
        %1913 = vmatpush.msra.mxu0 0.0
        %1914 = vmatpush.msra.mxu0 0.0
        %1915 = vmatpush.msra.mxu0 0.0
        %1916 = vmatpush.msra.mxu0 0.0
        %1917 = vmatpush.msra.mxu0 0.0
        %1918 = vmatpush.msra.mxu0 0.0
        %1919 = vmatpush.msra.mxu0 0.0
        %1920 = vmatpush.msra.mxu0 0.0
        %1921 = vmatpush.msra.mxu0 0.0
        %1922 = vmatpush.msra.mxu0 0.0
        %1923 = vmatpush.msra.mxu0 0.0
        %1924 = vmatpush.msra.mxu0 0.0
        %1925 = vmatpush.msra.mxu0 0.0
        %1926 = vmatpush.msra.mxu0 %v1620
        %1927 = vmatmul.f32.gmra.mxu0 %v1909
        %v1928 = vpop.f32.mrf.mxu0
        %v1929 = vadd.f32 0.0, %v1928
        %1930 = vdwg.mxu0
        %v1931 = vperm.slane %v1929, 0
        %v1932 = vmul.f32 %v1851, %v1931
        %1933 = vst.msk [vmem:[#allocation3 + $0x8] sm:$0xff] %vm1262, %v1932
        %v1934 = vld [vmem:[#allocation3] sm:$0xff]
        %v1935 = vld [vmem:[#allocation3 + $0x8] sm:$0xff]
        %v1936 = vld [vmem:[#allocation6 + $0x900] sm:$0xff]
        %v1937 = vld [vmem:[#allocation6 + $0x908] sm:$0xff]
        %v1938 = vld [vmem:[#allocation6 + $0x910] sm:$0xff]
        %v1939 = vld [vmem:[#allocation6 + $0x948] sm:$0xff]
        %v1940 = vld [vmem:[#allocation6 + $0x950] sm:$0xff]
        %v1941 = vld [vmem:[#allocation6 + $0x958] sm:$0xff]
        %v1942 = vld [vmem:[#allocation6 + $0x990] sm:$0xff]
        %v1943 = vld [vmem:[#allocation6 + $0x998] sm:$0xff]
        %v1944 = vld [vmem:[#allocation6 + $0x9a0] sm:$0xff]
        %v1945 = vld [vmem:[#allocation6 + $0x9d8] sm:$0xff]
        %v1946 = vld [vmem:[#allocation6 + $0x9e0] sm:$0xff]
        %v1947 = vld [vmem:[#allocation6 + $0x9e8] sm:$0xff]
        %v1949 = vsel %vm1262, %v1934, 0
        %v1952 = vsel %vm1262, %v1935, 0
        %1954 = vmatpush.msra.mxu0 0.0
        %1955 = vmatpush.msra.mxu0 0.0
        %1956 = vmatpush.msra.mxu0 0.0
        %1957 = vmatpush.msra.mxu0 0.0
        %1958 = vmatpush.msra.mxu0 0.0
        %1959 = vmatpush.msra.mxu0 0.0
        %1960 = vmatpush.msra.mxu0 0.0
        %1961 = vmatpush.msra.mxu0 0.0
        %1962 = vmatpush.msra.mxu0 0.0
        %1963 = vmatpush.msra.mxu0 0.0
        %1964 = vmatpush.msra.mxu0 0.0
        %1965 = vmatpush.msra.mxu0 0.0
        %1966 = vmatpush.msra.mxu0 %v1945
        %1967 = vmatpush.msra.mxu0 %v1942
        %1968 = vmatpush.msra.mxu0 %v1939
        %1969 = vmatpush.msra.mxu0 %v1936
        %1970 = vmatmul.f32.gmra.mxu0 %v1949
        %v1971 = vpop.f32.mrf.mxu0
        %v1972 = vadd.f32 0.0, %v1971
        %1973 = vmatmul.f32.gmra.mxu0 %v1952
        %v1974 = vpop.f32.mrf.mxu0
        %v1975 = vadd.f32 0.0, %v1974
        %1976 = vdwg.mxu0
        %1977 = vmatpush.msra.mxu0 0.0
        %1978 = vmatpush.msra.mxu0 0.0
        %1979 = vmatpush.msra.mxu0 0.0
        %1980 = vmatpush.msra.mxu0 0.0
        %1981 = vmatpush.msra.mxu0 0.0
        %1982 = vmatpush.msra.mxu0 0.0
        %1983 = vmatpush.msra.mxu0 0.0
        %1984 = vmatpush.msra.mxu0 0.0
        %1985 = vmatpush.msra.mxu0 0.0
        %1986 = vmatpush.msra.mxu0 0.0
        %1987 = vmatpush.msra.mxu0 0.0
        %1988 = vmatpush.msra.mxu0 0.0
        %1989 = vmatpush.msra.mxu0 %v1946
        %1990 = vmatpush.msra.mxu0 %v1943
        %1991 = vmatpush.msra.mxu0 %v1940
        %1992 = vmatpush.msra.mxu0 %v1937
        %1993 = vmatmul.f32.gmra.mxu0 %v1949
        %v1994 = vpop.f32.mrf.mxu0
        %v1995 = vadd.f32 0.0, %v1994
        %1996 = vmatmul.f32.gmra.mxu0 %v1952
        %v1997 = vpop.f32.mrf.mxu0
        %v1998 = vadd.f32 0.0, %v1997
        %1999 = vdwg.mxu0
        %2000 = vmatpush.msra.mxu0 0.0
        %2001 = vmatpush.msra.mxu0 0.0
        %2002 = vmatpush.msra.mxu0 0.0
        %2003 = vmatpush.msra.mxu0 0.0
        %2004 = vmatpush.msra.mxu0 0.0
        %2005 = vmatpush.msra.mxu0 0.0
        %2006 = vmatpush.msra.mxu0 0.0
        %2007 = vmatpush.msra.mxu0 0.0
        %2008 = vmatpush.msra.mxu0 0.0
        %2009 = vmatpush.msra.mxu0 0.0
        %2010 = vmatpush.msra.mxu0 0.0
        %2011 = vmatpush.msra.mxu0 0.0
        %2012 = vmatpush.msra.mxu0 %v1947
        %2013 = vmatpush.msra.mxu0 %v1944
        %2014 = vmatpush.msra.mxu0 %v1941
        %2015 = vmatpush.msra.mxu0 %v1938
        %2016 = vmatmul.f32.gmra.mxu0 %v1949
        %v2017 = vpop.f32.mrf.mxu0
        %v2018 = vadd.f32 0.0, %v2017
        %2019 = vmatmul.f32.gmra.mxu0 %v1952
        %v2020 = vpop.f32.mrf.mxu0
        %v2021 = vadd.f32 0.0, %v2020
        %2022 = vdwg.mxu0
        %2023 = vst.msk [vmem:[#allocation2] sm:$0xff] %vm1262, %v1972
        %2024 = vst.msk [vmem:[#allocation2 + $0x8] sm:$0xff] %vm1262, %v1975
        %2027 = vrot.lane.b32.xlu0 %v1972, 96
        %v2028 = vpop.permute.xlu0 %2027
        %2029 = vrot.lane.b32.xlu0 %v1975, 96
        %v2030 = vpop.permute.xlu0 %2029
        %2033 = vst.msk [vmem:[#allocation2 + $0x10] sm:$0xff] %vm1262, %v2028
        %2034 = vst.msk [vmem:[#allocation2 + $0x18] sm:$0xff] %vm1262, %v2030
        %2035 = vrot.lane.b32.xlu0 %v1972, 64
        %v2036 = vpop.permute.xlu0 %2035
        %2037 = vrot.lane.b32.xlu0 %v1975, 64
        %v2038 = vpop.permute.xlu0 %2037
        %2041 = vst.msk [vmem:[#allocation2 + $0x20] sm:$0xff] %vm1262, %v2036
        %2042 = vst.msk [vmem:[#allocation2 + $0x28] sm:$0xff] %vm1262, %v2038
        %2043 = vrot.lane.b32.xlu0 %v1972, 32
        %v2044 = vpop.permute.xlu0 %2043
        %2045 = vrot.lane.b32.xlu0 %v1975, 32
        %v2046 = vpop.permute.xlu0 %2045
        %2049 = vst.msk [vmem:[#allocation2 + $0x30] sm:$0xff] %vm1262, %v2044
        %2050 = vst.msk [vmem:[#allocation2 + $0x38] sm:$0xff] %vm1262, %v2046
        %2051 = vst.msk [vmem:[#allocation2 + $0x40] sm:$0xff] %vm1262, %v1995
        %2052 = vst.msk [vmem:[#allocation2 + $0x48] sm:$0xff] %vm1262, %v1998
        %2055 = vrot.lane.b32.xlu0 %v1995, 96
        %v2056 = vpop.permute.xlu0 %2055
        %2057 = vrot.lane.b32.xlu0 %v1998, 96
        %v2058 = vpop.permute.xlu0 %2057
        %2061 = vst.msk [vmem:[#allocation2 + $0x50] sm:$0xff] %vm1262, %v2056
        %2062 = vst.msk [vmem:[#allocation2 + $0x58] sm:$0xff] %vm1262, %v2058
        %2063 = vrot.lane.b32.xlu0 %v1995, 64
        %v2064 = vpop.permute.xlu0 %2063
        %2065 = vrot.lane.b32.xlu0 %v1998, 64
        %v2066 = vpop.permute.xlu0 %2065
        %2069 = vst.msk [vmem:[#allocation2 + $0x60] sm:$0xff] %vm1262, %v2064
        %2070 = vst.msk [vmem:[#allocation2 + $0x68] sm:$0xff] %vm1262, %v2066
        %2071 = vrot.lane.b32.xlu0 %v1995, 32
        %v2072 = vpop.permute.xlu0 %2071
        %2073 = vrot.lane.b32.xlu0 %v1998, 32
        %v2074 = vpop.permute.xlu0 %2073
        %2077 = vst.msk [vmem:[#allocation2 + $0x70] sm:$0xff] %vm1262, %v2072
        %2078 = vst.msk [vmem:[#allocation2 + $0x78] sm:$0xff] %vm1262, %v2074
        %2079 = vst.msk [vmem:[#allocation2 + $0x80] sm:$0xff] %vm1262, %v2018
        %2080 = vst.msk [vmem:[#allocation2 + $0x88] sm:$0xff] %vm1262, %v2021
        %v2081 = vld [vmem:[%s2 + $0x100] sm:$0xff]
        %v2082 = vld [vmem:[%s2 + $0x108] sm:$0xff]
        %v2083 = vld [vmem:[%s2 + $0x110] sm:$0xff]
        %v2084 = vld [vmem:[%s2 + $0x118] sm:$0xff]
        %v2085 = vld [vmem:[%s2 + $0x120] sm:$0xff]
        %v2086 = vld [vmem:[%s2 + $0x128] sm:$0xff]
        %v2087 = vld [vmem:[%s2 + $0x130] sm:$0xff]
        %v2088 = vld [vmem:[%s2 + $0x138] sm:$0xff]
        %v2089 = vld [vmem:[%s2 + $0x140] sm:$0xff]
        %v2090 = vld [vmem:[%s2 + $0x148] sm:$0xff]
        %v2091 = vld [vmem:[%s2 + $0x150] sm:$0xff]
        %v2092 = vld [vmem:[%s2 + $0x158] sm:$0xff]
        %v2093 = vld [vmem:[%s2 + $0x160] sm:$0xff]
        %v2094 = vld [vmem:[%s2 + $0x168] sm:$0xff]
        %v2095 = vld [vmem:[%s2 + $0x170] sm:$0xff]
        %v2096 = vld [vmem:[%s2 + $0x178] sm:$0xff]
        %v2097 = vld [vmem:[#allocation8 + $0x130] sm:$0xff]
        %v2098 = vld [vmem:[#allocation8 + $0x138] sm:$0xff]
        %v2099 = vld [vmem:[#allocation8 + $0x140] sm:$0xff]
        %v2100 = vld [vmem:[#allocation8 + $0x148] sm:$0xff]
        %v2101 = vld [vmem:[#allocation8 + $0x150] sm:$0xff]
        %v2102 = vld [vmem:[#allocation8 + $0x158] sm:$0xff]
        %v2103 = vld [vmem:[#allocation8 + $0x160] sm:$0xff]
        %v2104 = vld [vmem:[#allocation8 + $0x168] sm:$0xff]
        %v2105 = vld [vmem:[#allocation2] sm:$0xff]
        %v2106 = vld [vmem:[#allocation2 + $0x8] sm:$0xff]
        %v2107 = vld [vmem:[#allocation2 + $0x10] sm:$0xff]
        %v2108 = vld [vmem:[#allocation2 + $0x18] sm:$0xff]
        %v2109 = vld [vmem:[#allocation2 + $0x20] sm:$0xff]
        %v2110 = vld [vmem:[#allocation2 + $0x28] sm:$0xff]
        %v2111 = vld [vmem:[#allocation2 + $0x30] sm:$0xff]
        %v2112 = vld [vmem:[#allocation2 + $0x38] sm:$0xff]
        %v2113 = vld [vmem:[#allocation2 + $0x40] sm:$0xff]
        %v2114 = vld [vmem:[#allocation2 + $0x48] sm:$0xff]
        %v2115 = vld [vmem:[#allocation2 + $0x50] sm:$0xff]
        %v2116 = vld [vmem:[#allocation2 + $0x58] sm:$0xff]
        %v2117 = vld [vmem:[#allocation2 + $0x60] sm:$0xff]
        %v2118 = vld [vmem:[#allocation2 + $0x68] sm:$0xff]
        %v2119 = vld [vmem:[#allocation2 + $0x70] sm:$0xff]
        %v2120 = vld [vmem:[#allocation2 + $0x78] sm:$0xff]
        %v2121 = vld [vmem:[#allocation2 + $0x80] sm:$0xff]
        %v2122 = vld [vmem:[#allocation2 + $0x88] sm:$0xff]
        %2124 = vset.pattern.permute.xlu0 0
        %2125 = vperm.xlu0 %2124, %v2097
        %v2126 = vpop.permute.xlu0 %2125
        %2129 = vset.pattern.permute.xlu0 0
        %2130 = vperm.xlu0 %2129, %v2098
        %v2131 = vpop.permute.xlu0 %2130
        %2134 = vset.pattern.permute.xlu0 0
        %2135 = vperm.xlu0 %2134, %v2099
        %v2136 = vpop.permute.xlu0 %2135
        %2139 = vset.pattern.permute.xlu0 0
        %2140 = vperm.xlu0 %2139, %v2100
        %v2141 = vpop.permute.xlu0 %2140
        %2144 = vset.pattern.permute.xlu0 0
        %2145 = vperm.xlu0 %2144, %v2101
        %v2146 = vpop.permute.xlu0 %2145
        %2149 = vset.pattern.permute.xlu0 0
        %2150 = vperm.xlu0 %2149, %v2102
        %v2151 = vpop.permute.xlu0 %2150
        %2154 = vset.pattern.permute.xlu0 0
        %2155 = vperm.xlu0 %2154, %v2103
        %v2156 = vpop.permute.xlu0 %2155
        %2159 = vset.pattern.permute.xlu0 0
        %2160 = vperm.xlu0 %2159, %v2104
        %v2161 = vpop.permute.xlu0 %2160
        %v2164 = vsel %vm1403, %v2082, 0
        %v2167 = vsel %vm1403, %v2084, 0
        %v2170 = vsel %vm1403, %v2086, 0
        %v2173 = vsel %vm1403, %v2088, 0
        %v2176 = vsel %vm1403, %v2090, 0
        %v2179 = vsel %vm1403, %v2092, 0
        %v2182 = vsel %vm1403, %v2094, 0
        %v2185 = vsel %vm1403, %v2096, 0
        %2187 = vmatpush.msra.mxu0 %v2120
        %2188 = vmatpush.msra.mxu0 %v2119
        %2189 = vmatpush.msra.mxu0 %v2118
        %2190 = vmatpush.msra.mxu0 %v2117
        %2191 = vmatpush.msra.mxu0 %v2116
        %2192 = vmatpush.msra.mxu0 %v2115
        %2193 = vmatpush.msra.mxu0 %v2114
        %2194 = vmatpush.msra.mxu0 %v2113
        %2195 = vmatpush.msra.mxu0 %v2112
        %2196 = vmatpush.msra.mxu0 %v2111
        %2197 = vmatpush.msra.mxu0 %v2110
        %2198 = vmatpush.msra.mxu0 %v2109
        %2199 = vmatpush.msra.mxu0 %v2108
        %2200 = vmatpush.msra.mxu0 %v2107
        %2201 = vmatpush.msra.mxu0 %v2106
        %2202 = vmatpush.msra.mxu0 %v2105
        %2203 = vmatmul.f32.gmra.mxu0 %v2081
        %v2204 = vpop.f32.mrf.mxu0
        %v2205 = vadd.f32 %v2126, %v2204
        %2206 = vmatmul.f32.gmra.mxu0 %v2083
        %v2207 = vpop.f32.mrf.mxu0
        %v2208 = vadd.f32 %v2131, %v2207
        %2209 = vmatmul.f32.gmra.mxu0 %v2085
        %v2210 = vpop.f32.mrf.mxu0
        %v2211 = vadd.f32 %v2136, %v2210
        %2212 = vmatmul.f32.gmra.mxu0 %v2087
        %v2213 = vpop.f32.mrf.mxu0
        %v2214 = vadd.f32 %v2141, %v2213
        %2215 = vmatmul.f32.gmra.mxu0 %v2089
        %v2216 = vpop.f32.mrf.mxu0
        %v2217 = vadd.f32 %v2146, %v2216
        %2218 = vmatmul.f32.gmra.mxu0 %v2091
        %v2219 = vpop.f32.mrf.mxu0
        %v2220 = vadd.f32 %v2151, %v2219
        %2221 = vmatmul.f32.gmra.mxu0 %v2093
        %v2222 = vpop.f32.mrf.mxu0
        %v2223 = vadd.f32 %v2156, %v2222
        %2224 = vmatmul.f32.gmra.mxu0 %v2095
        %v2225 = vpop.f32.mrf.mxu0
        %v2226 = vadd.f32 %v2161, %v2225
        %2227 = vdwg.mxu0
        %2228 = vmatpush.msra.mxu0 0.0
        %2229 = vmatpush.msra.mxu0 0.0
        %2230 = vmatpush.msra.mxu0 0.0
        %2231 = vmatpush.msra.mxu0 0.0
        %2232 = vmatpush.msra.mxu0 0.0
        %2233 = vmatpush.msra.mxu0 0.0
        %2234 = vmatpush.msra.mxu0 0.0
        %2235 = vmatpush.msra.mxu0 0.0
        %2236 = vmatpush.msra.mxu0 0.0
        %2237 = vmatpush.msra.mxu0 0.0
        %2238 = vmatpush.msra.mxu0 0.0
        %2239 = vmatpush.msra.mxu0 0.0
        %2240 = vmatpush.msra.mxu0 0.0
        %2241 = vmatpush.msra.mxu0 0.0
        %2242 = vmatpush.msra.mxu0 %v2122
        %2243 = vmatpush.msra.mxu0 %v2121
        %2244 = vmatmul.f32.gmra.mxu0 %v2164
        %v2245 = vpop.f32.mrf.mxu0
        %v2246 = vadd.f32 %v2205, %v2245
        %2247 = vmatmul.f32.gmra.mxu0 %v2167
        %v2248 = vpop.f32.mrf.mxu0
        %v2249 = vadd.f32 %v2208, %v2248
        %2250 = vmatmul.f32.gmra.mxu0 %v2170
        %v2251 = vpop.f32.mrf.mxu0
        %v2252 = vadd.f32 %v2211, %v2251
        %2253 = vmatmul.f32.gmra.mxu0 %v2173
        %v2254 = vpop.f32.mrf.mxu0
        %v2255 = vadd.f32 %v2214, %v2254
        %2256 = vmatmul.f32.gmra.mxu0 %v2176
        %v2257 = vpop.f32.mrf.mxu0
        %v2258 = vadd.f32 %v2217, %v2257
        %2259 = vmatmul.f32.gmra.mxu0 %v2179
        %v2260 = vpop.f32.mrf.mxu0
        %v2261 = vadd.f32 %v2220, %v2260
        %2262 = vmatmul.f32.gmra.mxu0 %v2182
        %v2263 = vpop.f32.mrf.mxu0
        %v2264 = vadd.f32 %v2223, %v2263
        %2265 = vmatmul.f32.gmra.mxu0 %v2185
        %v2266 = vpop.f32.mrf.mxu0
        %v2267 = vadd.f32 %v2226, %v2266
        %2268 = vdwg.mxu0
        %v2269 = vld [vmem:[#allocation8 + $0x170] sm:$0xff]
        %v2270 = vld [vmem:[#allocation8 + $0x178] sm:$0xff]
        %v2271 = vld [vmem:[#allocation8 + $0x180] sm:$0xff]
        %v2272 = vld [vmem:[#allocation8 + $0x188] sm:$0xff]
        %v2273 = vld [vmem:[#allocation8 + $0x190] sm:$0x3]
        %v2274 = vadd.f32 %v2246, %v2252
        %v2275 = vmul.f32 %v2274, 0.5
        %v2276 = vsub.f32 %v2246, %v2275
        %v2277 = vmul.f32 %v2276, %v2276
        %v2278 = vsub.f32 %v2252, %v2275
        %v2279 = vmul.f32 %v2278, %v2278
        %v2280 = vadd.f32 %v2277, %v2279
        %v2281 = vmul.f32 %v2280, 0.5
        %v2282 = vadd.f32 %v2281, 1e-30
        %v2283 = vrsqrt.pop %v2282
        %v2284 = vmul.f32 %v2283, %v2282
        %v2285 = vmul.f32 %v2284, %v2283
        %v2286 = vmul.f32 0.5, %v2285
        %v2287 = vsub.f32 1.5, %v2286
        %v2288 = vmul.f32 %v2283, %v2287
        %vm2289 = vweird.f32 %v2282
        %vm2290 = vweird.f32 %v2283
        %vm2291 = vmor %vm2289, %vm2290
        %v2292 = vsel %vm2291, %v2283, %v2288
        %v2293 = vmul.f32 %v2292, %v2275
        %v2294 = vadd.f32 %v2258, %v2264
        %v2295 = vmul.f32 %v2294, 0.5
        %v2296 = vsub.f32 %v2258, %v2295
        %v2297 = vmul.f32 %v2296, %v2296
        %v2298 = vsub.f32 %v2264, %v2295
        %v2299 = vmul.f32 %v2298, %v2298
        %v2300 = vadd.f32 %v2297, %v2299
        %v2301 = vmul.f32 %v2300, 0.5
        %v2302 = vadd.f32 %v2301, 1e-30
        %v2303 = vrsqrt.pop %v2302
        %v2304 = vmul.f32 %v2303, %v2302
        %v2305 = vmul.f32 %v2304, %v2303
        %v2306 = vmul.f32 0.5, %v2305
        %v2307 = vsub.f32 1.5, %v2306
        %v2308 = vmul.f32 %v2303, %v2307
        %vm2309 = vweird.f32 %v2302
        %vm2310 = vweird.f32 %v2303
        %vm2311 = vmor %vm2309, %vm2310
        %v2312 = vsel %vm2311, %v2303, %v2308
        %v2313 = vadd.f32 %v2292, %v2312
        %v2314 = vmul.f32 %v2312, %v2295
        %v2315 = vadd.f32 %v2293, %v2314
        %v2316 = vrcp.pop %v2313
        %v2317 = vmul.f32 %v2313, %v2316
        %v2318 = vsub.f32 1.0, %v2317
        %v2319 = vmul.f32 %v2316, %v2318
        %v2320 = vadd.f32 %v2316, %v2319
        %vm2321 = vweird.f32 %v2313
        %vm2322 = vweird.f32 %v2316
        %vm2323 = vmor %vm2321, %vm2322
        %v2324 = vsel %vm2323, %v2316, %v2320
        %v2325 = vand.u32 2147483647, %v2313
        %vm2326 = vcmp.eq.f32.partialorder %v2325, 8.507059e+37
        %v2327 = vand.u32 %v2313, 2147483648
        %v2328 = vor.u32 1.1754944e-38, %v2327
        %v2329 = vsel %vm2326, %v2328, %v2324
        %v2330 = vmul.f32 %v2315, %v2329
        %2331 = vmatpush.msra.mxu0 0.0
        %2332 = vmatpush.msra.mxu0 0.0
        %2333 = vmatpush.msra.mxu0 0.0
        %2334 = vmatpush.msra.mxu0 0.0
        %2335 = vmatpush.msra.mxu0 0.0
        %2336 = vmatpush.msra.mxu0 0.0
        %2337 = vmatpush.msra.mxu0 0.0
        %2338 = vmatpush.msra.mxu0 0.0
        %2339 = vmatpush.msra.mxu0 0.0
        %2340 = vmatpush.msra.mxu0 0.0
        %2341 = vmatpush.msra.mxu0 0.0
        %2342 = vmatpush.msra.mxu0 0.0
        %2343 = vmatpush.msra.mxu0 0.0
        %2344 = vmatpush.msra.mxu0 0.0
        %2345 = vmatpush.msra.mxu0 0.0
        %2346 = vmatpush.msra.mxu0 %v2330
        %2347 = vmatmul.f32.gmra.mxu0 %v789
        %v2348 = vpop.f32.mrf.mxu0
        %v2349 = vadd.f32 0.0, %v2348
        %2350 = vdwg.mxu0
        %v2352 = vsel %vm1262, %v2349, 0
        %2354 = vmatpush.msra.mxu0 0.0
        %2355 = vmatpush.msra.mxu0 0.0
        %2356 = vmatpush.msra.mxu0 0.0
        %2357 = vmatpush.msra.mxu0 0.0
        %2358 = vmatpush.msra.mxu0 0.0
        %2359 = vmatpush.msra.mxu0 0.0
        %2360 = vmatpush.msra.mxu0 0.0
        %2361 = vmatpush.msra.mxu0 0.0
        %2362 = vmatpush.msra.mxu0 0.0
        %2363 = vmatpush.msra.mxu0 0.0
        %2364 = vmatpush.msra.mxu0 0.0
        %2365 = vmatpush.msra.mxu0 0.0
        %2366 = vmatpush.msra.mxu0 %v2272
        %2367 = vmatpush.msra.mxu0 %v2271
        %2368 = vmatpush.msra.mxu0 %v2270
        %2369 = vmatpush.msra.mxu0 %v2269
        %2370 = vmatmul.f32.gmra.mxu0 %v2352
        %v2371 = vpop.f32.mrf.mxu0
        %v2372 = vadd.f32 0.0, %v2371
        %2373 = vdwg.mxu0
        %v2374 = vmul.f32 %v2372, 0.0078125
        %v2376 = vsel %vm832, %v2374, 0
        %v2379 = vsel %vm836, %v2273, 0
        %2381 = vmatpush.msra.mxu0 0.0
        %2382 = vmatpush.msra.mxu0 0.0
        %2383 = vmatpush.msra.mxu0 0.0
        %2384 = vmatpush.msra.mxu0 0.0
        %2385 = vmatpush.msra.mxu0 0.0
        %2386 = vmatpush.msra.mxu0 0.0
        %2387 = vmatpush.msra.mxu0 0.0
        %2388 = vmatpush.msra.mxu0 0.0
        %2389 = vmatpush.msra.mxu0 0.0
        %2390 = vmatpush.msra.mxu0 0.0
        %2391 = vmatpush.msra.mxu0 0.0
        %2392 = vmatpush.msra.mxu0 0.0
        %2393 = vmatpush.msra.mxu0 0.0
        %2394 = vmatpush.msra.mxu0 0.0
        %2395 = vmatpush.msra.mxu0 0.0
        %2396 = vmatpush.msra.mxu0 %v2379
        %2397 = vmatmul.f32.gmra.mxu0 %v2376
        %v2398 = vpop.f32.mrf.mxu0
        %v2399 = vadd.f32 0.0, %v2398
        %2400 = vdwg.mxu0
        %v2401 = vperm.slane %v2399, 0
        %v2402 = vsub.f32 %v2330, %v2401
        %v2403 = vmul.f32 %v2402, %v2402
        %2404 = vmatpush.msra.mxu0 0.0
        %2405 = vmatpush.msra.mxu0 0.0
        %2406 = vmatpush.msra.mxu0 0.0
        %2407 = vmatpush.msra.mxu0 0.0
        %2408 = vmatpush.msra.mxu0 0.0
        %2409 = vmatpush.msra.mxu0 0.0
        %2410 = vmatpush.msra.mxu0 0.0
        %2411 = vmatpush.msra.mxu0 0.0
        %2412 = vmatpush.msra.mxu0 0.0
        %2413 = vmatpush.msra.mxu0 0.0
        %2414 = vmatpush.msra.mxu0 0.0
        %2415 = vmatpush.msra.mxu0 0.0
        %2416 = vmatpush.msra.mxu0 0.0
        %2417 = vmatpush.msra.mxu0 0.0
        %2418 = vmatpush.msra.mxu0 0.0
        %2419 = vmatpush.msra.mxu0 %v2403
        %2420 = vmatmul.f32.gmra.mxu0 %v789
        %v2421 = vpop.f32.mrf.mxu0
        %v2422 = vadd.f32 0.0, %v2421
        %2423 = vdwg.mxu0
        %v2425 = vsel %vm1262, %v2422, 0
        %2427 = vmatpush.msra.mxu0 0.0
        %2428 = vmatpush.msra.mxu0 0.0
        %2429 = vmatpush.msra.mxu0 0.0
        %2430 = vmatpush.msra.mxu0 0.0
        %2431 = vmatpush.msra.mxu0 0.0
        %2432 = vmatpush.msra.mxu0 0.0
        %2433 = vmatpush.msra.mxu0 0.0
        %2434 = vmatpush.msra.mxu0 0.0
        %2435 = vmatpush.msra.mxu0 0.0
        %2436 = vmatpush.msra.mxu0 0.0
        %2437 = vmatpush.msra.mxu0 0.0
        %2438 = vmatpush.msra.mxu0 0.0
        %2439 = vmatpush.msra.mxu0 %v2272
        %2440 = vmatpush.msra.mxu0 %v2271
        %2441 = vmatpush.msra.mxu0 %v2270
        %2442 = vmatpush.msra.mxu0 %v2269
        %2443 = vmatmul.f32.gmra.mxu0 %v2425
        %v2444 = vpop.f32.mrf.mxu0
        %v2445 = vadd.f32 0.0, %v2444
        %2446 = vdwg.mxu0
        %v2447 = vmul.f32 %v2445, 0.0078125
        %v2448 = vadd.f32 %v2447, 1e-05
        %v2449 = vrsqrt.pop %v2448
        %v2450 = vmul.f32 %v2449, %v2448
        %v2451 = vmul.f32 %v2450, %v2449
        %v2452 = vmul.f32 0.5, %v2451
        %v2453 = vsub.f32 1.5, %v2452
        %v2454 = vmul.f32 %v2449, %v2453
        %vm2455 = vweird.f32 %v2448
        %vm2456 = vweird.f32 %v2449
        %vm2457 = vmor %vm2455, %vm2456
        %v2458 = vsel %vm2457, %v2449, %v2454
        %v2460 = vsel %vm832, %v2458, 0
        %2462 = vmatpush.msra.mxu0 0.0
        %2463 = vmatpush.msra.mxu0 0.0
        %2464 = vmatpush.msra.mxu0 0.0
        %2465 = vmatpush.msra.mxu0 0.0
        %2466 = vmatpush.msra.mxu0 0.0
        %2467 = vmatpush.msra.mxu0 0.0
        %2468 = vmatpush.msra.mxu0 0.0
        %2469 = vmatpush.msra.mxu0 0.0
        %2470 = vmatpush.msra.mxu0 0.0
        %2471 = vmatpush.msra.mxu0 0.0
        %2472 = vmatpush.msra.mxu0 0.0
        %2473 = vmatpush.msra.mxu0 0.0
        %2474 = vmatpush.msra.mxu0 0.0
        %2475 = vmatpush.msra.mxu0 0.0
        %2476 = vmatpush.msra.mxu0 0.0
        %2477 = vmatpush.msra.mxu0 %v2379
        %2478 = vmatmul.f32.gmra.mxu0 %v2460
        %v2479 = vpop.f32.mrf.mxu0
        %v2480 = vadd.f32 0.0, %v2479
        %2481 = vdwg.mxu0
        %v2482 = vperm.slane %v2480, 0
        %v2483 = vmul.f32 %v2402, %v2482
        %2484 = vst.msk [vmem:[#allocation3] sm:$0xff] %vm1262, %v2483
        %v2485 = vadd.f32 %v2249, %v2255
        %v2486 = vmul.f32 %v2485, 0.5
        %v2487 = vsub.f32 %v2249, %v2486
        %v2488 = vmul.f32 %v2487, %v2487
        %v2489 = vsub.f32 %v2255, %v2486
        %v2490 = vmul.f32 %v2489, %v2489
        %v2491 = vadd.f32 %v2488, %v2490
        %v2492 = vmul.f32 %v2491, 0.5
        %v2493 = vadd.f32 %v2492, 1e-30
        %v2494 = vrsqrt.pop %v2493
        %v2495 = vmul.f32 %v2494, %v2493
        %v2496 = vmul.f32 %v2495, %v2494
        %v2497 = vmul.f32 0.5, %v2496
        %v2498 = vsub.f32 1.5, %v2497
        %v2499 = vmul.f32 %v2494, %v2498
        %vm2500 = vweird.f32 %v2493
        %vm2501 = vweird.f32 %v2494
        %vm2502 = vmor %vm2500, %vm2501
        %v2503 = vsel %vm2502, %v2494, %v2499
        %v2504 = vmul.f32 %v2503, %v2486
        %v2505 = vadd.f32 %v2261, %v2267
        %v2506 = vmul.f32 %v2505, 0.5
        %v2507 = vsub.f32 %v2261, %v2506
        %v2508 = vmul.f32 %v2507, %v2507
        %v2509 = vsub.f32 %v2267, %v2506
        %v2510 = vmul.f32 %v2509, %v2509
        %v2511 = vadd.f32 %v2508, %v2510
        %v2512 = vmul.f32 %v2511, 0.5
        %v2513 = vadd.f32 %v2512, 1e-30
        %v2514 = vrsqrt.pop %v2513
        %v2515 = vmul.f32 %v2514, %v2513
        %v2516 = vmul.f32 %v2515, %v2514
        %v2517 = vmul.f32 0.5, %v2516
        %v2518 = vsub.f32 1.5, %v2517
        %v2519 = vmul.f32 %v2514, %v2518
        %vm2520 = vweird.f32 %v2513
        %vm2521 = vweird.f32 %v2514
        %vm2522 = vmor %vm2520, %vm2521
        %v2523 = vsel %vm2522, %v2514, %v2519
        %v2524 = vadd.f32 %v2503, %v2523
        %v2525 = vmul.f32 %v2523, %v2506
        %v2526 = vadd.f32 %v2504, %v2525
        %v2527 = vrcp.pop %v2524
        %v2528 = vmul.f32 %v2524, %v2527
        %v2529 = vsub.f32 1.0, %v2528
        %v2530 = vmul.f32 %v2527, %v2529
        %v2531 = vadd.f32 %v2527, %v2530
        %vm2532 = vweird.f32 %v2524
        %vm2533 = vweird.f32 %v2527
        %vm2534 = vmor %vm2532, %vm2533
        %v2535 = vsel %vm2534, %v2527, %v2531
        %v2536 = vand.u32 2147483647, %v2524
        %vm2537 = vcmp.eq.f32.partialorder %v2536, 8.507059e+37
        %v2538 = vand.u32 %v2524, 2147483648
        %v2539 = vor.u32 1.1754944e-38, %v2538
        %v2540 = vsel %vm2537, %v2539, %v2535
        %v2541 = vmul.f32 %v2526, %v2540
        %2542 = vmatpush.msra.mxu0 0.0
        %2543 = vmatpush.msra.mxu0 0.0
        %2544 = vmatpush.msra.mxu0 0.0
        %2545 = vmatpush.msra.mxu0 0.0
        %2546 = vmatpush.msra.mxu0 0.0
        %2547 = vmatpush.msra.mxu0 0.0
        %2548 = vmatpush.msra.mxu0 0.0
        %2549 = vmatpush.msra.mxu0 0.0
        %2550 = vmatpush.msra.mxu0 0.0
        %2551 = vmatpush.msra.mxu0 0.0
        %2552 = vmatpush.msra.mxu0 0.0
        %2553 = vmatpush.msra.mxu0 0.0
        %2554 = vmatpush.msra.mxu0 0.0
        %2555 = vmatpush.msra.mxu0 0.0
        %2556 = vmatpush.msra.mxu0 0.0
        %2557 = vmatpush.msra.mxu0 %v2541
        %2558 = vmatmul.f32.gmra.mxu0 %v789
        %v2559 = vpop.f32.mrf.mxu0
        %v2560 = vadd.f32 0.0, %v2559
        %2561 = vdwg.mxu0
        %v2563 = vsel %vm1262, %v2560, 0
        %2565 = vmatpush.msra.mxu0 0.0
        %2566 = vmatpush.msra.mxu0 0.0
        %2567 = vmatpush.msra.mxu0 0.0
        %2568 = vmatpush.msra.mxu0 0.0
        %2569 = vmatpush.msra.mxu0 0.0
        %2570 = vmatpush.msra.mxu0 0.0
        %2571 = vmatpush.msra.mxu0 0.0
        %2572 = vmatpush.msra.mxu0 0.0
        %2573 = vmatpush.msra.mxu0 0.0
        %2574 = vmatpush.msra.mxu0 0.0
        %2575 = vmatpush.msra.mxu0 0.0
        %2576 = vmatpush.msra.mxu0 0.0
        %2577 = vmatpush.msra.mxu0 %v2272
        %2578 = vmatpush.msra.mxu0 %v2271
        %2579 = vmatpush.msra.mxu0 %v2270
        %2580 = vmatpush.msra.mxu0 %v2269
        %2581 = vmatmul.f32.gmra.mxu0 %v2563
        %v2582 = vpop.f32.mrf.mxu0
        %v2583 = vadd.f32 0.0, %v2582
        %2584 = vdwg.mxu0
        %v2585 = vmul.f32 %v2583, 0.0078125
        %v2587 = vsel %vm832, %v2585, 0
        %2589 = vmatpush.msra.mxu0 0.0
        %2590 = vmatpush.msra.mxu0 0.0
        %2591 = vmatpush.msra.mxu0 0.0
        %2592 = vmatpush.msra.mxu0 0.0
        %2593 = vmatpush.msra.mxu0 0.0
        %2594 = vmatpush.msra.mxu0 0.0
        %2595 = vmatpush.msra.mxu0 0.0
        %2596 = vmatpush.msra.mxu0 0.0
        %2597 = vmatpush.msra.mxu0 0.0
        %2598 = vmatpush.msra.mxu0 0.0
        %2599 = vmatpush.msra.mxu0 0.0
        %2600 = vmatpush.msra.mxu0 0.0
        %2601 = vmatpush.msra.mxu0 0.0
        %2602 = vmatpush.msra.mxu0 0.0
        %2603 = vmatpush.msra.mxu0 0.0
        %2604 = vmatpush.msra.mxu0 %v2379
        %2605 = vmatmul.f32.gmra.mxu0 %v2587
        %v2606 = vpop.f32.mrf.mxu0
        %v2607 = vadd.f32 0.0, %v2606
        %2608 = vdwg.mxu0
        %v2609 = vperm.slane %v2607, 0
        %v2610 = vsub.f32 %v2541, %v2609
        %v2611 = vmul.f32 %v2610, %v2610
        %2612 = vmatpush.msra.mxu0 0.0
        %2613 = vmatpush.msra.mxu0 0.0
        %2614 = vmatpush.msra.mxu0 0.0
        %2615 = vmatpush.msra.mxu0 0.0
        %2616 = vmatpush.msra.mxu0 0.0
        %2617 = vmatpush.msra.mxu0 0.0
        %2618 = vmatpush.msra.mxu0 0.0
        %2619 = vmatpush.msra.mxu0 0.0
        %2620 = vmatpush.msra.mxu0 0.0
        %2621 = vmatpush.msra.mxu0 0.0
        %2622 = vmatpush.msra.mxu0 0.0
        %2623 = vmatpush.msra.mxu0 0.0
        %2624 = vmatpush.msra.mxu0 0.0
        %2625 = vmatpush.msra.mxu0 0.0
        %2626 = vmatpush.msra.mxu0 0.0
        %2627 = vmatpush.msra.mxu0 %v2611
        %2628 = vmatmul.f32.gmra.mxu0 %v789
        %v2629 = vpop.f32.mrf.mxu0
        %v2630 = vadd.f32 0.0, %v2629
        %2631 = vdwg.mxu0
        %v2633 = vsel %vm1262, %v2630, 0
        %2635 = vmatpush.msra.mxu0 0.0
        %2636 = vmatpush.msra.mxu0 0.0
        %2637 = vmatpush.msra.mxu0 0.0
        %2638 = vmatpush.msra.mxu0 0.0
        %2639 = vmatpush.msra.mxu0 0.0
        %2640 = vmatpush.msra.mxu0 0.0
        %2641 = vmatpush.msra.mxu0 0.0
        %2642 = vmatpush.msra.mxu0 0.0
        %2643 = vmatpush.msra.mxu0 0.0
        %2644 = vmatpush.msra.mxu0 0.0
        %2645 = vmatpush.msra.mxu0 0.0
        %2646 = vmatpush.msra.mxu0 0.0
        %2647 = vmatpush.msra.mxu0 %v2272
        %2648 = vmatpush.msra.mxu0 %v2271
        %2649 = vmatpush.msra.mxu0 %v2270
        %2650 = vmatpush.msra.mxu0 %v2269
        %2651 = vmatmul.f32.gmra.mxu0 %v2633
        %v2652 = vpop.f32.mrf.mxu0
        %v2653 = vadd.f32 0.0, %v2652
        %2654 = vdwg.mxu0
        %v2655 = vmul.f32 %v2653, 0.0078125
        %v2656 = vadd.f32 %v2655, 1e-05
        %v2657 = vrsqrt.pop %v2656
        %v2658 = vmul.f32 %v2657, %v2656
        %v2659 = vmul.f32 %v2658, %v2657
        %v2660 = vmul.f32 0.5, %v2659
        %v2661 = vsub.f32 1.5, %v2660
        %v2662 = vmul.f32 %v2657, %v2661
        %vm2663 = vweird.f32 %v2656
        %vm2664 = vweird.f32 %v2657
        %vm2665 = vmor %vm2663, %vm2664
        %v2666 = vsel %vm2665, %v2657, %v2662
        %v2668 = vsel %vm832, %v2666, 0
        %2670 = vmatpush.msra.mxu0 0.0
        %2671 = vmatpush.msra.mxu0 0.0
        %2672 = vmatpush.msra.mxu0 0.0
        %2673 = vmatpush.msra.mxu0 0.0
        %2674 = vmatpush.msra.mxu0 0.0
        %2675 = vmatpush.msra.mxu0 0.0
        %2676 = vmatpush.msra.mxu0 0.0
        %2677 = vmatpush.msra.mxu0 0.0
        %2678 = vmatpush.msra.mxu0 0.0
        %2679 = vmatpush.msra.mxu0 0.0
        %2680 = vmatpush.msra.mxu0 0.0
        %2681 = vmatpush.msra.mxu0 0.0
        %2682 = vmatpush.msra.mxu0 0.0
        %2683 = vmatpush.msra.mxu0 0.0
        %2684 = vmatpush.msra.mxu0 0.0
        %2685 = vmatpush.msra.mxu0 %v2379
        %2686 = vmatmul.f32.gmra.mxu0 %v2668
        %v2687 = vpop.f32.mrf.mxu0
        %v2688 = vadd.f32 0.0, %v2687
        %2689 = vdwg.mxu0
        %v2690 = vperm.slane %v2688, 0
        %v2691 = vmul.f32 %v2610, %v2690
        %2692 = vst.msk [vmem:[#allocation3 + $0x8] sm:$0xff] %vm1262, %v2691
        %v2693 = vld [vmem:[#allocation3] sm:$0xff]
        %v2694 = vld [vmem:[#allocation3 + $0x8] sm:$0xff]
        %v2695 = vld [vmem:[#allocation6 + $0xa20] sm:$0xff]
        %v2696 = vld [vmem:[#allocation6 + $0xa68] sm:$0xff]
        %v2697 = vld [vmem:[#allocation6 + $0xab0] sm:$0xff]
        %v2698 = vld [vmem:[#allocation6 + $0xaf8] sm:$0xff]
        %v2700 = vsel %vm1262, %v2693, 0
        %v2703 = vsel %vm1262, %v2694, 0
        %2705 = vmatpush.msra.mxu0 0.0
        %2706 = vmatpush.msra.mxu0 0.0
        %2707 = vmatpush.msra.mxu0 0.0
        %2708 = vmatpush.msra.mxu0 0.0
        %2709 = vmatpush.msra.mxu0 0.0
        %2710 = vmatpush.msra.mxu0 0.0
        %2711 = vmatpush.msra.mxu0 0.0
        %2712 = vmatpush.msra.mxu0 0.0
        %2713 = vmatpush.msra.mxu0 0.0
        %2714 = vmatpush.msra.mxu0 0.0
        %2715 = vmatpush.msra.mxu0 0.0
        %2716 = vmatpush.msra.mxu0 0.0
        %2717 = vmatpush.msra.mxu0 %v2698
        %2718 = vmatpush.msra.mxu0 %v2697
        %2719 = vmatpush.msra.mxu0 %v2696
        %2720 = vmatpush.msra.mxu0 %v2695
        %2721 = vmatmul.f32.gmra.mxu0 %v2700
        %v2722 = vpop.f32.mrf.mxu0
        %v2723 = vadd.f32 0.0, %v2722
        %2724 = vmatmul.f32.gmra.mxu0 %v2703
        %v2725 = vpop.f32.mrf.mxu0
        %v2726 = vadd.f32 0.0, %v2725
        %2727 = vdwg.mxu0
        %2728 = vst.msk [vmem:[#allocation2] sm:$0xff] %vm787, %v2723
        %2729 = vst.msk [vmem:[#allocation2 + $0x8] sm:$0xff] %vm787, %v2726
        %2732 = vrot.lane.b32.xlu0 %v2723, 120
        %v2733 = vpop.permute.xlu0 %2732
        %2734 = vrot.lane.b32.xlu0 %v2726, 120
        %v2735 = vpop.permute.xlu0 %2734
        %2738 = vst.msk [vmem:[#allocation2 + $0x10] sm:$0xff] %vm787, %v2733
        %2739 = vst.msk [vmem:[#allocation2 + $0x18] sm:$0xff] %vm787, %v2735
        %2740 = vrot.lane.b32.xlu0 %v2723, 112
        %v2741 = vpop.permute.xlu0 %2740
        %2742 = vrot.lane.b32.xlu0 %v2726, 112
        %v2743 = vpop.permute.xlu0 %2742
        %2746 = vst.msk [vmem:[#allocation2 + $0x20] sm:$0xff] %vm787, %v2741
        %2747 = vst.msk [vmem:[#allocation2 + $0x28] sm:$0xff] %vm787, %v2743
        %2748 = vrot.lane.b32.xlu0 %v2723, 104
        %v2749 = vpop.permute.xlu0 %2748
        %2750 = vrot.lane.b32.xlu0 %v2726, 104
        %v2751 = vpop.permute.xlu0 %2750
        %2754 = vst.msk [vmem:[#allocation2 + $0x30] sm:$0xff] %vm787, %v2749
        %2755 = vst.msk [vmem:[#allocation2 + $0x38] sm:$0xff] %vm787, %v2751
        %2756 = vrot.lane.b32.xlu0 %v2723, 96
        %v2757 = vpop.permute.xlu0 %2756
        %2758 = vrot.lane.b32.xlu0 %v2726, 96
        %v2759 = vpop.permute.xlu0 %2758
        %2762 = vst.msk [vmem:[#allocation2 + $0x40] sm:$0xff] %vm787, %v2757
        %2763 = vst.msk [vmem:[#allocation2 + $0x48] sm:$0xff] %vm787, %v2759
        %2764 = vrot.lane.b32.xlu0 %v2723, 88
        %v2765 = vpop.permute.xlu0 %2764
        %2766 = vrot.lane.b32.xlu0 %v2726, 88
        %v2767 = vpop.permute.xlu0 %2766
        %2770 = vst.msk [vmem:[#allocation2 + $0x50] sm:$0xff] %vm787, %v2765
        %2771 = vst.msk [vmem:[#allocation2 + $0x58] sm:$0xff] %vm787, %v2767
        %2772 = vrot.lane.b32.xlu0 %v2723, 80
        %v2773 = vpop.permute.xlu0 %2772
        %2774 = vrot.lane.b32.xlu0 %v2726, 80
        %v2775 = vpop.permute.xlu0 %2774
        %2778 = vst.msk [vmem:[#allocation2 + $0x60] sm:$0xff] %vm787, %v2773
        %2779 = vst.msk [vmem:[#allocation2 + $0x68] sm:$0xff] %vm787, %v2775
        %2780 = vrot.lane.b32.xlu0 %v2723, 72
        %v2781 = vpop.permute.xlu0 %2780
        %2782 = vrot.lane.b32.xlu0 %v2726, 72
        %v2783 = vpop.permute.xlu0 %2782
        %2786 = vst.msk [vmem:[#allocation2 + $0x70] sm:$0xff] %vm787, %v2781
        %2787 = vst.msk [vmem:[#allocation2 + $0x78] sm:$0xff] %vm787, %v2783
        %2788 = vrot.lane.b32.xlu0 %v2723, 64
        %v2789 = vpop.permute.xlu0 %2788
        %2790 = vrot.lane.b32.xlu0 %v2726, 64
        %v2791 = vpop.permute.xlu0 %2790
        %2794 = vst.msk [vmem:[#allocation2 + $0x80] sm:$0xff] %vm787, %v2789
        %2795 = vst.msk [vmem:[#allocation2 + $0x88] sm:$0xff] %vm787, %v2791
        %v2796 = vld [vmem:[%s2 + $0x180] sm:$0xff]
        %v2797 = vld [vmem:[%s2 + $0x188] sm:$0xff]
        %v2798 = vld [vmem:[%s2 + $0x190] sm:$0xff]
        %v2799 = vld [vmem:[%s2 + $0x198] sm:$0xff]
        %v2800 = vld [vmem:[%s2 + $0x1a0] sm:$0xff]
        %v2801 = vld [vmem:[%s2 + $0x1a8] sm:$0xff]
        %v2802 = vld [vmem:[%s2 + $0x1b0] sm:$0xff]
        %v2803 = vld [vmem:[%s2 + $0x1b8] sm:$0xff]
        %v2804 = vld [vmem:[%s2 + $0x1c0] sm:$0xff]
        %v2805 = vld [vmem:[%s2 + $0x1c8] sm:$0xff]
        %v2806 = vld [vmem:[%s2 + $0x1d0] sm:$0xff]
        %v2807 = vld [vmem:[%s2 + $0x1d8] sm:$0xff]
        %v2808 = vld [vmem:[%s2 + $0x1e0] sm:$0xff]
        %v2809 = vld [vmem:[%s2 + $0x1e8] sm:$0xff]
        %v2810 = vld [vmem:[%s2 + $0x1f0] sm:$0xff]
        %v2811 = vld [vmem:[%s2 + $0x1f8] sm:$0xff]
        %v2812 = vld [vmem:[#allocation8 + $0x198] sm:$0xff]
        %v2813 = vld [vmem:[#allocation8 + $0x1a0] sm:$0xff]
        %v2814 = vld [vmem:[#allocation8 + $0x1a8] sm:$0xff]
        %v2815 = vld [vmem:[#allocation8 + $0x1b0] sm:$0xff]
        %v2816 = vld [vmem:[#allocation8 + $0x1b8] sm:$0xff]
        %v2817 = vld [vmem:[#allocation8 + $0x1c0] sm:$0xff]
        %v2818 = vld [vmem:[#allocation8 + $0x1c8] sm:$0xff]
        %v2819 = vld [vmem:[#allocation8 + $0x1d0] sm:$0xff]
        %v2820 = vld [vmem:[#allocation2] sm:$0xff]
        %v2821 = vld [vmem:[#allocation2 + $0x8] sm:$0xff]
        %v2822 = vld [vmem:[#allocation2 + $0x10] sm:$0xff]
        %v2823 = vld [vmem:[#allocation2 + $0x18] sm:$0xff]
        %v2824 = vld [vmem:[#allocation2 + $0x20] sm:$0xff]
        %v2825 = vld [vmem:[#allocation2 + $0x28] sm:$0xff]
        %v2826 = vld [vmem:[#allocation2 + $0x30] sm:$0xff]
        %v2827 = vld [vmem:[#allocation2 + $0x38] sm:$0xff]
        %v2828 = vld [vmem:[#allocation2 + $0x40] sm:$0xff]
        %v2829 = vld [vmem:[#allocation2 + $0x48] sm:$0xff]
        %v2830 = vld [vmem:[#allocation2 + $0x50] sm:$0xff]
        %v2831 = vld [vmem:[#allocation2 + $0x58] sm:$0xff]
        %v2832 = vld [vmem:[#allocation2 + $0x60] sm:$0xff]
        %v2833 = vld [vmem:[#allocation2 + $0x68] sm:$0xff]
        %v2834 = vld [vmem:[#allocation2 + $0x70] sm:$0xff]
        %v2835 = vld [vmem:[#allocation2 + $0x78] sm:$0xff]
        %v2836 = vld [vmem:[#allocation2 + $0x80] sm:$0xff]
        %v2837 = vld [vmem:[#allocation2 + $0x88] sm:$0xff]
        %2839 = vset.pattern.permute.xlu0 0
        %2840 = vperm.xlu0 %2839, %v2812
        %v2841 = vpop.permute.xlu0 %2840
        %2844 = vset.pattern.permute.xlu0 0
        %2845 = vperm.xlu0 %2844, %v2813
        %v2846 = vpop.permute.xlu0 %2845
        %2849 = vset.pattern.permute.xlu0 0
        %2850 = vperm.xlu0 %2849, %v2814
        %v2851 = vpop.permute.xlu0 %2850
        %2854 = vset.pattern.permute.xlu0 0
        %2855 = vperm.xlu0 %2854, %v2815
        %v2856 = vpop.permute.xlu0 %2855
        %2859 = vset.pattern.permute.xlu0 0
        %2860 = vperm.xlu0 %2859, %v2816
        %v2861 = vpop.permute.xlu0 %2860
        %2864 = vset.pattern.permute.xlu0 0
        %2865 = vperm.xlu0 %2864, %v2817
        %v2866 = vpop.permute.xlu0 %2865
        %2869 = vset.pattern.permute.xlu0 0
        %2870 = vperm.xlu0 %2869, %v2818
        %v2871 = vpop.permute.xlu0 %2870
        %2874 = vset.pattern.permute.xlu0 0
        %2875 = vperm.xlu0 %2874, %v2819
        %v2876 = vpop.permute.xlu0 %2875
        %v2879 = vsel %vm1403, %v2797, 0
        %v2882 = vsel %vm1403, %v2799, 0
        %v2885 = vsel %vm1403, %v2801, 0
        %v2888 = vsel %vm1403, %v2803, 0
        %v2891 = vsel %vm1403, %v2805, 0
        %v2894 = vsel %vm1403, %v2807, 0
        %v2897 = vsel %vm1403, %v2809, 0
        %v2900 = vsel %vm1403, %v2811, 0
        %2902 = vmatpush.msra.mxu0 %v2835
        %2903 = vmatpush.msra.mxu0 %v2834
        %2904 = vmatpush.msra.mxu0 %v2833
        %2905 = vmatpush.msra.mxu0 %v2832
        %2906 = vmatpush.msra.mxu0 %v2831
        %2907 = vmatpush.msra.mxu0 %v2830
        %2908 = vmatpush.msra.mxu0 %v2829
        %2909 = vmatpush.msra.mxu0 %v2828
        %2910 = vmatpush.msra.mxu0 %v2827
        %2911 = vmatpush.msra.mxu0 %v2826
        %2912 = vmatpush.msra.mxu0 %v2825
        %2913 = vmatpush.msra.mxu0 %v2824
        %2914 = vmatpush.msra.mxu0 %v2823
        %2915 = vmatpush.msra.mxu0 %v2822
        %2916 = vmatpush.msra.mxu0 %v2821
        %2917 = vmatpush.msra.mxu0 %v2820
        %2918 = vmatmul.f32.gmra.mxu0 %v2796
        %v2919 = vpop.f32.mrf.mxu0
        %v2920 = vadd.f32 %v2841, %v2919
        %2921 = vmatmul.f32.gmra.mxu0 %v2798
        %v2922 = vpop.f32.mrf.mxu0
        %v2923 = vadd.f32 %v2846, %v2922
        %2924 = vmatmul.f32.gmra.mxu0 %v2800
        %v2925 = vpop.f32.mrf.mxu0
        %v2926 = vadd.f32 %v2851, %v2925
        %2927 = vmatmul.f32.gmra.mxu0 %v2802
        %v2928 = vpop.f32.mrf.mxu0
        %v2929 = vadd.f32 %v2856, %v2928
        %2930 = vmatmul.f32.gmra.mxu0 %v2804
        %v2931 = vpop.f32.mrf.mxu0
        %v2932 = vadd.f32 %v2861, %v2931
        %2933 = vmatmul.f32.gmra.mxu0 %v2806
        %v2934 = vpop.f32.mrf.mxu0
        %v2935 = vadd.f32 %v2866, %v2934
        %2936 = vmatmul.f32.gmra.mxu0 %v2808
        %v2937 = vpop.f32.mrf.mxu0
        %v2938 = vadd.f32 %v2871, %v2937
        %2939 = vmatmul.f32.gmra.mxu0 %v2810
        %v2940 = vpop.f32.mrf.mxu0
        %v2941 = vadd.f32 %v2876, %v2940
        %2942 = vdwg.mxu0
        %2943 = vmatpush.msra.mxu0 0.0
        %2944 = vmatpush.msra.mxu0 0.0
        %2945 = vmatpush.msra.mxu0 0.0
        %2946 = vmatpush.msra.mxu0 0.0
        %2947 = vmatpush.msra.mxu0 0.0
        %2948 = vmatpush.msra.mxu0 0.0
        %2949 = vmatpush.msra.mxu0 0.0
        %2950 = vmatpush.msra.mxu0 0.0
        %2951 = vmatpush.msra.mxu0 0.0
        %2952 = vmatpush.msra.mxu0 0.0
        %2953 = vmatpush.msra.mxu0 0.0
        %2954 = vmatpush.msra.mxu0 0.0
        %2955 = vmatpush.msra.mxu0 0.0
        %2956 = vmatpush.msra.mxu0 0.0
        %2957 = vmatpush.msra.mxu0 %v2837
        %2958 = vmatpush.msra.mxu0 %v2836
        %2959 = vmatmul.f32.gmra.mxu0 %v2879
        %v2960 = vpop.f32.mrf.mxu0
        %v2961 = vadd.f32 %v2920, %v2960
        %2962 = vmatmul.f32.gmra.mxu0 %v2882
        %v2963 = vpop.f32.mrf.mxu0
        %v2964 = vadd.f32 %v2923, %v2963
        %2965 = vmatmul.f32.gmra.mxu0 %v2885
        %v2966 = vpop.f32.mrf.mxu0
        %v2967 = vadd.f32 %v2926, %v2966
        %2968 = vmatmul.f32.gmra.mxu0 %v2888
        %v2969 = vpop.f32.mrf.mxu0
        %v2970 = vadd.f32 %v2929, %v2969
        %2971 = vmatmul.f32.gmra.mxu0 %v2891
        %v2972 = vpop.f32.mrf.mxu0
        %v2973 = vadd.f32 %v2932, %v2972
        %2974 = vmatmul.f32.gmra.mxu0 %v2894
        %v2975 = vpop.f32.mrf.mxu0
        %v2976 = vadd.f32 %v2935, %v2975
        %2977 = vmatmul.f32.gmra.mxu0 %v2897
        %v2978 = vpop.f32.mrf.mxu0
        %v2979 = vadd.f32 %v2938, %v2978
        %2980 = vmatmul.f32.gmra.mxu0 %v2900
        %v2981 = vpop.f32.mrf.mxu0
        %v2982 = vadd.f32 %v2941, %v2981
        %2983 = vdwg.mxu0
        %v2984 = vld [vmem:[#allocation8 + $0x1d8] sm:$0xff]
        %v2985 = vld [vmem:[#allocation8 + $0x1e0] sm:$0x3]
        %v2986 = vadd.f32 %v2961, %v2967
        %v2987 = vmul.f32 %v2986, 0.5
        %v2988 = vsub.f32 %v2961, %v2987
        %v2989 = vmul.f32 %v2988, %v2988
        %v2990 = vsub.f32 %v2967, %v2987
        %v2991 = vmul.f32 %v2990, %v2990
        %v2992 = vadd.f32 %v2989, %v2991
        %v2993 = vmul.f32 %v2992, 0.5
        %v2994 = vadd.f32 %v2993, 1e-30
        %v2995 = vrsqrt.pop %v2994
        %v2996 = vmul.f32 %v2995, %v2994
        %v2997 = vmul.f32 %v2996, %v2995
        %v2998 = vmul.f32 0.5, %v2997
        %v2999 = vsub.f32 1.5, %v2998
        %v3000 = vmul.f32 %v2995, %v2999
        %vm3001 = vweird.f32 %v2994
        %vm3002 = vweird.f32 %v2995
        %vm3003 = vmor %vm3001, %vm3002
        %v3004 = vsel %vm3003, %v2995, %v3000
        %v3005 = vmul.f32 %v3004, %v2987
        %v3006 = vadd.f32 %v2973, %v2979
        %v3007 = vmul.f32 %v3006, 0.5
        %v3008 = vsub.f32 %v2973, %v3007
        %v3009 = vmul.f32 %v3008, %v3008
        %v3010 = vsub.f32 %v2979, %v3007
        %v3011 = vmul.f32 %v3010, %v3010
        %v3012 = vadd.f32 %v3009, %v3011
        %v3013 = vmul.f32 %v3012, 0.5
        %v3014 = vadd.f32 %v3013, 1e-30
        %v3015 = vrsqrt.pop %v3014
        %v3016 = vmul.f32 %v3015, %v3014
        %v3017 = vmul.f32 %v3016, %v3015
        %v3018 = vmul.f32 0.5, %v3017
        %v3019 = vsub.f32 1.5, %v3018
        %v3020 = vmul.f32 %v3015, %v3019
        %vm3021 = vweird.f32 %v3014
        %vm3022 = vweird.f32 %v3015
        %vm3023 = vmor %vm3021, %vm3022
        %v3024 = vsel %vm3023, %v3015, %v3020
        %v3025 = vadd.f32 %v3004, %v3024
        %v3026 = vmul.f32 %v3024, %v3007
        %v3027 = vadd.f32 %v3005, %v3026
        %v3028 = vrcp.pop %v3025
        %v3029 = vmul.f32 %v3025, %v3028
        %v3030 = vsub.f32 1.0, %v3029
        %v3031 = vmul.f32 %v3028, %v3030
        %v3032 = vadd.f32 %v3028, %v3031
        %vm3033 = vweird.f32 %v3025
        %vm3034 = vweird.f32 %v3028
        %vm3035 = vmor %vm3033, %vm3034
        %v3036 = vsel %vm3035, %v3028, %v3032
        %v3037 = vand.u32 2147483647, %v3025
        %vm3038 = vcmp.eq.f32.partialorder %v3037, 8.507059e+37
        %v3039 = vand.u32 %v3025, 2147483648
        %v3040 = vor.u32 1.1754944e-38, %v3039
        %v3041 = vsel %vm3038, %v3040, %v3036
        %v3042 = vmul.f32 %v3027, %v3041
        %3043 = vmatpush.msra.mxu0 0.0
        %3044 = vmatpush.msra.mxu0 0.0
        %3045 = vmatpush.msra.mxu0 0.0
        %3046 = vmatpush.msra.mxu0 0.0
        %3047 = vmatpush.msra.mxu0 0.0
        %3048 = vmatpush.msra.mxu0 0.0
        %3049 = vmatpush.msra.mxu0 0.0
        %3050 = vmatpush.msra.mxu0 0.0
        %3051 = vmatpush.msra.mxu0 0.0
        %3052 = vmatpush.msra.mxu0 0.0
        %3053 = vmatpush.msra.mxu0 0.0
        %3054 = vmatpush.msra.mxu0 0.0
        %3055 = vmatpush.msra.mxu0 0.0
        %3056 = vmatpush.msra.mxu0 0.0
        %3057 = vmatpush.msra.mxu0 0.0
        %3058 = vmatpush.msra.mxu0 %v3042
        %3059 = vmatmul.f32.gmra.mxu0 %v789
        %v3060 = vpop.f32.mrf.mxu0
        %v3061 = vadd.f32 0.0, %v3060
        %3062 = vdwg.mxu0
        %v3064 = vsel %vm787, %v3061, 0
        %3066 = vmatpush.msra.mxu0 0.0
        %3067 = vmatpush.msra.mxu0 0.0
        %3068 = vmatpush.msra.mxu0 0.0
        %3069 = vmatpush.msra.mxu0 0.0
        %3070 = vmatpush.msra.mxu0 0.0
        %3071 = vmatpush.msra.mxu0 0.0
        %3072 = vmatpush.msra.mxu0 0.0
        %3073 = vmatpush.msra.mxu0 0.0
        %3074 = vmatpush.msra.mxu0 0.0
        %3075 = vmatpush.msra.mxu0 0.0
        %3076 = vmatpush.msra.mxu0 0.0
        %3077 = vmatpush.msra.mxu0 0.0
        %3078 = vmatpush.msra.mxu0 0.0
        %3079 = vmatpush.msra.mxu0 0.0
        %3080 = vmatpush.msra.mxu0 0.0
        %3081 = vmatpush.msra.mxu0 %v2984
        %3082 = vmatmul.f32.gmra.mxu0 %v3064
        %v3083 = vpop.f32.mrf.mxu0
        %v3084 = vadd.f32 0.0, %v3083
        %3085 = vdwg.mxu0
        %v3086 = vmul.f32 %v3084, 0.03125
        %v3088 = vsel %vm832, %v3086, 0
        %v3091 = vsel %vm836, %v2985, 0
        %3093 = vmatpush.msra.mxu0 0.0
        %3094 = vmatpush.msra.mxu0 0.0
        %3095 = vmatpush.msra.mxu0 0.0
        %3096 = vmatpush.msra.mxu0 0.0
        %3097 = vmatpush.msra.mxu0 0.0
        %3098 = vmatpush.msra.mxu0 0.0
        %3099 = vmatpush.msra.mxu0 0.0
        %3100 = vmatpush.msra.mxu0 0.0
        %3101 = vmatpush.msra.mxu0 0.0
        %3102 = vmatpush.msra.mxu0 0.0
        %3103 = vmatpush.msra.mxu0 0.0
        %3104 = vmatpush.msra.mxu0 0.0
        %3105 = vmatpush.msra.mxu0 0.0
        %3106 = vmatpush.msra.mxu0 0.0
        %3107 = vmatpush.msra.mxu0 0.0
        %3108 = vmatpush.msra.mxu0 %v3091
        %3109 = vmatmul.f32.gmra.mxu0 %v3088
        %v3110 = vpop.f32.mrf.mxu0
        %v3111 = vadd.f32 0.0, %v3110
        %3112 = vdwg.mxu0
        %v3113 = vperm.slane %v3111, 0
        %v3114 = vsub.f32 %v3042, %v3113
        %v3115 = vmul.f32 %v3114, %v3114
        %3116 = vmatpush.msra.mxu0 0.0
        %3117 = vmatpush.msra.mxu0 0.0
        %3118 = vmatpush.msra.mxu0 0.0
        %3119 = vmatpush.msra.mxu0 0.0
        %3120 = vmatpush.msra.mxu0 0.0
        %3121 = vmatpush.msra.mxu0 0.0
        %3122 = vmatpush.msra.mxu0 0.0
        %3123 = vmatpush.msra.mxu0 0.0
        %3124 = vmatpush.msra.mxu0 0.0
        %3125 = vmatpush.msra.mxu0 0.0
        %3126 = vmatpush.msra.mxu0 0.0
        %3127 = vmatpush.msra.mxu0 0.0
        %3128 = vmatpush.msra.mxu0 0.0
        %3129 = vmatpush.msra.mxu0 0.0
        %3130 = vmatpush.msra.mxu0 0.0
        %3131 = vmatpush.msra.mxu0 %v3115
        %3132 = vmatmul.f32.gmra.mxu0 %v789
        %v3133 = vpop.f32.mrf.mxu0
        %v3134 = vadd.f32 0.0, %v3133
        %3135 = vdwg.mxu0
        %v3137 = vsel %vm787, %v3134, 0
        %3139 = vmatpush.msra.mxu0 0.0
        %3140 = vmatpush.msra.mxu0 0.0
        %3141 = vmatpush.msra.mxu0 0.0
        %3142 = vmatpush.msra.mxu0 0.0
        %3143 = vmatpush.msra.mxu0 0.0
        %3144 = vmatpush.msra.mxu0 0.0
        %3145 = vmatpush.msra.mxu0 0.0
        %3146 = vmatpush.msra.mxu0 0.0
        %3147 = vmatpush.msra.mxu0 0.0
        %3148 = vmatpush.msra.mxu0 0.0
        %3149 = vmatpush.msra.mxu0 0.0
        %3150 = vmatpush.msra.mxu0 0.0
        %3151 = vmatpush.msra.mxu0 0.0
        %3152 = vmatpush.msra.mxu0 0.0
        %3153 = vmatpush.msra.mxu0 0.0
        %3154 = vmatpush.msra.mxu0 %v2984
        %3155 = vmatmul.f32.gmra.mxu0 %v3137
        %v3156 = vpop.f32.mrf.mxu0
        %v3157 = vadd.f32 0.0, %v3156
        %3158 = vdwg.mxu0
        %v3159 = vmul.f32 %v3157, 0.03125
        %v3160 = vadd.f32 %v3159, 1e-05
        %v3161 = vrsqrt.pop %v3160
        %v3162 = vmul.f32 %v3161, %v3160
        %v3163 = vmul.f32 %v3162, %v3161
        %v3164 = vmul.f32 0.5, %v3163
        %v3165 = vsub.f32 1.5, %v3164
        %v3166 = vmul.f32 %v3161, %v3165
        %vm3167 = vweird.f32 %v3160
        %vm3168 = vweird.f32 %v3161
        %vm3169 = vmor %vm3167, %vm3168
        %v3170 = vsel %vm3169, %v3161, %v3166
        %v3172 = vsel %vm832, %v3170, 0
        %3174 = vmatpush.msra.mxu0 0.0
        %3175 = vmatpush.msra.mxu0 0.0
        %3176 = vmatpush.msra.mxu0 0.0
        %3177 = vmatpush.msra.mxu0 0.0
        %3178 = vmatpush.msra.mxu0 0.0
        %3179 = vmatpush.msra.mxu0 0.0
        %3180 = vmatpush.msra.mxu0 0.0
        %3181 = vmatpush.msra.mxu0 0.0
        %3182 = vmatpush.msra.mxu0 0.0
        %3183 = vmatpush.msra.mxu0 0.0
        %3184 = vmatpush.msra.mxu0 0.0
        %3185 = vmatpush.msra.mxu0 0.0
        %3186 = vmatpush.msra.mxu0 0.0
        %3187 = vmatpush.msra.mxu0 0.0
        %3188 = vmatpush.msra.mxu0 0.0
        %3189 = vmatpush.msra.mxu0 %v3091
        %3190 = vmatmul.f32.gmra.mxu0 %v3172
        %v3191 = vpop.f32.mrf.mxu0
        %v3192 = vadd.f32 0.0, %v3191
        %3193 = vdwg.mxu0
        %v3194 = vperm.slane %v3192, 0
        %v3195 = vmul.f32 %v3114, %v3194
        %3196 = vst.msk [vmem:[#allocation3] sm:$0xff] %vm787, %v3195
        %v3197 = vadd.f32 %v2964, %v2970
        %v3198 = vmul.f32 %v3197, 0.5
        %v3199 = vsub.f32 %v2964, %v3198
        %v3200 = vmul.f32 %v3199, %v3199
        %v3201 = vsub.f32 %v2970, %v3198
        %v3202 = vmul.f32 %v3201, %v3201
        %v3203 = vadd.f32 %v3200, %v3202
        %v3204 = vmul.f32 %v3203, 0.5
        %v3205 = vadd.f32 %v3204, 1e-30
        %v3206 = vrsqrt.pop %v3205
        %v3207 = vmul.f32 %v3206, %v3205
        %v3208 = vmul.f32 %v3207, %v3206
        %v3209 = vmul.f32 0.5, %v3208
        %v3210 = vsub.f32 1.5, %v3209
        %v3211 = vmul.f32 %v3206, %v3210
        %vm3212 = vweird.f32 %v3205
        %vm3213 = vweird.f32 %v3206
        %vm3214 = vmor %vm3212, %vm3213
        %v3215 = vsel %vm3214, %v3206, %v3211
        %v3216 = vmul.f32 %v3215, %v3198
        %v3217 = vadd.f32 %v2976, %v2982
        %v3218 = vmul.f32 %v3217, 0.5
        %v3219 = vsub.f32 %v2976, %v3218
        %v3220 = vmul.f32 %v3219, %v3219
        %v3221 = vsub.f32 %v2982, %v3218
        %v3222 = vmul.f32 %v3221, %v3221
        %v3223 = vadd.f32 %v3220, %v3222
        %v3224 = vmul.f32 %v3223, 0.5
        %v3225 = vadd.f32 %v3224, 1e-30
        %v3226 = vrsqrt.pop %v3225
        %v3227 = vmul.f32 %v3226, %v3225
        %v3228 = vmul.f32 %v3227, %v3226
        %v3229 = vmul.f32 0.5, %v3228
        %v3230 = vsub.f32 1.5, %v3229
        %v3231 = vmul.f32 %v3226, %v3230
        %vm3232 = vweird.f32 %v3225
        %vm3233 = vweird.f32 %v3226
        %vm3234 = vmor %vm3232, %vm3233
        %v3235 = vsel %vm3234, %v3226, %v3231
        %v3236 = vadd.f32 %v3215, %v3235
        %v3237 = vmul.f32 %v3235, %v3218
        %v3238 = vadd.f32 %v3216, %v3237
        %v3239 = vrcp.pop %v3236
        %v3240 = vmul.f32 %v3236, %v3239
        %v3241 = vsub.f32 1.0, %v3240
        %v3242 = vmul.f32 %v3239, %v3241
        %v3243 = vadd.f32 %v3239, %v3242
        %vm3244 = vweird.f32 %v3236
        %vm3245 = vweird.f32 %v3239
        %vm3246 = vmor %vm3244, %vm3245
        %v3247 = vsel %vm3246, %v3239, %v3243
        %v3248 = vand.u32 2147483647, %v3236
        %vm3249 = vcmp.eq.f32.partialorder %v3248, 8.507059e+37
        %v3250 = vand.u32 %v3236, 2147483648
        %v3251 = vor.u32 1.1754944e-38, %v3250
        %v3252 = vsel %vm3249, %v3251, %v3247
        %v3253 = vmul.f32 %v3238, %v3252
        %3254 = vmatpush.msra.mxu0 0.0
        %3255 = vmatpush.msra.mxu0 0.0
        %3256 = vmatpush.msra.mxu0 0.0
        %3257 = vmatpush.msra.mxu0 0.0
        %3258 = vmatpush.msra.mxu0 0.0
        %3259 = vmatpush.msra.mxu0 0.0
        %3260 = vmatpush.msra.mxu0 0.0
        %3261 = vmatpush.msra.mxu0 0.0
        %3262 = vmatpush.msra.mxu0 0.0
        %3263 = vmatpush.msra.mxu0 0.0
        %3264 = vmatpush.msra.mxu0 0.0
        %3265 = vmatpush.msra.mxu0 0.0
        %3266 = vmatpush.msra.mxu0 0.0
        %3267 = vmatpush.msra.mxu0 0.0
        %3268 = vmatpush.msra.mxu0 0.0
        %3269 = vmatpush.msra.mxu0 %v3253
        %3270 = vmatmul.f32.gmra.mxu0 %v789
        %v3271 = vpop.f32.mrf.mxu0
        %v3272 = vadd.f32 0.0, %v3271
        %3273 = vdwg.mxu0
        %v3275 = vsel %vm787, %v3272, 0
        %3277 = vmatpush.msra.mxu0 0.0
        %3278 = vmatpush.msra.mxu0 0.0
        %3279 = vmatpush.msra.mxu0 0.0
        %3280 = vmatpush.msra.mxu0 0.0
        %3281 = vmatpush.msra.mxu0 0.0
        %3282 = vmatpush.msra.mxu0 0.0
        %3283 = vmatpush.msra.mxu0 0.0
        %3284 = vmatpush.msra.mxu0 0.0
        %3285 = vmatpush.msra.mxu0 0.0
        %3286 = vmatpush.msra.mxu0 0.0
        %3287 = vmatpush.msra.mxu0 0.0
        %3288 = vmatpush.msra.mxu0 0.0
        %3289 = vmatpush.msra.mxu0 0.0
        %3290 = vmatpush.msra.mxu0 0.0
        %3291 = vmatpush.msra.mxu0 0.0
        %3292 = vmatpush.msra.mxu0 %v2984
        %3293 = vmatmul.f32.gmra.mxu0 %v3275
        %v3294 = vpop.f32.mrf.mxu0
        %v3295 = vadd.f32 0.0, %v3294
        %3296 = vdwg.mxu0
        %v3297 = vmul.f32 %v3295, 0.03125
        %v3299 = vsel %vm832, %v3297, 0
        %3301 = vmatpush.msra.mxu0 0.0
        %3302 = vmatpush.msra.mxu0 0.0
        %3303 = vmatpush.msra.mxu0 0.0
        %3304 = vmatpush.msra.mxu0 0.0
        %3305 = vmatpush.msra.mxu0 0.0
        %3306 = vmatpush.msra.mxu0 0.0
        %3307 = vmatpush.msra.mxu0 0.0
        %3308 = vmatpush.msra.mxu0 0.0
        %3309 = vmatpush.msra.mxu0 0.0
        %3310 = vmatpush.msra.mxu0 0.0
        %3311 = vmatpush.msra.mxu0 0.0
        %3312 = vmatpush.msra.mxu0 0.0
        %3313 = vmatpush.msra.mxu0 0.0
        %3314 = vmatpush.msra.mxu0 0.0
        %3315 = vmatpush.msra.mxu0 0.0
        %3316 = vmatpush.msra.mxu0 %v3091
        %3317 = vmatmul.f32.gmra.mxu0 %v3299
        %v3318 = vpop.f32.mrf.mxu0
        %v3319 = vadd.f32 0.0, %v3318
        %3320 = vdwg.mxu0
        %v3321 = vperm.slane %v3319, 0
        %v3322 = vsub.f32 %v3253, %v3321
        %v3323 = vmul.f32 %v3322, %v3322
        %3324 = vmatpush.msra.mxu0 0.0
        %3325 = vmatpush.msra.mxu0 0.0
        %3326 = vmatpush.msra.mxu0 0.0
        %3327 = vmatpush.msra.mxu0 0.0
        %3328 = vmatpush.msra.mxu0 0.0
        %3329 = vmatpush.msra.mxu0 0.0
        %3330 = vmatpush.msra.mxu0 0.0
        %3331 = vmatpush.msra.mxu0 0.0
        %3332 = vmatpush.msra.mxu0 0.0
        %3333 = vmatpush.msra.mxu0 0.0
        %3334 = vmatpush.msra.mxu0 0.0
        %3335 = vmatpush.msra.mxu0 0.0
        %3336 = vmatpush.msra.mxu0 0.0
        %3337 = vmatpush.msra.mxu0 0.0
        %3338 = vmatpush.msra.mxu0 0.0
        %3339 = vmatpush.msra.mxu0 %v3323
        %3340 = vmatmul.f32.gmra.mxu0 %v789
        %v3341 = vpop.f32.mrf.mxu0
        %v3342 = vadd.f32 0.0, %v3341
        %3343 = vdwg.mxu0
        %v3345 = vsel %vm787, %v3342, 0
        %3347 = vmatpush.msra.mxu0 0.0
        %3348 = vmatpush.msra.mxu0 0.0
        %3349 = vmatpush.msra.mxu0 0.0
        %3350 = vmatpush.msra.mxu0 0.0
        %3351 = vmatpush.msra.mxu0 0.0
        %3352 = vmatpush.msra.mxu0 0.0
        %3353 = vmatpush.msra.mxu0 0.0
        %3354 = vmatpush.msra.mxu0 0.0
        %3355 = vmatpush.msra.mxu0 0.0
        %3356 = vmatpush.msra.mxu0 0.0
        %3357 = vmatpush.msra.mxu0 0.0
        %3358 = vmatpush.msra.mxu0 0.0
        %3359 = vmatpush.msra.mxu0 0.0
        %3360 = vmatpush.msra.mxu0 0.0
        %3361 = vmatpush.msra.mxu0 0.0
        %3362 = vmatpush.msra.mxu0 %v2984
        %3363 = vmatmul.f32.gmra.mxu0 %v3345
        %v3364 = vpop.f32.mrf.mxu0
        %v3365 = vadd.f32 0.0, %v3364
        %3366 = vdwg.mxu0
        %v3367 = vmul.f32 %v3365, 0.03125
        %v3368 = vadd.f32 %v3367, 1e-05
        %v3369 = vrsqrt.pop %v3368
        %v3370 = vmul.f32 %v3369, %v3368
        %v3371 = vmul.f32 %v3370, %v3369
        %v3372 = vmul.f32 0.5, %v3371
        %v3373 = vsub.f32 1.5, %v3372
        %v3374 = vmul.f32 %v3369, %v3373
        %vm3375 = vweird.f32 %v3368
        %vm3376 = vweird.f32 %v3369
        %vm3377 = vmor %vm3375, %vm3376
        %v3378 = vsel %vm3377, %v3369, %v3374
        %v3380 = vsel %vm832, %v3378, 0
        %3382 = vmatpush.msra.mxu0 0.0
        %3383 = vmatpush.msra.mxu0 0.0
        %3384 = vmatpush.msra.mxu0 0.0
        %3385 = vmatpush.msra.mxu0 0.0
        %3386 = vmatpush.msra.mxu0 0.0
        %3387 = vmatpush.msra.mxu0 0.0
        %3388 = vmatpush.msra.mxu0 0.0
        %3389 = vmatpush.msra.mxu0 0.0
        %3390 = vmatpush.msra.mxu0 0.0
        %3391 = vmatpush.msra.mxu0 0.0
        %3392 = vmatpush.msra.mxu0 0.0
        %3393 = vmatpush.msra.mxu0 0.0
        %3394 = vmatpush.msra.mxu0 0.0
        %3395 = vmatpush.msra.mxu0 0.0
        %3396 = vmatpush.msra.mxu0 0.0
        %3397 = vmatpush.msra.mxu0 %v3091
        %3398 = vmatmul.f32.gmra.mxu0 %v3380
        %v3399 = vpop.f32.mrf.mxu0
        %v3400 = vadd.f32 0.0, %v3399
        %3401 = vdwg.mxu0
        %v3402 = vperm.slane %v3400, 0
        %v3403 = vmul.f32 %v3322, %v3402
        %3404 = vst.msk [vmem:[#allocation3 + $0x8] sm:$0xff] %vm787, %v3403
        %v3405 = vld [vmem:[#allocation3] sm:$0xff]
        %v3406 = vld [vmem:[#allocation3 + $0x8] sm:$0xff]
        %v3407 = vld [vmem:[#allocation6 + $0xb40] sm:$0xff]
        %v3409 = vsel %vm787, %v3405, 0
        %v3412 = vsel %vm787, %v3406, 0
        %3414 = vmatpush.msra.mxu0 0.0
        %3415 = vmatpush.msra.mxu0 0.0
        %3416 = vmatpush.msra.mxu0 0.0
        %3417 = vmatpush.msra.mxu0 0.0
        %3418 = vmatpush.msra.mxu0 0.0
        %3419 = vmatpush.msra.mxu0 0.0
        %3420 = vmatpush.msra.mxu0 0.0
        %3421 = vmatpush.msra.mxu0 0.0
        %3422 = vmatpush.msra.mxu0 0.0
        %3423 = vmatpush.msra.mxu0 0.0
        %3424 = vmatpush.msra.mxu0 0.0
        %3425 = vmatpush.msra.mxu0 0.0
        %3426 = vmatpush.msra.mxu0 0.0
        %3427 = vmatpush.msra.mxu0 0.0
        %3428 = vmatpush.msra.mxu0 0.0
        %3429 = vmatpush.msra.mxu0 %v3407
        %3430 = vmatmul.f32.gmra.mxu0 %v3409
        %v3431 = vpop.f32.mrf.mxu0
        %v3432 = vadd.f32 0.0, %v3431
        %3433 = vmatmul.f32.gmra.mxu0 %v3412
        %v3434 = vpop.f32.mrf.mxu0
        %v3435 = vadd.f32 0.0, %v3434
        %3436 = vdwg.mxu0
        %3437 = vst.msk [vmem:[#allocation2] sm:$0xff] %vm787, %v3432
        %3438 = vst.msk [vmem:[#allocation2 + $0x8] sm:$0xff] %vm787, %v3435
        %3441 = vrot.lane.b32.xlu0 %v3432, 120
        %v3442 = vpop.permute.xlu0 %3441
        %3443 = vrot.lane.b32.xlu0 %v3435, 120
        %v3444 = vpop.permute.xlu0 %3443
        %3447 = vst.msk [vmem:[#allocation2 + $0x10] sm:$0xff] %vm787, %v3442
        %3448 = vst.msk [vmem:[#allocation2 + $0x18] sm:$0xff] %vm787, %v3444
        %3449 = vrot.lane.b32.xlu0 %v3432, 112
        %v3450 = vpop.permute.xlu0 %3449
        %3451 = vrot.lane.b32.xlu0 %v3435, 112
        %v3452 = vpop.permute.xlu0 %3451
        %3455 = vst.msk [vmem:[#allocation2 + $0x20] sm:$0xff] %vm787, %v3450
        %3456 = vst.msk [vmem:[#allocation2 + $0x28] sm:$0xff] %vm787, %v3452
        %3457 = vrot.lane.b32.xlu0 %v3432, 104
        %v3458 = vpop.permute.xlu0 %3457
        %3459 = vrot.lane.b32.xlu0 %v3435, 104
        %v3460 = vpop.permute.xlu0 %3459
        %3463 = vst.msk [vmem:[#allocation2 + $0x30] sm:$0xff] %vm787, %v3458
        %3464 = vst.msk [vmem:[#allocation2 + $0x38] sm:$0xff] %vm787, %v3460
        %3465 = vrot.lane.b32.xlu0 %v3432, 96
        %v3466 = vpop.permute.xlu0 %3465
        %3467 = vrot.lane.b32.xlu0 %v3435, 96
        %v3468 = vpop.permute.xlu0 %3467
        %3471 = vst.msk [vmem:[#allocation2 + $0x40] sm:$0xff] %vm787, %v3466
        %3472 = vst.msk [vmem:[#allocation2 + $0x48] sm:$0xff] %vm787, %v3468
        %3473 = vrot.lane.b32.xlu0 %v3432, 88
        %v3474 = vpop.permute.xlu0 %3473
        %3475 = vrot.lane.b32.xlu0 %v3435, 88
        %v3476 = vpop.permute.xlu0 %3475
        %3479 = vst.msk [vmem:[#allocation2 + $0x50] sm:$0xff] %vm787, %v3474
        %3480 = vst.msk [vmem:[#allocation2 + $0x58] sm:$0xff] %vm787, %v3476
        %3481 = vrot.lane.b32.xlu0 %v3432, 80
        %v3482 = vpop.permute.xlu0 %3481
        %3483 = vrot.lane.b32.xlu0 %v3435, 80
        %v3484 = vpop.permute.xlu0 %3483
        %3487 = vst.msk [vmem:[#allocation2 + $0x60] sm:$0xff] %vm787, %v3482
        %3488 = vst.msk [vmem:[#allocation2 + $0x68] sm:$0xff] %vm787, %v3484
        %3489 = vrot.lane.b32.xlu0 %v3432, 72
        %v3490 = vpop.permute.xlu0 %3489
        %3491 = vrot.lane.b32.xlu0 %v3435, 72
        %v3492 = vpop.permute.xlu0 %3491
        %3495 = vst.msk [vmem:[#allocation2 + $0x70] sm:$0xff] %vm787, %v3490
        %3496 = vst.msk [vmem:[#allocation2 + $0x78] sm:$0xff] %vm787, %v3492
        %3497 = vrot.lane.b32.xlu0 %v3432, 64
        %v3498 = vpop.permute.xlu0 %3497
        %3499 = vrot.lane.b32.xlu0 %v3435, 64
        %v3500 = vpop.permute.xlu0 %3499
        %3503 = vst.msk [vmem:[#allocation2 + $0x80] sm:$0xff] %vm787, %v3498
        %3504 = vst.msk [vmem:[#allocation2 + $0x88] sm:$0xff] %vm787, %v3500
        %v3505 = vld [vmem:[%s2 + $0x200] sm:$0xff]
        %v3506 = vld [vmem:[%s2 + $0x208] sm:$0xff]
        %v3507 = vld [vmem:[%s2 + $0x210] sm:$0xff]
        %v3508 = vld [vmem:[%s2 + $0x218] sm:$0xff]
        %v3509 = vld [vmem:[%s2 + $0x220] sm:$0xff]
        %v3510 = vld [vmem:[%s2 + $0x228] sm:$0xff]
        %v3511 = vld [vmem:[%s2 + $0x230] sm:$0xff]
        %v3512 = vld [vmem:[%s2 + $0x238] sm:$0xff]
        %v3513 = vld [vmem:[%s2 + $0x240] sm:$0xff]
        %v3514 = vld [vmem:[%s2 + $0x248] sm:$0xff]
        %v3515 = vld [vmem:[%s2 + $0x250] sm:$0xff]
        %v3516 = vld [vmem:[%s2 + $0x258] sm:$0xff]
        %v3517 = vld [vmem:[%s2 + $0x260] sm:$0xff]
        %v3518 = vld [vmem:[%s2 + $0x268] sm:$0xff]
        %v3519 = vld [vmem:[%s2 + $0x270] sm:$0xff]
        %v3520 = vld [vmem:[%s2 + $0x278] sm:$0xff]
        %v3521 = vld [vmem:[%s2 + $0x280] sm:$0xff]
        %v3522 = vld [vmem:[%s2 + $0x288] sm:$0xff]
        %v3523 = vld [vmem:[%s2 + $0x290] sm:$0xff]
        %v3524 = vld [vmem:[%s2 + $0x298] sm:$0xff]
        %v3525 = vld [vmem:[%s2 + $0x2a0] sm:$0xff]
        %v3526 = vld [vmem:[%s2 + $0x2a8] sm:$0xff]
        %v3527 = vld [vmem:[%s2 + $0x2b0] sm:$0xff]
        %v3528 = vld [vmem:[%s2 + $0x2b8] sm:$0xff]
        %v3529 = vld [vmem:[#allocation8 + $0x1e8] sm:$0xff]
        %v3530 = vld [vmem:[#allocation8 + $0x1f0] sm:$0xff]
        %v3531 = vld [vmem:[#allocation8 + $0x1f8] sm:$0xff]
        %v3532 = vld [vmem:[#allocation8 + $0x200] sm:$0xff]
        %v3533 = vld [vmem:[#allocation8 + $0x208] sm:$0xff]
        %v3534 = vld [vmem:[#allocation8 + $0x210] sm:$0xff]
        %v3535 = vld [vmem:[#allocation8 + $0x218] sm:$0xff]
        %v3536 = vld [vmem:[#allocation8 + $0x220] sm:$0xff]
        %v3537 = vld [vmem:[#allocation8 + $0x228] sm:$0xff]
        %v3538 = vld [vmem:[#allocation8 + $0x230] sm:$0xff]
        %v3539 = vld [vmem:[#allocation8 + $0x238] sm:$0xff]
        %v3540 = vld [vmem:[#allocation8 + $0x240] sm:$0xff]
        %v3541 = vld [vmem:[#allocation2] sm:$0xff]
        %v3542 = vld [vmem:[#allocation2 + $0x8] sm:$0xff]
        %v3543 = vld [vmem:[#allocation2 + $0x10] sm:$0xff]
        %v3544 = vld [vmem:[#allocation2 + $0x18] sm:$0xff]
        %v3545 = vld [vmem:[#allocation2 + $0x20] sm:$0xff]
        %v3546 = vld [vmem:[#allocation2 + $0x28] sm:$0xff]
        %v3547 = vld [vmem:[#allocation2 + $0x30] sm:$0xff]
        %v3548 = vld [vmem:[#allocation2 + $0x38] sm:$0xff]
        %v3549 = vld [vmem:[#allocation2 + $0x40] sm:$0xff]
        %v3550 = vld [vmem:[#allocation2 + $0x48] sm:$0xff]
        %v3551 = vld [vmem:[#allocation2 + $0x50] sm:$0xff]
        %v3552 = vld [vmem:[#allocation2 + $0x58] sm:$0xff]
        %v3553 = vld [vmem:[#allocation2 + $0x60] sm:$0xff]
        %v3554 = vld [vmem:[#allocation2 + $0x68] sm:$0xff]
        %v3555 = vld [vmem:[#allocation2 + $0x70] sm:$0xff]
        %v3556 = vld [vmem:[#allocation2 + $0x78] sm:$0xff]
        %v3557 = vld [vmem:[#allocation2 + $0x80] sm:$0xff]
        %v3558 = vld [vmem:[#allocation2 + $0x88] sm:$0xff]
        %3560 = vset.pattern.permute.xlu0 0
        %3561 = vperm.xlu0 %3560, %v3529
        %v3562 = vpop.permute.xlu0 %3561
        %3565 = vset.pattern.permute.xlu0 0
        %3566 = vperm.xlu0 %3565, %v3530
        %v3567 = vpop.permute.xlu0 %3566
        %3570 = vset.pattern.permute.xlu0 0
        %3571 = vperm.xlu0 %3570, %v3531
        %v3572 = vpop.permute.xlu0 %3571
        %3575 = vset.pattern.permute.xlu0 0
        %3576 = vperm.xlu0 %3575, %v3532
        %v3577 = vpop.permute.xlu0 %3576
        %3580 = vset.pattern.permute.xlu0 0
        %3581 = vperm.xlu0 %3580, %v3533
        %v3582 = vpop.permute.xlu0 %3581
        %3585 = vset.pattern.permute.xlu0 0
        %3586 = vperm.xlu0 %3585, %v3534
        %v3587 = vpop.permute.xlu0 %3586
        %3590 = vset.pattern.permute.xlu0 0
        %3591 = vperm.xlu0 %3590, %v3535
        %v3592 = vpop.permute.xlu0 %3591
        %3595 = vset.pattern.permute.xlu0 0
        %3596 = vperm.xlu0 %3595, %v3536
        %v3597 = vpop.permute.xlu0 %3596
        %3600 = vset.pattern.permute.xlu0 0
        %3601 = vperm.xlu0 %3600, %v3537
        %v3602 = vpop.permute.xlu0 %3601
        %3605 = vset.pattern.permute.xlu0 0
        %3606 = vperm.xlu0 %3605, %v3538
        %v3607 = vpop.permute.xlu0 %3606
        %3610 = vset.pattern.permute.xlu0 0
        %3611 = vperm.xlu0 %3610, %v3539
        %v3612 = vpop.permute.xlu0 %3611
        %3615 = vset.pattern.permute.xlu0 0
        %3616 = vperm.xlu0 %3615, %v3540
        %v3617 = vpop.permute.xlu0 %3616
        %v3620 = vsel %vm1403, %v3506, 0
        %v3623 = vsel %vm1403, %v3508, 0
        %v3626 = vsel %vm1403, %v3510, 0
        %v3629 = vsel %vm1403, %v3512, 0
        %v3632 = vsel %vm1403, %v3514, 0
        %v3635 = vsel %vm1403, %v3516, 0
        %v3638 = vsel %vm1403, %v3518, 0
        %v3641 = vsel %vm1403, %v3520, 0
        %v3644 = vsel %vm1403, %v3522, 0
        %v3647 = vsel %vm1403, %v3524, 0
        %v3650 = vsel %vm1403, %v3526, 0
        %v3653 = vsel %vm1403, %v3528, 0
        %3655 = vmatpush.msra.mxu0 %v3556
        %3656 = vmatpush.msra.mxu0 %v3555
        %3657 = vmatpush.msra.mxu0 %v3554
        %3658 = vmatpush.msra.mxu0 %v3553
        %3659 = vmatpush.msra.mxu0 %v3552
        %3660 = vmatpush.msra.mxu0 %v3551
        %3661 = vmatpush.msra.mxu0 %v3550
        %3662 = vmatpush.msra.mxu0 %v3549
        %3663 = vmatpush.msra.mxu0 %v3548
        %3664 = vmatpush.msra.mxu0 %v3547
        %3665 = vmatpush.msra.mxu0 %v3546
        %3666 = vmatpush.msra.mxu0 %v3545
        %3667 = vmatpush.msra.mxu0 %v3544
        %3668 = vmatpush.msra.mxu0 %v3543
        %3669 = vmatpush.msra.mxu0 %v3542
        %3670 = vmatpush.msra.mxu0 %v3541
        %3671 = vmatmul.f32.gmra.mxu0 %v3505
        %v3672 = vpop.f32.mrf.mxu0
        %v3673 = vadd.f32 %v3562, %v3672
        %3674 = vmatmul.f32.gmra.mxu0 %v3507
        %v3675 = vpop.f32.mrf.mxu0
        %v3676 = vadd.f32 %v3567, %v3675
        %3677 = vmatmul.f32.gmra.mxu0 %v3509
        %v3678 = vpop.f32.mrf.mxu0
        %v3679 = vadd.f32 %v3572, %v3678
        %3680 = vmatmul.f32.gmra.mxu0 %v3511
        %v3681 = vpop.f32.mrf.mxu0
        %v3682 = vadd.f32 %v3577, %v3681
        %3683 = vmatmul.f32.gmra.mxu0 %v3513
        %v3684 = vpop.f32.mrf.mxu0
        %v3685 = vadd.f32 %v3582, %v3684
        %3686 = vmatmul.f32.gmra.mxu0 %v3515
        %v3687 = vpop.f32.mrf.mxu0
        %v3688 = vadd.f32 %v3587, %v3687
        %3689 = vmatmul.f32.gmra.mxu0 %v3517
        %v3690 = vpop.f32.mrf.mxu0
        %v3691 = vadd.f32 %v3592, %v3690
        %3692 = vmatmul.f32.gmra.mxu0 %v3519
        %v3693 = vpop.f32.mrf.mxu0
        %v3694 = vadd.f32 %v3597, %v3693
        %3695 = vmatmul.f32.gmra.mxu0 %v3521
        %v3696 = vpop.f32.mrf.mxu0
        %v3697 = vadd.f32 %v3602, %v3696
        %3698 = vmatmul.f32.gmra.mxu0 %v3523
        %v3699 = vpop.f32.mrf.mxu0
        %v3700 = vadd.f32 %v3607, %v3699
        %3701 = vmatmul.f32.gmra.mxu0 %v3525
        %v3702 = vpop.f32.mrf.mxu0
        %v3703 = vadd.f32 %v3612, %v3702
        %3704 = vmatmul.f32.gmra.mxu0 %v3527
        %v3705 = vpop.f32.mrf.mxu0
        %v3706 = vadd.f32 %v3617, %v3705
        %3707 = vdwg.mxu0
        %3708 = vmatpush.msra.mxu0 0.0
        %3709 = vmatpush.msra.mxu0 0.0
        %3710 = vmatpush.msra.mxu0 0.0
        %3711 = vmatpush.msra.mxu0 0.0
        %3712 = vmatpush.msra.mxu0 0.0
        %3713 = vmatpush.msra.mxu0 0.0
        %3714 = vmatpush.msra.mxu0 0.0
        %3715 = vmatpush.msra.mxu0 0.0
        %3716 = vmatpush.msra.mxu0 0.0
        %3717 = vmatpush.msra.mxu0 0.0
        %3718 = vmatpush.msra.mxu0 0.0
        %3719 = vmatpush.msra.mxu0 0.0
        %3720 = vmatpush.msra.mxu0 0.0
        %3721 = vmatpush.msra.mxu0 0.0
        %3722 = vmatpush.msra.mxu0 %v3558
        %3723 = vmatpush.msra.mxu0 %v3557
        %3724 = vmatmul.f32.gmra.mxu0 %v3620
        %v3725 = vpop.f32.mrf.mxu0
        %v3726 = vadd.f32 %v3673, %v3725
        %3727 = vmatmul.f32.gmra.mxu0 %v3623
        %v3728 = vpop.f32.mrf.mxu0
        %v3729 = vadd.f32 %v3676, %v3728
        %3730 = vmatmul.f32.gmra.mxu0 %v3626
        %v3731 = vpop.f32.mrf.mxu0
        %v3732 = vadd.f32 %v3679, %v3731
        %3733 = vmatmul.f32.gmra.mxu0 %v3629
        %v3734 = vpop.f32.mrf.mxu0
        %v3735 = vadd.f32 %v3682, %v3734
        %3736 = vmatmul.f32.gmra.mxu0 %v3632
        %v3737 = vpop.f32.mrf.mxu0
        %v3738 = vadd.f32 %v3685, %v3737
        %3739 = vmatmul.f32.gmra.mxu0 %v3635
        %v3740 = vpop.f32.mrf.mxu0
        %v3741 = vadd.f32 %v3688, %v3740
        %3742 = vmatmul.f32.gmra.mxu0 %v3638
        %v3743 = vpop.f32.mrf.mxu0
        %v3744 = vadd.f32 %v3691, %v3743
        %3745 = vmatmul.f32.gmra.mxu0 %v3641
        %v3746 = vpop.f32.mrf.mxu0
        %v3747 = vadd.f32 %v3694, %v3746
        %3748 = vmatmul.f32.gmra.mxu0 %v3644
        %v3749 = vpop.f32.mrf.mxu0
        %v3750 = vadd.f32 %v3697, %v3749
        %3751 = vmatmul.f32.gmra.mxu0 %v3647
        %v3752 = vpop.f32.mrf.mxu0
        %v3753 = vadd.f32 %v3700, %v3752
        %3754 = vmatmul.f32.gmra.mxu0 %v3650
        %v3755 = vpop.f32.mrf.mxu0
        %v3756 = vadd.f32 %v3703, %v3755
        %3757 = vmatmul.f32.gmra.mxu0 %v3653
        %v3758 = vpop.f32.mrf.mxu0
        %v3759 = vadd.f32 %v3706, %v3758
        %3760 = vdwg.mxu0
        %v3761 = vld [vmem:[#allocation8 + $0x248] sm:$0xff]
        %v3762 = vld [vmem:[#allocation8 + $0x250] sm:$0x3]
        %v3763 = vadd.f32 %v3726, %v3735
        %v3764 = vmul.f32 %v3763, 0.5
        %v3765 = vsub.f32 %v3726, %v3764
        %v3766 = vmul.f32 %v3765, %v3765
        %v3767 = vsub.f32 %v3735, %v3764
        %v3768 = vmul.f32 %v3767, %v3767
        %v3769 = vadd.f32 %v3766, %v3768
        %v3770 = vmul.f32 %v3769, 0.5
        %v3771 = vadd.f32 %v3770, 1e-30
        %v3772 = vrsqrt.pop %v3771
        %v3773 = vmul.f32 %v3772, %v3771
        %v3774 = vmul.f32 %v3773, %v3772
        %v3775 = vmul.f32 0.5, %v3774
        %v3776 = vsub.f32 1.5, %v3775
        %v3777 = vmul.f32 %v3772, %v3776
        %vm3778 = vweird.f32 %v3771
        %vm3779 = vweird.f32 %v3772
        %vm3780 = vmor %vm3778, %vm3779
        %v3781 = vsel %vm3780, %v3772, %v3777
        %v3782 = vmul.f32 %v3781, %v3764
        %v3783 = vadd.f32 %v3744, %v3753
        %v3784 = vmul.f32 %v3783, 0.5
        %v3785 = vsub.f32 %v3744, %v3784
        %v3786 = vmul.f32 %v3785, %v3785
        %v3787 = vsub.f32 %v3753, %v3784
        %v3788 = vmul.f32 %v3787, %v3787
        %v3789 = vadd.f32 %v3786, %v3788
        %v3790 = vmul.f32 %v3789, 0.5
        %v3791 = vadd.f32 %v3790, 1e-30
        %v3792 = vrsqrt.pop %v3791
        %v3793 = vmul.f32 %v3792, %v3791
        %v3794 = vmul.f32 %v3793, %v3792
        %v3795 = vmul.f32 0.5, %v3794
        %v3796 = vsub.f32 1.5, %v3795
        %v3797 = vmul.f32 %v3792, %v3796
        %vm3798 = vweird.f32 %v3791
        %vm3799 = vweird.f32 %v3792
        %vm3800 = vmor %vm3798, %vm3799
        %v3801 = vsel %vm3800, %v3792, %v3797
        %v3802 = vadd.f32 %v3781, %v3801
        %v3803 = vmul.f32 %v3801, %v3784
        %v3804 = vadd.f32 %v3782, %v3803
        %v3805 = vrcp.pop %v3802
        %v3806 = vmul.f32 %v3802, %v3805
        %v3807 = vsub.f32 1.0, %v3806
        %v3808 = vmul.f32 %v3805, %v3807
        %v3809 = vadd.f32 %v3805, %v3808
        %vm3810 = vweird.f32 %v3802
        %vm3811 = vweird.f32 %v3805
        %vm3812 = vmor %vm3810, %vm3811
        %v3813 = vsel %vm3812, %v3805, %v3809
        %v3814 = vand.u32 2147483647, %v3802
        %vm3815 = vcmp.eq.f32.partialorder %v3814, 8.507059e+37
        %v3816 = vand.u32 %v3802, 2147483648
        %v3817 = vor.u32 1.1754944e-38, %v3816
        %v3818 = vsel %vm3815, %v3817, %v3813
        %v3819 = vmul.f32 %v3804, %v3818
        %3820 = vmatpush.msra.mxu0 0.0
        %3821 = vmatpush.msra.mxu0 0.0
        %3822 = vmatpush.msra.mxu0 0.0
        %3823 = vmatpush.msra.mxu0 0.0
        %3824 = vmatpush.msra.mxu0 0.0
        %3825 = vmatpush.msra.mxu0 0.0
        %3826 = vmatpush.msra.mxu0 0.0
        %3827 = vmatpush.msra.mxu0 0.0
        %3828 = vmatpush.msra.mxu0 0.0
        %3829 = vmatpush.msra.mxu0 0.0
        %3830 = vmatpush.msra.mxu0 0.0
        %3831 = vmatpush.msra.mxu0 0.0
        %3832 = vmatpush.msra.mxu0 0.0
        %3833 = vmatpush.msra.mxu0 0.0
        %3834 = vmatpush.msra.mxu0 0.0
        %3835 = vmatpush.msra.mxu0 %v3819
        %3836 = vmatmul.f32.gmra.mxu0 %v789
        %v3837 = vpop.f32.mrf.mxu0
        %v3838 = vadd.f32 0.0, %v3837
        %3839 = vdwg.mxu0
        %v3841 = vsel %vm787, %v3838, 0
        %3843 = vmatpush.msra.mxu0 0.0
        %3844 = vmatpush.msra.mxu0 0.0
        %3845 = vmatpush.msra.mxu0 0.0
        %3846 = vmatpush.msra.mxu0 0.0
        %3847 = vmatpush.msra.mxu0 0.0
        %3848 = vmatpush.msra.mxu0 0.0
        %3849 = vmatpush.msra.mxu0 0.0
        %3850 = vmatpush.msra.mxu0 0.0
        %3851 = vmatpush.msra.mxu0 0.0
        %3852 = vmatpush.msra.mxu0 0.0
        %3853 = vmatpush.msra.mxu0 0.0
        %3854 = vmatpush.msra.mxu0 0.0
        %3855 = vmatpush.msra.mxu0 0.0
        %3856 = vmatpush.msra.mxu0 0.0
        %3857 = vmatpush.msra.mxu0 0.0
        %3858 = vmatpush.msra.mxu0 %v3761
        %3859 = vmatmul.f32.gmra.mxu0 %v3841
        %v3860 = vpop.f32.mrf.mxu0
        %v3861 = vadd.f32 0.0, %v3860
        %3862 = vdwg.mxu0
        %v3863 = vmul.f32 %v3861, 0.03125
        %v3865 = vsel %vm832, %v3863, 0
        %v3868 = vsel %vm836, %v3762, 0
        %3870 = vmatpush.msra.mxu0 0.0
        %3871 = vmatpush.msra.mxu0 0.0
        %3872 = vmatpush.msra.mxu0 0.0
        %3873 = vmatpush.msra.mxu0 0.0
        %3874 = vmatpush.msra.mxu0 0.0
        %3875 = vmatpush.msra.mxu0 0.0
        %3876 = vmatpush.msra.mxu0 0.0
        %3877 = vmatpush.msra.mxu0 0.0
        %3878 = vmatpush.msra.mxu0 0.0
        %3879 = vmatpush.msra.mxu0 0.0
        %3880 = vmatpush.msra.mxu0 0.0
        %3881 = vmatpush.msra.mxu0 0.0
        %3882 = vmatpush.msra.mxu0 0.0
        %3883 = vmatpush.msra.mxu0 0.0
        %3884 = vmatpush.msra.mxu0 0.0
        %3885 = vmatpush.msra.mxu0 %v3868
        %3886 = vmatmul.f32.gmra.mxu0 %v3865
        %v3887 = vpop.f32.mrf.mxu0
        %v3888 = vadd.f32 0.0, %v3887
        %3889 = vdwg.mxu0
        %v3890 = vperm.slane %v3888, 0
        %v3891 = vsub.f32 %v3819, %v3890
        %v3892 = vmul.f32 %v3891, %v3891
        %3893 = vmatpush.msra.mxu0 0.0
        %3894 = vmatpush.msra.mxu0 0.0
        %3895 = vmatpush.msra.mxu0 0.0
        %3896 = vmatpush.msra.mxu0 0.0
        %3897 = vmatpush.msra.mxu0 0.0
        %3898 = vmatpush.msra.mxu0 0.0
        %3899 = vmatpush.msra.mxu0 0.0
        %3900 = vmatpush.msra.mxu0 0.0
        %3901 = vmatpush.msra.mxu0 0.0
        %3902 = vmatpush.msra.mxu0 0.0
        %3903 = vmatpush.msra.mxu0 0.0
        %3904 = vmatpush.msra.mxu0 0.0
        %3905 = vmatpush.msra.mxu0 0.0
        %3906 = vmatpush.msra.mxu0 0.0
        %3907 = vmatpush.msra.mxu0 0.0
        %3908 = vmatpush.msra.mxu0 %v3892
        %3909 = vmatmul.f32.gmra.mxu0 %v789
        %v3910 = vpop.f32.mrf.mxu0
        %v3911 = vadd.f32 0.0, %v3910
        %3912 = vdwg.mxu0
        %v3914 = vsel %vm787, %v3911, 0
        %3916 = vmatpush.msra.mxu0 0.0
        %3917 = vmatpush.msra.mxu0 0.0
        %3918 = vmatpush.msra.mxu0 0.0
        %3919 = vmatpush.msra.mxu0 0.0
        %3920 = vmatpush.msra.mxu0 0.0
        %3921 = vmatpush.msra.mxu0 0.0
        %3922 = vmatpush.msra.mxu0 0.0
        %3923 = vmatpush.msra.mxu0 0.0
        %3924 = vmatpush.msra.mxu0 0.0
        %3925 = vmatpush.msra.mxu0 0.0
        %3926 = vmatpush.msra.mxu0 0.0
        %3927 = vmatpush.msra.mxu0 0.0
        %3928 = vmatpush.msra.mxu0 0.0
        %3929 = vmatpush.msra.mxu0 0.0
        %3930 = vmatpush.msra.mxu0 0.0
        %3931 = vmatpush.msra.mxu0 %v3761
        %3932 = vmatmul.f32.gmra.mxu0 %v3914
        %v3933 = vpop.f32.mrf.mxu0
        %v3934 = vadd.f32 0.0, %v3933
        %3935 = vdwg.mxu0
        %v3936 = vmul.f32 %v3934, 0.03125
        %v3937 = vadd.f32 %v3936, 1e-05
        %v3938 = vrsqrt.pop %v3937
        %v3939 = vmul.f32 %v3938, %v3937
        %v3940 = vmul.f32 %v3939, %v3938
        %v3941 = vmul.f32 0.5, %v3940
        %v3942 = vsub.f32 1.5, %v3941
        %v3943 = vmul.f32 %v3938, %v3942
        %vm3944 = vweird.f32 %v3937
        %vm3945 = vweird.f32 %v3938
        %vm3946 = vmor %vm3944, %vm3945
        %v3947 = vsel %vm3946, %v3938, %v3943
        %v3949 = vsel %vm832, %v3947, 0
        %3951 = vmatpush.msra.mxu0 0.0
        %3952 = vmatpush.msra.mxu0 0.0
        %3953 = vmatpush.msra.mxu0 0.0
        %3954 = vmatpush.msra.mxu0 0.0
        %3955 = vmatpush.msra.mxu0 0.0
        %3956 = vmatpush.msra.mxu0 0.0
        %3957 = vmatpush.msra.mxu0 0.0
        %3958 = vmatpush.msra.mxu0 0.0
        %3959 = vmatpush.msra.mxu0 0.0
        %3960 = vmatpush.msra.mxu0 0.0
        %3961 = vmatpush.msra.mxu0 0.0
        %3962 = vmatpush.msra.mxu0 0.0
        %3963 = vmatpush.msra.mxu0 0.0
        %3964 = vmatpush.msra.mxu0 0.0
        %3965 = vmatpush.msra.mxu0 0.0
        %3966 = vmatpush.msra.mxu0 %v3868
        %3967 = vmatmul.f32.gmra.mxu0 %v3949
        %v3968 = vpop.f32.mrf.mxu0
        %v3969 = vadd.f32 0.0, %v3968
        %3970 = vdwg.mxu0
        %v3971 = vperm.slane %v3969, 0
        %v3972 = vmul.f32 %v3891, %v3971
        %3973 = vst.msk [vmem:[#allocation3] sm:$0xff] %vm787, %v3972
        %v3974 = vadd.f32 %v3729, %v3738
        %v3975 = vmul.f32 %v3974, 0.5
        %v3976 = vsub.f32 %v3729, %v3975
        %v3977 = vmul.f32 %v3976, %v3976
        %v3978 = vsub.f32 %v3738, %v3975
        %v3979 = vmul.f32 %v3978, %v3978
        %v3980 = vadd.f32 %v3977, %v3979
        %v3981 = vmul.f32 %v3980, 0.5
        %v3982 = vadd.f32 %v3981, 1e-30
        %v3983 = vrsqrt.pop %v3982
        %v3984 = vmul.f32 %v3983, %v3982
        %v3985 = vmul.f32 %v3984, %v3983
        %v3986 = vmul.f32 0.5, %v3985
        %v3987 = vsub.f32 1.5, %v3986
        %v3988 = vmul.f32 %v3983, %v3987
        %vm3989 = vweird.f32 %v3982
        %vm3990 = vweird.f32 %v3983
        %vm3991 = vmor %vm3989, %vm3990
        %v3992 = vsel %vm3991, %v3983, %v3988
        %v3993 = vmul.f32 %v3992, %v3975
        %v3994 = vadd.f32 %v3747, %v3756
        %v3995 = vmul.f32 %v3994, 0.5
        %v3996 = vsub.f32 %v3747, %v3995
        %v3997 = vmul.f32 %v3996, %v3996
        %v3998 = vsub.f32 %v3756, %v3995
        %v3999 = vmul.f32 %v3998, %v3998
        %v4000 = vadd.f32 %v3997, %v3999
        %v4001 = vmul.f32 %v4000, 0.5
        %v4002 = vadd.f32 %v4001, 1e-30
        %v4003 = vrsqrt.pop %v4002
        %v4004 = vmul.f32 %v4003, %v4002
        %v4005 = vmul.f32 %v4004, %v4003
        %v4006 = vmul.f32 0.5, %v4005
        %v4007 = vsub.f32 1.5, %v4006
        %v4008 = vmul.f32 %v4003, %v4007
        %vm4009 = vweird.f32 %v4002
        %vm4010 = vweird.f32 %v4003
        %vm4011 = vmor %vm4009, %vm4010
        %v4012 = vsel %vm4011, %v4003, %v4008
        %v4013 = vadd.f32 %v3992, %v4012
        %v4014 = vmul.f32 %v4012, %v3995
        %v4015 = vadd.f32 %v3993, %v4014
        %v4016 = vrcp.pop %v4013
        %v4017 = vmul.f32 %v4013, %v4016
        %v4018 = vsub.f32 1.0, %v4017
        %v4019 = vmul.f32 %v4016, %v4018
        %v4020 = vadd.f32 %v4016, %v4019
        %vm4021 = vweird.f32 %v4013
        %vm4022 = vweird.f32 %v4016
        %vm4023 = vmor %vm4021, %vm4022
        %v4024 = vsel %vm4023, %v4016, %v4020
        %v4025 = vand.u32 2147483647, %v4013
        %vm4026 = vcmp.eq.f32.partialorder %v4025, 8.507059e+37
        %v4027 = vand.u32 %v4013, 2147483648
        %v4028 = vor.u32 1.1754944e-38, %v4027
        %v4029 = vsel %vm4026, %v4028, %v4024
        %v4030 = vmul.f32 %v4015, %v4029
        %4031 = vmatpush.msra.mxu0 0.0
        %4032 = vmatpush.msra.mxu0 0.0
        %4033 = vmatpush.msra.mxu0 0.0
        %4034 = vmatpush.msra.mxu0 0.0
        %4035 = vmatpush.msra.mxu0 0.0
        %4036 = vmatpush.msra.mxu0 0.0
        %4037 = vmatpush.msra.mxu0 0.0
        %4038 = vmatpush.msra.mxu0 0.0
        %4039 = vmatpush.msra.mxu0 0.0
        %4040 = vmatpush.msra.mxu0 0.0
        %4041 = vmatpush.msra.mxu0 0.0
        %4042 = vmatpush.msra.mxu0 0.0
        %4043 = vmatpush.msra.mxu0 0.0
        %4044 = vmatpush.msra.mxu0 0.0
        %4045 = vmatpush.msra.mxu0 0.0
        %4046 = vmatpush.msra.mxu0 %v4030
        %4047 = vmatmul.f32.gmra.mxu0 %v789
        %v4048 = vpop.f32.mrf.mxu0
        %v4049 = vadd.f32 0.0, %v4048
        %4050 = vdwg.mxu0
        %v4052 = vsel %vm787, %v4049, 0
        %4054 = vmatpush.msra.mxu0 0.0
        %4055 = vmatpush.msra.mxu0 0.0
        %4056 = vmatpush.msra.mxu0 0.0
        %4057 = vmatpush.msra.mxu0 0.0
        %4058 = vmatpush.msra.mxu0 0.0
        %4059 = vmatpush.msra.mxu0 0.0
        %4060 = vmatpush.msra.mxu0 0.0
        %4061 = vmatpush.msra.mxu0 0.0
        %4062 = vmatpush.msra.mxu0 0.0
        %4063 = vmatpush.msra.mxu0 0.0
        %4064 = vmatpush.msra.mxu0 0.0
        %4065 = vmatpush.msra.mxu0 0.0
        %4066 = vmatpush.msra.mxu0 0.0
        %4067 = vmatpush.msra.mxu0 0.0
        %4068 = vmatpush.msra.mxu0 0.0
        %4069 = vmatpush.msra.mxu0 %v3761
        %4070 = vmatmul.f32.gmra.mxu0 %v4052
        %v4071 = vpop.f32.mrf.mxu0
        %v4072 = vadd.f32 0.0, %v4071
        %4073 = vdwg.mxu0
        %v4074 = vmul.f32 %v4072, 0.03125
        %v4076 = vsel %vm832, %v4074, 0
        %4078 = vmatpush.msra.mxu0 0.0
        %4079 = vmatpush.msra.mxu0 0.0
        %4080 = vmatpush.msra.mxu0 0.0
        %4081 = vmatpush.msra.mxu0 0.0
        %4082 = vmatpush.msra.mxu0 0.0
        %4083 = vmatpush.msra.mxu0 0.0
        %4084 = vmatpush.msra.mxu0 0.0
        %4085 = vmatpush.msra.mxu0 0.0
        %4086 = vmatpush.msra.mxu0 0.0
        %4087 = vmatpush.msra.mxu0 0.0
        %4088 = vmatpush.msra.mxu0 0.0
        %4089 = vmatpush.msra.mxu0 0.0
        %4090 = vmatpush.msra.mxu0 0.0
        %4091 = vmatpush.msra.mxu0 0.0
        %4092 = vmatpush.msra.mxu0 0.0
        %4093 = vmatpush.msra.mxu0 %v3868
        %4094 = vmatmul.f32.gmra.mxu0 %v4076
        %v4095 = vpop.f32.mrf.mxu0
        %v4096 = vadd.f32 0.0, %v4095
        %4097 = vdwg.mxu0
        %v4098 = vperm.slane %v4096, 0
        %v4099 = vsub.f32 %v4030, %v4098
        %v4100 = vmul.f32 %v4099, %v4099
        %4101 = vmatpush.msra.mxu0 0.0
        %4102 = vmatpush.msra.mxu0 0.0
        %4103 = vmatpush.msra.mxu0 0.0
        %4104 = vmatpush.msra.mxu0 0.0
        %4105 = vmatpush.msra.mxu0 0.0
        %4106 = vmatpush.msra.mxu0 0.0
        %4107 = vmatpush.msra.mxu0 0.0
        %4108 = vmatpush.msra.mxu0 0.0
        %4109 = vmatpush.msra.mxu0 0.0
        %4110 = vmatpush.msra.mxu0 0.0
        %4111 = vmatpush.msra.mxu0 0.0
        %4112 = vmatpush.msra.mxu0 0.0
        %4113 = vmatpush.msra.mxu0 0.0
        %4114 = vmatpush.msra.mxu0 0.0
        %4115 = vmatpush.msra.mxu0 0.0
        %4116 = vmatpush.msra.mxu0 %v4100
        %4117 = vmatmul.f32.gmra.mxu0 %v789
        %v4118 = vpop.f32.mrf.mxu0
        %v4119 = vadd.f32 0.0, %v4118
        %4120 = vdwg.mxu0
        %v4122 = vsel %vm787, %v4119, 0
        %4124 = vmatpush.msra.mxu0 0.0
        %4125 = vmatpush.msra.mxu0 0.0
        %4126 = vmatpush.msra.mxu0 0.0
        %4127 = vmatpush.msra.mxu0 0.0
        %4128 = vmatpush.msra.mxu0 0.0
        %4129 = vmatpush.msra.mxu0 0.0
        %4130 = vmatpush.msra.mxu0 0.0
        %4131 = vmatpush.msra.mxu0 0.0
        %4132 = vmatpush.msra.mxu0 0.0
        %4133 = vmatpush.msra.mxu0 0.0
        %4134 = vmatpush.msra.mxu0 0.0
        %4135 = vmatpush.msra.mxu0 0.0
        %4136 = vmatpush.msra.mxu0 0.0
        %4137 = vmatpush.msra.mxu0 0.0
        %4138 = vmatpush.msra.mxu0 0.0
        %4139 = vmatpush.msra.mxu0 %v3761
        %4140 = vmatmul.f32.gmra.mxu0 %v4122
        %v4141 = vpop.f32.mrf.mxu0
        %v4142 = vadd.f32 0.0, %v4141
        %4143 = vdwg.mxu0
        %v4144 = vmul.f32 %v4142, 0.03125
        %v4145 = vadd.f32 %v4144, 1e-05
        %v4146 = vrsqrt.pop %v4145
        %v4147 = vmul.f32 %v4146, %v4145
        %v4148 = vmul.f32 %v4147, %v4146
        %v4149 = vmul.f32 0.5, %v4148
        %v4150 = vsub.f32 1.5, %v4149
        %v4151 = vmul.f32 %v4146, %v4150
        %vm4152 = vweird.f32 %v4145
        %vm4153 = vweird.f32 %v4146
        %vm4154 = vmor %vm4152, %vm4153
        %v4155 = vsel %vm4154, %v4146, %v4151
        %v4157 = vsel %vm832, %v4155, 0
        %4159 = vmatpush.msra.mxu0 0.0
        %4160 = vmatpush.msra.mxu0 0.0
        %4161 = vmatpush.msra.mxu0 0.0
        %4162 = vmatpush.msra.mxu0 0.0
        %4163 = vmatpush.msra.mxu0 0.0
        %4164 = vmatpush.msra.mxu0 0.0
        %4165 = vmatpush.msra.mxu0 0.0
        %4166 = vmatpush.msra.mxu0 0.0
        %4167 = vmatpush.msra.mxu0 0.0
        %4168 = vmatpush.msra.mxu0 0.0
        %4169 = vmatpush.msra.mxu0 0.0
        %4170 = vmatpush.msra.mxu0 0.0
        %4171 = vmatpush.msra.mxu0 0.0
        %4172 = vmatpush.msra.mxu0 0.0
        %4173 = vmatpush.msra.mxu0 0.0
        %4174 = vmatpush.msra.mxu0 %v3868
        %4175 = vmatmul.f32.gmra.mxu0 %v4157
        %v4176 = vpop.f32.mrf.mxu0
        %v4177 = vadd.f32 0.0, %v4176
        %4178 = vdwg.mxu0
        %v4179 = vperm.slane %v4177, 0
        %v4180 = vmul.f32 %v4099, %v4179
        %4181 = vst.msk [vmem:[#allocation3 + $0x8] sm:$0xff] %vm787, %v4180
        %v4182 = vadd.f32 %v3732, %v3741
        %v4183 = vmul.f32 %v4182, 0.5
        %v4184 = vsub.f32 %v3732, %v4183
        %v4185 = vmul.f32 %v4184, %v4184
        %v4186 = vsub.f32 %v3741, %v4183
        %v4187 = vmul.f32 %v4186, %v4186
        %v4188 = vadd.f32 %v4185, %v4187
        %v4189 = vmul.f32 %v4188, 0.5
        %v4190 = vadd.f32 %v4189, 1e-30
        %v4191 = vrsqrt.pop %v4190
        %v4192 = vmul.f32 %v4191, %v4190
        %v4193 = vmul.f32 %v4192, %v4191
        %v4194 = vmul.f32 0.5, %v4193
        %v4195 = vsub.f32 1.5, %v4194
        %v4196 = vmul.f32 %v4191, %v4195
        %vm4197 = vweird.f32 %v4190
        %vm4198 = vweird.f32 %v4191
        %vm4199 = vmor %vm4197, %vm4198
        %v4200 = vsel %vm4199, %v4191, %v4196
        %v4201 = vmul.f32 %v4200, %v4183
        %v4202 = vadd.f32 %v3750, %v3759
        %v4203 = vmul.f32 %v4202, 0.5
        %v4204 = vsub.f32 %v3750, %v4203
        %v4205 = vmul.f32 %v4204, %v4204
        %v4206 = vsub.f32 %v3759, %v4203
        %v4207 = vmul.f32 %v4206, %v4206
        %v4208 = vadd.f32 %v4205, %v4207
        %v4209 = vmul.f32 %v4208, 0.5
        %v4210 = vadd.f32 %v4209, 1e-30
        %v4211 = vrsqrt.pop %v4210
        %v4212 = vmul.f32 %v4211, %v4210
        %v4213 = vmul.f32 %v4212, %v4211
        %v4214 = vmul.f32 0.5, %v4213
        %v4215 = vsub.f32 1.5, %v4214
        %v4216 = vmul.f32 %v4211, %v4215
        %vm4217 = vweird.f32 %v4210
        %vm4218 = vweird.f32 %v4211
        %vm4219 = vmor %vm4217, %vm4218
        %v4220 = vsel %vm4219, %v4211, %v4216
        %v4221 = vadd.f32 %v4200, %v4220
        %v4222 = vmul.f32 %v4220, %v4203
        %v4223 = vadd.f32 %v4201, %v4222
        %v4224 = vrcp.pop %v4221
        %v4225 = vmul.f32 %v4221, %v4224
        %v4226 = vsub.f32 1.0, %v4225
        %v4227 = vmul.f32 %v4224, %v4226
        %v4228 = vadd.f32 %v4224, %v4227
        %vm4229 = vweird.f32 %v4221
        %vm4230 = vweird.f32 %v4224
        %vm4231 = vmor %vm4229, %vm4230
        %v4232 = vsel %vm4231, %v4224, %v4228
        %v4233 = vand.u32 2147483647, %v4221
        %vm4234 = vcmp.eq.f32.partialorder %v4233, 8.507059e+37
        %v4235 = vand.u32 %v4221, 2147483648
        %v4236 = vor.u32 1.1754944e-38, %v4235
        %v4237 = vsel %vm4234, %v4236, %v4232
        %v4238 = vmul.f32 %v4223, %v4237
        %4239 = vmatpush.msra.mxu0 0.0
        %4240 = vmatpush.msra.mxu0 0.0
        %4241 = vmatpush.msra.mxu0 0.0
        %4242 = vmatpush.msra.mxu0 0.0
        %4243 = vmatpush.msra.mxu0 0.0
        %4244 = vmatpush.msra.mxu0 0.0
        %4245 = vmatpush.msra.mxu0 0.0
        %4246 = vmatpush.msra.mxu0 0.0
        %4247 = vmatpush.msra.mxu0 0.0
        %4248 = vmatpush.msra.mxu0 0.0
        %4249 = vmatpush.msra.mxu0 0.0
        %4250 = vmatpush.msra.mxu0 0.0
        %4251 = vmatpush.msra.mxu0 0.0
        %4252 = vmatpush.msra.mxu0 0.0
        %4253 = vmatpush.msra.mxu0 0.0
        %4254 = vmatpush.msra.mxu0 %v4238
        %4255 = vmatmul.f32.gmra.mxu0 %v789
        %v4256 = vpop.f32.mrf.mxu0
        %v4257 = vadd.f32 0.0, %v4256
        %4258 = vdwg.mxu0
        %v4260 = vsel %vm787, %v4257, 0
        %4262 = vmatpush.msra.mxu0 0.0
        %4263 = vmatpush.msra.mxu0 0.0
        %4264 = vmatpush.msra.mxu0 0.0
        %4265 = vmatpush.msra.mxu0 0.0
        %4266 = vmatpush.msra.mxu0 0.0
        %4267 = vmatpush.msra.mxu0 0.0
        %4268 = vmatpush.msra.mxu0 0.0
        %4269 = vmatpush.msra.mxu0 0.0
        %4270 = vmatpush.msra.mxu0 0.0
        %4271 = vmatpush.msra.mxu0 0.0
        %4272 = vmatpush.msra.mxu0 0.0
        %4273 = vmatpush.msra.mxu0 0.0
        %4274 = vmatpush.msra.mxu0 0.0
        %4275 = vmatpush.msra.mxu0 0.0
        %4276 = vmatpush.msra.mxu0 0.0
        %4277 = vmatpush.msra.mxu0 %v3761
        %4278 = vmatmul.f32.gmra.mxu0 %v4260
        %v4279 = vpop.f32.mrf.mxu0
        %v4280 = vadd.f32 0.0, %v4279
        %4281 = vdwg.mxu0
        %v4282 = vmul.f32 %v4280, 0.03125
        %v4284 = vsel %vm832, %v4282, 0
        %4286 = vmatpush.msra.mxu0 0.0
        %4287 = vmatpush.msra.mxu0 0.0
        %4288 = vmatpush.msra.mxu0 0.0
        %4289 = vmatpush.msra.mxu0 0.0
        %4290 = vmatpush.msra.mxu0 0.0
        %4291 = vmatpush.msra.mxu0 0.0
        %4292 = vmatpush.msra.mxu0 0.0
        %4293 = vmatpush.msra.mxu0 0.0
        %4294 = vmatpush.msra.mxu0 0.0
        %4295 = vmatpush.msra.mxu0 0.0
        %4296 = vmatpush.msra.mxu0 0.0
        %4297 = vmatpush.msra.mxu0 0.0
        %4298 = vmatpush.msra.mxu0 0.0
        %4299 = vmatpush.msra.mxu0 0.0
        %4300 = vmatpush.msra.mxu0 0.0
        %4301 = vmatpush.msra.mxu0 %v3868
        %4302 = vmatmul.f32.gmra.mxu0 %v4284
        %v4303 = vpop.f32.mrf.mxu0
        %v4304 = vadd.f32 0.0, %v4303
        %4305 = vdwg.mxu0
        %v4306 = vperm.slane %v4304, 0
        %v4307 = vsub.f32 %v4238, %v4306
        %v4308 = vmul.f32 %v4307, %v4307
        %4309 = vmatpush.msra.mxu0 0.0
        %4310 = vmatpush.msra.mxu0 0.0
        %4311 = vmatpush.msra.mxu0 0.0
        %4312 = vmatpush.msra.mxu0 0.0
        %4313 = vmatpush.msra.mxu0 0.0
        %4314 = vmatpush.msra.mxu0 0.0
        %4315 = vmatpush.msra.mxu0 0.0
        %4316 = vmatpush.msra.mxu0 0.0
        %4317 = vmatpush.msra.mxu0 0.0
        %4318 = vmatpush.msra.mxu0 0.0
        %4319 = vmatpush.msra.mxu0 0.0
        %4320 = vmatpush.msra.mxu0 0.0
        %4321 = vmatpush.msra.mxu0 0.0
        %4322 = vmatpush.msra.mxu0 0.0
        %4323 = vmatpush.msra.mxu0 0.0
        %4324 = vmatpush.msra.mxu0 %v4308
        %4325 = vmatmul.f32.gmra.mxu0 %v789
        %v4326 = vpop.f32.mrf.mxu0
        %v4327 = vadd.f32 0.0, %v4326
        %4328 = vdwg.mxu0
        %v4330 = vsel %vm787, %v4327, 0
        %4332 = vmatpush.msra.mxu0 0.0
        %4333 = vmatpush.msra.mxu0 0.0
        %4334 = vmatpush.msra.mxu0 0.0
        %4335 = vmatpush.msra.mxu0 0.0
        %4336 = vmatpush.msra.mxu0 0.0
        %4337 = vmatpush.msra.mxu0 0.0
        %4338 = vmatpush.msra.mxu0 0.0
        %4339 = vmatpush.msra.mxu0 0.0
        %4340 = vmatpush.msra.mxu0 0.0
        %4341 = vmatpush.msra.mxu0 0.0
        %4342 = vmatpush.msra.mxu0 0.0
        %4343 = vmatpush.msra.mxu0 0.0
        %4344 = vmatpush.msra.mxu0 0.0
        %4345 = vmatpush.msra.mxu0 0.0
        %4346 = vmatpush.msra.mxu0 0.0
        %4347 = vmatpush.msra.mxu0 %v3761
        %4348 = vmatmul.f32.gmra.mxu0 %v4330
        %v4349 = vpop.f32.mrf.mxu0
        %v4350 = vadd.f32 0.0, %v4349
        %4351 = vdwg.mxu0
        %v4352 = vmul.f32 %v4350, 0.03125
        %v4353 = vadd.f32 %v4352, 1e-05
        %v4354 = vrsqrt.pop %v4353
        %v4355 = vmul.f32 %v4354, %v4353
        %v4356 = vmul.f32 %v4355, %v4354
        %v4357 = vmul.f32 0.5, %v4356
        %v4358 = vsub.f32 1.5, %v4357
        %v4359 = vmul.f32 %v4354, %v4358
        %vm4360 = vweird.f32 %v4353
        %vm4361 = vweird.f32 %v4354
        %vm4362 = vmor %vm4360, %vm4361
        %v4363 = vsel %vm4362, %v4354, %v4359
        %v4365 = vsel %vm832, %v4363, 0
        %4367 = vmatpush.msra.mxu0 0.0
        %4368 = vmatpush.msra.mxu0 0.0
        %4369 = vmatpush.msra.mxu0 0.0
        %4370 = vmatpush.msra.mxu0 0.0
        %4371 = vmatpush.msra.mxu0 0.0
        %4372 = vmatpush.msra.mxu0 0.0
        %4373 = vmatpush.msra.mxu0 0.0
        %4374 = vmatpush.msra.mxu0 0.0
        %4375 = vmatpush.msra.mxu0 0.0
        %4376 = vmatpush.msra.mxu0 0.0
        %4377 = vmatpush.msra.mxu0 0.0
        %4378 = vmatpush.msra.mxu0 0.0
        %4379 = vmatpush.msra.mxu0 0.0
        %4380 = vmatpush.msra.mxu0 0.0
        %4381 = vmatpush.msra.mxu0 0.0
        %4382 = vmatpush.msra.mxu0 %v3868
        %4383 = vmatmul.f32.gmra.mxu0 %v4365
        %v4384 = vpop.f32.mrf.mxu0
        %v4385 = vadd.f32 0.0, %v4384
        %4386 = vdwg.mxu0
        %v4387 = vperm.slane %v4385, 0
        %v4388 = vmul.f32 %v4307, %v4387
        %4389 = vst.msk [vmem:[#allocation3 + $0x10] sm:$0xff] %vm787, %v4388
        %v4390 = vld [vmem:[#allocation3] sm:$0xff]
        %v4391 = vld [vmem:[#allocation3 + $0x8] sm:$0xff]
        %v4392 = vld [vmem:[#allocation3 + $0x10] sm:$0xff]
        %v4393 = vld [vmem:[#allocation8 + $0x258] sm:$0xff]
        %v4394 = vld [vmem:[#allocation8 + $0x260] sm:$0xff]
        %v4395 = vld [vmem:[#allocation8 + $0x268] sm:$0xff]
        %v4396 = vld [vmem:[#allocation8 + $0x270] sm:$0x7]
        %v4397 = vld [vmem:[#allocation8 + $0x278] sm:$0x1]
        %v4398 = vld [vmem:[#allocation8 + $0x248] sm:$0xff]
        %v4399 = vmul.f32 %v4390, %v4393
        %v4400 = vmul.f32 %v4391, %v4394
        %v4401 = vmul.f32 %v4392, %v4395
        %vm4402 = vcmask 195584
        %v4404 = vsel %vm4402, %v4396, 0
        %4406 = vmatpush.msra.mxu0 0.0
        %4407 = vmatpush.msra.mxu0 0.0
        %4408 = vmatpush.msra.mxu0 0.0
        %4409 = vmatpush.msra.mxu0 0.0
        %4410 = vmatpush.msra.mxu0 0.0
        %4411 = vmatpush.msra.mxu0 0.0
        %4412 = vmatpush.msra.mxu0 0.0
        %4413 = vmatpush.msra.mxu0 0.0
        %4414 = vmatpush.msra.mxu0 0.0
        %4415 = vmatpush.msra.mxu0 0.0
        %4416 = vmatpush.msra.mxu0 0.0
        %4417 = vmatpush.msra.mxu0 0.0
        %4418 = vmatpush.msra.mxu0 0.0
        %4419 = vmatpush.msra.mxu0 %v4401
        %4420 = vmatpush.msra.mxu0 %v4400
        %4421 = vmatpush.msra.mxu0 %v4399
        %4422 = vmatmul.f32.gmra.mxu0 %v4404
        %v4423 = vpop.f32.mrf.mxu0
        %v4424 = vadd.f32 0.0, %v4423
        %4425 = vdwg.mxu0
        %s4427 = vtos %v4397
        %v4428 = vstv %s4427
        %v4431 = vsel %vm787, %v4424, 0
        %4433 = vmatpush.msra.mxu0 0.0
        %4434 = vmatpush.msra.mxu0 0.0
        %4435 = vmatpush.msra.mxu0 0.0
        %4436 = vmatpush.msra.mxu0 0.0
        %4437 = vmatpush.msra.mxu0 0.0
        %4438 = vmatpush.msra.mxu0 0.0
        %4439 = vmatpush.msra.mxu0 0.0
        %4440 = vmatpush.msra.mxu0 0.0
        %4441 = vmatpush.msra.mxu0 0.0
        %4442 = vmatpush.msra.mxu0 0.0
        %4443 = vmatpush.msra.mxu0 0.0
        %4444 = vmatpush.msra.mxu0 0.0
        %4445 = vmatpush.msra.mxu0 0.0
        %4446 = vmatpush.msra.mxu0 0.0
        %4447 = vmatpush.msra.mxu0 0.0
        %4448 = vmatpush.msra.mxu0 %v4398
        %4449 = vmatmul.f32.gmra.mxu0 %v4431
        %v4450 = vpop.f32.mrf.mxu0
        %v4451 = vadd.f32 %v4428, %v4450
        %4452 = vdwg.mxu0
        %vm4453 = vcmask 10240
        %4454 = vst.msk [vmem:[%s247] sm:$0x7] %vm4453, %v4451
        %p4455 = scmp.lt.s32.totalorder %s19, 1
        %s4456 = scalar_select %p4455, %s19, 1
        %s4457 = smul.addr %s4456, 4
        %s4458 = scalar_lea.vmem %s4, %s4457
        // Predicated region
        $region49: #{tpu_custom_call.1} parent=35 // pred_check
          %p4459 = pneg %p126
        $region50: #{tpu_custom_call.1} parent=35 // pred_check_branch
          %4461 = sbr.rel (%p4459) target = $region52
        $region51: #{tpu_custom_call.1} parent=35 // pred_region
          _
        $region52: #{tpu_custom_call.1} parent=35 // pred_fallthru
          _
      $region36: #{tpu_custom_call.1} parent=5 // pred_fallthru
        _
      %p4462 = scmp.le.s32.totalorder 2, %s14
      // Predicated region
      $region53: #{tpu_custom_call.1} parent=5 // pred_check
        %p4463 = pneg %p4462
      $region54: #{tpu_custom_call.1} parent=5 // pred_check_branch
        %4465 = sbr.rel (%p4463) target = $region56
      $region55: #{tpu_custom_call.1} parent=5 // pred_region
        %s4466 = ssub.s32 %s14, 2
        // Predicated region
        $region57: #{tpu_custom_call.1} parent=55 // pred_check
          %p4467 = pneg %p132
        $region58: #{tpu_custom_call.1} parent=55 // pred_check_branch
          %4469 = sbr.rel (%p4467) target = $region60
        $region59: #{tpu_custom_call.1} parent=55 // pred_region
          %p4470 = scmp.lt.s32.totalorder %s20, 1
          %s4471 = scalar_select %p4470, %s20, 1
          %s4472 = smul.addr %s4471, 4
          %s4473 = scalar_lea.vmem %s4, %s4472
        $region60: #{tpu_custom_call.1} parent=55 // pred_fallthru
          _
      $region56: #{tpu_custom_call.1} parent=5 // pred_fallthru
        _
    $region6: #{tpu_custom_call.1} parent=1 // loop_footer
      %s18 = sadd.s32 1, %s14
    $region7: #{tpu_custom_call.1} parent=1 // loop_footer_branch
      %13 = sbr.rel target = $region3
    $region8: #{tpu_custom_call.1} parent=1 // loop_exit
      _
    %4474 = vsyncpa [#allocation5], 1
    %s4475 = scalar_lea.sflag [#allocation5], 1
    %4476 = vsyncpa %s4475, 1
    %4477 = vsyncpa [#allocation7], 1

</llo_original>
